<compile_context>
chip_gen: v7x
topology: tpu7x:2x2x1
jax: 0.10.0
libtpu: 0.0.40
codegen_flags: <defaults>
</compile_context>

<pallas_src>
import functools

import jax
import jax.numpy as jnp
from jax.experimental import pallas as pl
from jax.experimental.pallas import tpu as pltpu

EPS = 1e-5


# ----------------------------- Pallas kernel ------------------------------- #

def _bottleneck_kernel(xp_ref, w1_ref, b1_ref, w2_ref, b2_ref, w3_ref, b3_ref,
                       out_ref, pk_ref, *, H, W, Wp_pad):
    """Fused Bottleneck forward for one (spatially zero-padded) image.

    xp_ref:  (Hp*Wp_pad, Cin) padded input pixels, row-major (h, w), f32
    w1_ref:  (Cin, P)         conv1 weight with bn1 scale folded in
    w2_ref:  (3, 3P, P)       conv2 weights packed per dh (K blocks dw=0,1,2)
    w3_ref:  (P, 4P)          conv3 weight with bn3 scale folded in
    b*_ref:  (1, C)           folded BN biases (f32)
    out_ref: (H*Wp_pad, 4P)   width-padded output rows (cols >= W are junk and
                              sliced off by the wrapper)
    pk_ref:  VMEM scratch (Hp*Wp_pad, 3P), width-packed conv2 operand
    """
    P = w1_ref.shape[1]
    n_out = H * Wp_pad                      # rows fed to conv2/conv3
    cdt = pk_ref.dtype                      # MXU operand dtype (bf16 or f32)

    # ---- conv1 (1x1) + bn1 + relu over the interior row band ---------------
    # The band (padded rows h=1..H, all columns) is one aligned contiguous
    # slice; the left/right pad columns are re-zeroed with an iota mask so they
    # act as conv2's zero padding.
    x_band = xp_ref[pl.ds(Wp_pad, n_out), :]                      # f32
    a1 = jnp.dot(x_band.astype(cdt), w1_ref[...],
                 preferred_element_type=jnp.float32)
    col = jax.lax.broadcasted_iota(jnp.int32, (n_out, 1), 0) % Wp_pad
    interior = jnp.logical_and(col >= 1, col <= W)
    y1 = jnp.where(interior, jnp.maximum(a1 + b1_ref[...], 0.0), 0.0)  # f32

    # ---- build the width-packed conv2 operand (dw folded into K) -----------
    # pk[r, dw*P:(dw+1)*P] == y1_padded[r + dw]; the zero blocks realize the
    # top/bottom zero padding of y1.  Stored once, lane-dense, aligned pitch.
    blocks = []
    for dw in range(3):
        top = jnp.zeros((Wp_pad - dw, P), jnp.float32)
        bot = jnp.zeros((Wp_pad + dw, P), jnp.float32)
        blocks.append(jnp.concatenate([top, y1, bot], axis=0))
    pk_ref[...] = jnp.concatenate(blocks, axis=1).astype(cdt)     # (Hp*Wp_pad, 3P)

    # ---- conv2 (3x3, pad=1, stride=1) + bn2 + relu --------------------------
    # Three accumulating MXU matmuls with K = 3P; every slice start dh*Wp_pad
    # is a multiple of 8 (sublane aligned), so no realignment copies.
    acc2 = jnp.zeros((n_out, P), jnp.float32)
    for dh in range(3):
        acc2 = acc2 + jnp.dot(pk_ref[pl.ds(dh * Wp_pad, n_out), :], w2_ref[dh],
                              preferred_element_type=jnp.float32)
    y2 = jnp.maximum(acc2 + b2_ref[...], 0.0).astype(cdt)         # (n_out, P)

    # ---- conv3 (1x1) + bn3 + residual + relu (fused epilogue) ---------------
    a3 = jnp.dot(y2, w3_ref[...], preferred_element_type=jnp.float32)
    res = xp_ref[pl.ds(Wp_pad + 1, n_out), :].astype(jnp.float32)  # x at (h, w), f32
    out_ref[...] = jnp.maximum(a3 + b3_ref[...] + res, 0.0).astype(out_ref.dtype)


# ------------------------------- JAX glue ---------------------------------- #

def _fold_scale_bias(bn):
    scale = bn["gamma"] / jnp.sqrt(bn["var"] + EPS)
    bias = bn["beta"] - bn["mean"] * scale
    return scale, bias


@functools.partial(jax.jit, static_argnames=("stride", "compute_dtype"))
def bottleneck_forward(x_nchw, params, stride=1, compute_dtype=jnp.bfloat16):
    """Pallas-backed Bottleneck forward (downsample=None -> stride must be 1)."""
    assert stride == 1, "downsample=None requires stride=1 for the residual add"
    N, Cin, H, W = x_nchw.shape
    P = params["w1"].shape[0]
    C4 = params["w3"].shape[0]
    assert C4 == Cin, "identity residual requires inplanes == 4 * planes"

    Wp_pad = -(-(W + 2) // 8) * 8            # 8-aligned padded row pitch
    Hp = H + 2
    n_pad = Hp * Wp_pad
    n_out = H * Wp_pad
    cdt = compute_dtype

    # NCHW -> NHWC, zero-pad to the aligned padded pitch, flatten row-major.
    # Kept in f32 so the residual add happens at full precision.
    x = jnp.transpose(x_nchw, (0, 2, 3, 1))                        # (N, H, W, Cin)
    xp = jnp.pad(x, ((0, 0), (1, 1), (1, Wp_pad - W - 1), (0, 0)))  # (N, Hp, Wp_pad, Cin)
    xp2 = xp.reshape(N, n_pad, Cin)

    # Fold eval-mode BN scales into the weight columns (host side).
    s1, bias1 = _fold_scale_bias(params["bn1"])
    s2, bias2 = _fold_scale_bias(params["bn2"])
    s3, bias3 = _fold_scale_bias(params["bn3"])
    w1m = (params["w1"][:, :, 0, 0].T * s1[None, :]).astype(cdt)            # (Cin, P)
    w2p = (jnp.transpose(params["w2"], (2, 3, 1, 0)).reshape(3, 3 * P, P)
           * s2[None, None, :]).astype(cdt)                                 # (3, 3P, P)
    w3m = (params["w3"][:, :, 0, 0].T * s3[None, :]).astype(cdt)            # (P, 4P)
    b1 = bias1[None, :].astype(jnp.float32)
    b2 = bias2[None, :].astype(jnp.float32)
    b3 = bias3[None, :].astype(jnp.float32)

    kernel = functools.partial(_bottleneck_kernel, H=H, W=W, Wp_pad=Wp_pad)

    out = pl.pallas_call(
        kernel,
        out_shape=jax.ShapeDtypeStruct((N, n_out, C4), x_nchw.dtype),
        grid_spec=pltpu.PrefetchScalarGridSpec(
            num_scalar_prefetch=0,
            grid=(N,),
            in_specs=[
                pl.BlockSpec((None, n_pad, Cin), lambda n: (n, 0, 0)),   # xp (f32)
                pl.BlockSpec((Cin, P), lambda n: (0, 0)),                # w1
                pl.BlockSpec((1, P), lambda n: (0, 0)),                  # b1
                pl.BlockSpec((3, 3 * P, P), lambda n: (0, 0, 0)),        # w2 packed
                pl.BlockSpec((1, P), lambda n: (0, 0)),                  # b2
                pl.BlockSpec((P, C4), lambda n: (0, 0)),                 # w3
                pl.BlockSpec((1, C4), lambda n: (0, 0)),                 # b3
            ],
            out_specs=pl.BlockSpec((None, n_out, C4), lambda n: (n, 0, 0)),
            scratch_shapes=[pltpu.VMEM((n_pad, 3 * P), cdt)],
        ),
        compiler_params=pltpu.CompilerParams(
            dimension_semantics=("parallel",),
            vmem_limit_bytes=64 * 1024 * 1024),
    )(xp2, w1m, b1, w2p, b2, w3m, b3)

    # Drop the padded output columns per row, back to NCHW.
    out = out.reshape(N, H, Wp_pad, C4)[:, :, :W, :]
    return jnp.transpose(out, (0, 3, 1, 2))


# --------------------------- reference (plain JAX) -------------------------- #

def _ref_forward(x, params):
    def conv(x, w, stride=1, pad=0):
        return jax.lax.conv_general_dilated(
            x, w, (stride, stride), [(pad, pad), (pad, pad)],
            dimension_numbers=("NCHW", "OIHW", "NCHW"),
            precision=jax.lax.Precision.HIGHEST)

    def bn(x, p):
        s = p["gamma"] / jnp.sqrt(p["var"] + EPS)
        b = p["beta"] - p["mean"] * s
        return x * s[None, :, None, None] + b[None, :, None, None]

    out = jax.nn.relu(bn(conv(x, params["w1"]), params["bn1"]))
    out = jax.nn.relu(bn(conv(out, params["w2"], stride=1, pad=1), params["bn2"]))
    out = bn(conv(out, params["w3"]), params["bn3"])
    return jax.nn.relu(out + x)


# ----------------------------------- main ----------------------------------- #

def _make_params(key, inplanes, planes):
    ks = jax.random.split(key, 6)

    def bn_params(k, c):
        k1, k2, k3, k4 = jax.random.split(k, 4)
        return {
            "gamma": jax.random.uniform(k1, (c,), jnp.float32, 0.5, 1.5),
            "beta": jax.random.normal(k2, (c,), jnp.float32) * 0.1,
            "mean": jax.random.normal(k3, (c,), jnp.float32) * 0.1,
            "var": jax.random.uniform(k4, (c,), jnp.float32, 0.5, 1.5),
        }

    return {
        "w1": jax.random.normal(ks[0], (planes, inplanes, 1, 1), jnp.float32) * 0.1,
        "bn1": bn_params(ks[1], planes),
        "w2": jax.random.normal(ks[2], (planes, planes, 3, 3), jnp.float32) * 0.1,
        "bn2": bn_params(ks[3], planes),
        "w3": jax.random.normal(ks[4], (planes * 4, planes, 1, 1), jnp.float32) * 0.1,
        "bn3": bn_params(ks[5], planes * 4),
    }


if __name__ == "__main__":
    # inplanes must equal planes*4 so the identity residual add is valid
    # (downsample=None in the PyTorch module).  Small demo shapes; real
    # Bottleneck stages (P >= 64) are what the tiling/packing targets.
    inplanes, planes = 16, 4
    N, H, W = 2, 16, 16

    key = jax.random.PRNGKey(0)
    kx, kp = jax.random.split(key)
    x = jax.random.normal(kx, (N, inplanes, H, W), jnp.float32)  # NCHW like PyTorch
    params = _make_params(kp, inplanes, planes)

    ref = jax.block_until_ready(_ref_forward(x, params))

    # Strict numerics check with f32 MXU operands.
    out_f32 = jax.block_until_ready(
        bottleneck_forward(x, params, stride=1, compute_dtype=jnp.float32))
    assert out_f32.shape == (N, planes * 4, H, W), out_f32.shape
    if not jnp.allclose(out_f32, ref, atol=2e-3, rtol=2e-3):
        raise AssertionError("Pallas bottleneck (f32) mismatch vs JAX reference")

    # Fast path: bf16 MXU operands, f32 accumulation, f32 residual.
    out_bf16 = jax.block_until_ready(
        bottleneck_forward(x, params, stride=1, compute_dtype=jnp.bfloat16))
    assert out_bf16.shape == (N, planes * 4, H, W), out_bf16.shape
    if not jnp.allclose(out_bf16, ref, atol=5e-2, rtol=5e-2):
        raise AssertionError("Pallas bottleneck (bf16) mismatch vs JAX reference")

    print("KERNEL_OK")
</pallas_src>

<mosaic_0001>
module attributes {stable_mosaic.version = 11 : i64} {
  func.func @_bottleneck_kernel(%arg0: i32, %arg1: memref<1x432x16xf32, #tpu.memory_space<vmem>>, %arg2: memref<16x4xf32, #tpu.memory_space<vmem>>, %arg3: memref<1x4xf32, #tpu.memory_space<vmem>>, %arg4: memref<3x12x4xf32, #tpu.memory_space<vmem>>, %arg5: memref<1x4xf32, #tpu.memory_space<vmem>>, %arg6: memref<4x16xf32, #tpu.memory_space<vmem>>, %arg7: memref<1x16xf32, #tpu.memory_space<vmem>>, %arg8: memref<1x384x16xf32, #tpu.memory_space<vmem>>, %arg9: memref<432x12xf32, #tpu.memory_space<vmem>>) attributes {dimension_semantics = [#tpu.dimension_semantics<parallel>], iteration_bounds = array<i64: 2>, scalar_prefetch = 0 : i64, scratch_operands = 1 : i64, tpu.core_type = #tpu.core_type<tc>, window_params = [{transform_indices = @transform_0, window_bounds = array<i64: 1, 432, 16>}, {pipeline_mode = #tpu.pipeline_mode<synchronous>, transform_indices = @transform_1, window_bounds = array<i64: 16, 4>}, {pipeline_mode = #tpu.pipeline_mode<synchronous>, transform_indices = @transform_2, window_bounds = array<i64: 1, 4>}, {pipeline_mode = #tpu.pipeline_mode<synchronous>, transform_indices = @transform_3, window_bounds = array<i64: 3, 12, 4>}, {pipeline_mode = #tpu.pipeline_mode<synchronous>, transform_indices = @transform_4, window_bounds = array<i64: 1, 4>}, {pipeline_mode = #tpu.pipeline_mode<synchronous>, transform_indices = @transform_5, window_bounds = array<i64: 4, 16>}, {pipeline_mode = #tpu.pipeline_mode<synchronous>, transform_indices = @transform_6, window_bounds = array<i64: 1, 16>}, {transform_indices = @transform_7, window_bounds = array<i64: 1, 384, 16>}]} {
    %c0 = arith.constant 0 : index
    %c24 = arith.constant 24 : index
    %c0_0 = arith.constant 0 : index
    %0 = vector.load %arg1[%c0, %c24, %c0_0] : memref<1x432x16xf32, #tpu.memory_space<vmem>>, vector<1x384x16xf32>
    %1 = vector.shape_cast %0 : vector<1x384x16xf32> to vector<384x16xf32>
    %c0_1 = arith.constant 0 : index
    %c0_2 = arith.constant 0 : index
    %2 = vector.load %arg2[%c0_1, %c0_2] : memref<16x4xf32, #tpu.memory_space<vmem>>, vector<16x4xf32>
    %cst = arith.constant dense<0.000000e+00> : vector<384x4xf32>
    %3 = tpu.matmul %1, %2, %cst {dimension_numbers = #tpu.dot_dimension_numbers<[1], [0], [0], [1], [0, 0, 1, 1], [], []>} : vector<384x16xf32>, vector<16x4xf32>, vector<384x4xf32> -> vector<384x4xf32>
    %4 = tpu.iota {dimensions = array<i32: 0>} : vector<384x1xi32>
    %c24_i32 = arith.constant 24 : i32
    %c0_i32 = arith.constant 0 : i32
    %5 = arith.cmpi eq, %c24_i32, %c0_i32 : i32
    %c1_i32 = arith.constant 1 : i32
    %6 = arith.select %5, %c1_i32, %c24_i32 : i32
    %7 = vector.broadcast %6 : i32 to vector<384x1xi32>
    %8 = arith.remsi %4, %7 : vector<384x1xi32>
    %c0_i32_3 = arith.constant 0 : i32
    %9 = vector.broadcast %c0_i32_3 : i32 to vector<384x1xi32>
    %10 = arith.cmpi ne, %8, %9 : vector<384x1xi32>
    %c0_i32_4 = arith.constant 0 : i32
    %11 = vector.broadcast %c0_i32_4 : i32 to vector<384x1xi32>
    %12 = arith.cmpi slt, %8, %11 : vector<384x1xi32>
    %c0_i32_5 = arith.constant 0 : i32
    %13 = arith.cmpi slt, %6, %c0_i32_5 : i32
    %14 = vector.broadcast %13 : i1 to vector<384x1xi1>
    %15 = vector.broadcast %14 : vector<384x1xi1> to vector<384x1xi1>
    %16 = arith.xori %12, %15 : vector<384x1xi1>
    %17 = arith.andi %16, %10 : vector<384x1xi1>
    %18 = vector.broadcast %6 : i32 to vector<384x1xi32>
    %19 = arith.addi %8, %18 : vector<384x1xi32>
    %20 = arith.select %17, %19, %8 : vector<384x1xi1>, vector<384x1xi32>
    %c1_i32_6 = arith.constant 1 : i32
    %21 = vector.broadcast %c1_i32_6 : i32 to vector<384x1xi32>
    %22 = arith.cmpi sge, %20, %21 : vector<384x1xi32>
    %c16_i32 = arith.constant 16 : i32
    %23 = vector.broadcast %c16_i32 : i32 to vector<384x1xi32>
    %24 = arith.cmpi sle, %20, %23 : vector<384x1xi32>
    %25 = arith.andi %22, %24 : vector<384x1xi1>
    %c0_7 = arith.constant 0 : index
    %c0_8 = arith.constant 0 : index
    %26 = vector.load %arg3[%c0_7, %c0_8] : memref<1x4xf32, #tpu.memory_space<vmem>>, vector<1x4xf32>
    %27 = vector.broadcast %26 : vector<1x4xf32> to vector<384x4xf32>
    %28 = arith.addf %3, %27 : vector<384x4xf32>
    %cst_9 = arith.constant 0.000000e+00 : f32
    %29 = vector.broadcast %cst_9 : f32 to vector<384x4xf32>
    %30 = arith.maximumf %28, %29 : vector<384x4xf32>
    %cst_10 = arith.constant 0.000000e+00 : f32
    %31 = vector.shape_cast %25 : vector<384x1xi1> to vector<384x1xi1>
    %32 = vector.broadcast %31 : vector<384x1xi1> to vector<384x4xi1>
    %33 = vector.broadcast %cst_10 : f32 to vector<384x4xf32>
    %34 = arith.select %32, %30, %33 : vector<384x4xi1>, vector<384x4xf32>
    %cst_11 = arith.constant 0.000000e+00 : f32
    %35 = vector.broadcast %cst_11 : f32 to vector<24x4xf32>
    %cst_12 = arith.constant 0.000000e+00 : f32
    %36 = vector.broadcast %cst_12 : f32 to vector<24x4xf32>
    %37 = tpu.concatenate %35, %34, %36 in 0 : vector<24x4xf32>, vector<384x4xf32>, vector<24x4xf32> -> vector<432x4xf32>
    %cst_13 = arith.constant 0.000000e+00 : f32
    %38 = vector.broadcast %cst_13 : f32 to vector<23x4xf32>
    %cst_14 = arith.constant 0.000000e+00 : f32
    %39 = vector.broadcast %cst_14 : f32 to vector<25x4xf32>
    %40 = tpu.concatenate %38, %34, %39 in 0 : vector<23x4xf32>, vector<384x4xf32>, vector<25x4xf32> -> vector<432x4xf32>
    %cst_15 = arith.constant 0.000000e+00 : f32
    %41 = vector.broadcast %cst_15 : f32 to vector<22x4xf32>
    %cst_16 = arith.constant 0.000000e+00 : f32
    %42 = vector.broadcast %cst_16 : f32 to vector<26x4xf32>
    %43 = tpu.concatenate %41, %34, %42 in 0 : vector<22x4xf32>, vector<384x4xf32>, vector<26x4xf32> -> vector<432x4xf32>
    %44 = tpu.concatenate %37, %40, %43 in 1 : vector<432x4xf32>, vector<432x4xf32>, vector<432x4xf32> -> vector<432x12xf32>
    %c0_17 = arith.constant 0 : index
    %c0_18 = arith.constant 0 : index
    %45 = vector.load %arg9[%c0_17, %c0_18] : memref<432x12xf32, #tpu.memory_space<vmem>>, vector<432x12xf32>
    tpu.vector_store %arg9[%c0_17, %c0_18], %44 {strides = array<i32>} : memref<432x12xf32, #tpu.memory_space<vmem>>, vector<432x12xf32>,
    %cst_19 = arith.constant 0.000000e+00 : f32
    %46 = vector.broadcast %cst_19 : f32 to vector<384x4xf32>
    %c0_20 = arith.constant 0 : index
    %c0_21 = arith.constant 0 : index
    %47 = vector.load %arg9[%c0_20, %c0_21] : memref<432x12xf32, #tpu.memory_space<vmem>>, vector<384x12xf32>
    %c0_22 = arith.constant 0 : index
    %c0_23 = arith.constant 0 : index
    %c0_24 = arith.constant 0 : index
    %48 = vector.load %arg4[%c0_22, %c0_23, %c0_24] : memref<3x12x4xf32, #tpu.memory_space<vmem>>, vector<1x12x4xf32>
    %49 = vector.shape_cast %48 : vector<1x12x4xf32> to vector<12x4xf32>
    %cst_25 = arith.constant dense<0.000000e+00> : vector<384x4xf32>
    %50 = tpu.matmul %47, %49, %cst_25 {dimension_numbers = #tpu.dot_dimension_numbers<[1], [0], [0], [1], [0, 0, 1, 1], [], []>} : vector<384x12xf32>, vector<12x4xf32>, vector<384x4xf32> -> vector<384x4xf32>
    %51 = arith.addf %46, %50 : vector<384x4xf32>
    %c24_26 = arith.constant 24 : index
    %c0_27 = arith.constant 0 : index
    %52 = vector.load %arg9[%c24_26, %c0_27] : memref<432x12xf32, #tpu.memory_space<vmem>>, vector<384x12xf32>
    %c1 = arith.constant 1 : index
    %c0_28 = arith.constant 0 : index
    %c0_29 = arith.constant 0 : index
    %53 = vector.load %arg4[%c1, %c0_28, %c0_29] : memref<3x12x4xf32, #tpu.memory_space<vmem>>, vector<1x12x4xf32>
    %54 = vector.shape_cast %53 : vector<1x12x4xf32> to vector<12x4xf32>
    %cst_30 = arith.constant dense<0.000000e+00> : vector<384x4xf32>
    %55 = tpu.matmul %52, %54, %cst_30 {dimension_numbers = #tpu.dot_dimension_numbers<[1], [0], [0], [1], [0, 0, 1, 1], [], []>} : vector<384x12xf32>, vector<12x4xf32>, vector<384x4xf32> -> vector<384x4xf32>
    %56 = arith.addf %51, %55 : vector<384x4xf32>
    %c48 = arith.constant 48 : index
    %c0_31 = arith.constant 0 : index
    %57 = vector.load %arg9[%c48, %c0_31] : memref<432x12xf32, #tpu.memory_space<vmem>>, vector<384x12xf32>
    %c2 = arith.constant 2 : index
    %c0_32 = arith.constant 0 : index
    %c0_33 = arith.constant 0 : index
    %58 = vector.load %arg4[%c2, %c0_32, %c0_33] : memref<3x12x4xf32, #tpu.memory_space<vmem>>, vector<1x12x4xf32>
    %59 = vector.shape_cast %58 : vector<1x12x4xf32> to vector<12x4xf32>
    %cst_34 = arith.constant dense<0.000000e+00> : vector<384x4xf32>
    %60 = tpu.matmul %57, %59, %cst_34 {dimension_numbers = #tpu.dot_dimension_numbers<[1], [0], [0], [1], [0, 0, 1, 1], [], []>} : vector<384x12xf32>, vector<12x4xf32>, vector<384x4xf32> -> vector<384x4xf32>
    %61 = arith.addf %56, %60 : vector<384x4xf32>
    %c0_35 = arith.constant 0 : index
    %c0_36 = arith.constant 0 : index
    %62 = vector.load %arg5[%c0_35, %c0_36] : memref<1x4xf32, #tpu.memory_space<vmem>>, vector<1x4xf32>
    %63 = vector.broadcast %62 : vector<1x4xf32> to vector<384x4xf32>
    %64 = arith.addf %61, %63 : vector<384x4xf32>
    %cst_37 = arith.constant 0.000000e+00 : f32
    %65 = vector.broadcast %cst_37 : f32 to vector<384x4xf32>
    %66 = arith.maximumf %64, %65 : vector<384x4xf32>
    %c0_38 = arith.constant 0 : index
    %c0_39 = arith.constant 0 : index
    %67 = vector.load %arg6[%c0_38, %c0_39] : memref<4x16xf32, #tpu.memory_space<vmem>>, vector<4x16xf32>
    %cst_40 = arith.constant dense<0.000000e+00> : vector<384x16xf32>
    %68 = tpu.matmul %66, %67, %cst_40 {dimension_numbers = #tpu.dot_dimension_numbers<[1], [0], [0], [1], [0, 0, 1, 1], [], []>} : vector<384x4xf32>, vector<4x16xf32>, vector<384x16xf32> -> vector<384x16xf32>
    %c0_41 = arith.constant 0 : index
    %c25 = arith.constant 25 : index
    %c0_42 = arith.constant 0 : index
    %69 = vector.load %arg1[%c0_41, %c25, %c0_42] : memref<1x432x16xf32, #tpu.memory_space<vmem>>, vector<1x384x16xf32>
    %70 = vector.shape_cast %69 : vector<1x384x16xf32> to vector<384x16xf32>
    %c0_43 = arith.constant 0 : index
    %c0_44 = arith.constant 0 : index
    %71 = vector.load %arg7[%c0_43, %c0_44] : memref<1x16xf32, #tpu.memory_space<vmem>>, vector<1x16xf32>
    %72 = vector.broadcast %71 : vector<1x16xf32> to vector<384x16xf32>
    %73 = arith.addf %68, %72 : vector<384x16xf32>
    %74 = arith.addf %73, %70 : vector<384x16xf32>
    %cst_45 = arith.constant 0.000000e+00 : f32
    %75 = vector.broadcast %cst_45 : f32 to vector<384x16xf32>
    %76 = arith.maximumf %74, %75 : vector<384x16xf32>
    %c0_46 = arith.constant 0 : index
    %c0_47 = arith.constant 0 : index
    %c0_48 = arith.constant 0 : index
    %77 = vector.load %arg8[%c0_46, %c0_47, %c0_48] : memref<1x384x16xf32, #tpu.memory_space<vmem>>, vector<1x384x16xf32>
    %78 = vector.shape_cast %77 : vector<1x384x16xf32> to vector<384x16xf32>
    %79 = vector.shape_cast %76 : vector<384x16xf32> to vector<1x384x16xf32>
    tpu.vector_store %arg8[%c0_46, %c0_47, %c0_48], %79 {strides = array<i32>} : memref<1x384x16xf32, #tpu.memory_space<vmem>>, vector<1x384x16xf32>,
    return
  }
  func.func @transform_0(%arg0: i32) -> (i32, i32, i32) {
    %c0_i32 = arith.constant 0 : i32
    %c0_i32_0 = arith.constant 0 : i32
    %c0_i32_1 = arith.constant 0 : i32
    return %arg0, %c0_i32, %c0_i32_0 : i32, i32, i32
  }
  func.func @transform_1(%arg0: i32) -> (i32, i32) {
    %c0_i32 = arith.constant 0 : i32
    %c0_i32_0 = arith.constant 0 : i32
    %c0_i32_1 = arith.constant 0 : i32
    return %c0_i32, %c0_i32_0 : i32, i32
  }
  func.func @transform_2(%arg0: i32) -> (i32, i32) {
    %c0_i32 = arith.constant 0 : i32
    %c0_i32_0 = arith.constant 0 : i32
    %c0_i32_1 = arith.constant 0 : i32
    return %c0_i32, %c0_i32_0 : i32, i32
  }
  func.func @transform_3(%arg0: i32) -> (i32, i32, i32) {
    %c0_i32 = arith.constant 0 : i32
    %c0_i32_0 = arith.constant 0 : i32
    %c0_i32_1 = arith.constant 0 : i32
    %c0_i32_2 = arith.constant 0 : i32
    return %c0_i32, %c0_i32_0, %c0_i32_1 : i32, i32, i32
  }
  func.func @transform_4(%arg0: i32) -> (i32, i32) {
    %c0_i32 = arith.constant 0 : i32
    %c0_i32_0 = arith.constant 0 : i32
    %c0_i32_1 = arith.constant 0 : i32
    return %c0_i32, %c0_i32_0 : i32, i32
  }
  func.func @transform_5(%arg0: i32) -> (i32, i32) {
    %c0_i32 = arith.constant 0 : i32
    %c0_i32_0 = arith.constant 0 : i32
    %c0_i32_1 = arith.constant 0 : i32
    return %c0_i32, %c0_i32_0 : i32, i32
  }
  func.func @transform_6(%arg0: i32) -> (i32, i32) {
    %c0_i32 = arith.constant 0 : i32
    %c0_i32_0 = arith.constant 0 : i32
    %c0_i32_1 = arith.constant 0 : i32
    return %c0_i32, %c0_i32_0 : i32, i32
  }
  func.func @transform_7(%arg0: i32) -> (i32, i32, i32) {
    %c0_i32 = arith.constant 0 : i32
    %c0_i32_0 = arith.constant 0 : i32
    %c0_i32_1 = arith.constant 0 : i32
    return %arg0, %c0_i32, %c0_i32_0 : i32, i32, i32
  }
}

</mosaic_0001>

<llo_original>
// kernel: bottleneck_forward.1
$region0: #{bottleneck_forward.1}
  #allocation0 [shape = 'u32[]', space=smem, size = 0x4, offset = 0x4, fixed_abs, tag = 'smem constant byte address 0x4 - core index']
  #allocation1 [shape = 'u32[144,128]{1,0:T(1,128)}', space=vmem, size = 0x12000, scoped, tag = 'internal scratch']
  #allocation2 [shape = 'f32[432,12]{1,0:T(8,128)}', space=vmem, size = 0x36000, scoped, tag = 'scratch operand']
  %s0 = inlined_call_operand.hbm [shape: f32[2,432,16], index: 0, kind: input, shape index: {}]
  %s1 = inlined_call_operand.hbm [shape: f32[16,4], index: 1, kind: input, shape index: {}]
  %s2 = inlined_call_operand.hbm [shape: f32[1,4], index: 2, kind: input, shape index: {}]
  %s3 = inlined_call_operand.hbm [shape: f32[3,12,4], index: 3, kind: input, shape index: {}]
  %s4 = inlined_call_operand.hbm [shape: f32[1,4], index: 4, kind: input, shape index: {}]
  %s5 = inlined_call_operand.hbm [shape: f32[4,16], index: 5, kind: input, shape index: {}]
  %s6 = inlined_call_operand.hbm [shape: f32[1,16], index: 6, kind: input, shape index: {}]
  %s7 = inlined_call_operand.hbm [shape: f32[2,384,16], index: 7, kind: output, shape index: {}]
  %s8 = sld [smem:[#allocation0]]
  $region89: #{bottleneck_forward.1} parent=0
    _
  %s10 = ssub.s32 1, %s8
  %s11 = scalar_select 0, %s10, %s8
  $region1: #{bottleneck_forward.1} parent=0
    #allocation3 [shape = 'u8[442368]{0}', space=vmem, size = 0x6c000, scoped, tag = 'input window, operand 0']
    #allocation4 [shape = 's32[2]{0}', space=sflag, size = 0x8, scoped, tag = 'scoped memory for bottleneck_forward.1']
    #allocation5 [shape = 's32[2]{0}', space=sflag, size = 0x8, scoped, tag = 'scoped memory for bottleneck_forward.1']
    #allocation6 [shape = 'u8[8192]{0}', space=vmem, size = 0x2000, scoped, tag = 'input window, operand 1, single buffered']
    #allocation7 [shape = 's32[1]{0}', space=sflag, size = 0x4, scoped, tag = 'scoped memory for bottleneck_forward.1']
    #allocation8 [shape = 'u8[512]{0}', space=vmem, size = 0x400, scoped, tag = 'input window, operand 2, single buffered']
    #allocation9 [shape = 'u8[24576]{0}', space=vmem, size = 0x6000, scoped, tag = 'input window, operand 3, single buffered']
    #allocation10 [shape = 's32[1]{0}', space=sflag, size = 0x4, scoped, tag = 'scoped memory for bottleneck_forward.1']
    #allocation11 [shape = 'u8[512]{0}', space=vmem, size = 0x400, scoped, tag = 'input window, operand 4, single buffered']
    #allocation12 [shape = 'u8[2048]{0}', space=vmem, size = 0x800, scoped, tag = 'input window, operand 5, single buffered']
    #allocation13 [shape = 's32[1]{0}', space=sflag, size = 0x4, scoped, tag = 'scoped memory for bottleneck_forward.1']
    #allocation14 [shape = 'u8[512]{0}', space=vmem, size = 0x400, scoped, tag = 'input window, operand 6, single buffered']
    #allocation15 [shape = 'u8[393216]{0}', space=vmem, size = 0x60000, scoped, tag = 'output window, operand 0']
    %12 = vsyncpa [#allocation4], 0
    %s13 = scalar_lea.sflag [#allocation4], 1
    %14 = vsyncpa %s13, 0
    %15 = vsyncpa [#allocation7], 0
    %16 = vsyncpa [#allocation10], 0
    %17 = vsyncpa [#allocation13], 0
    %18 = vsyncpa [#allocation5], 0
    %s19 = scalar_lea.sflag [#allocation5], 1
    %20 = vsyncpa %s19, 0
    loop: start=0, step=1, limit=4
    $region2: #{bottleneck_forward.1} parent=1 // loop_pre_header
      _
    $region3: #{bottleneck_forward.1} parent=1 // loop_header
      %s22 = sphi 0, %s26
      %p23 = scmp.ge.s32.totalorder %s22, 4
      %s32 = sphi 0, %s34
      %s35 = sphi 0, %s32
      %s36 = sphi 0, %s35
      %s52 = sphi 0, %s36
      %s56 = sphi 0, %s56
      %s58 = sphi 0, %s56
      %s59 = sphi 0, %s58
      %s73 = sphi 0, %s59
      %s77 = sphi 0, %s77
      %s79 = sphi 0, %s77
      %s80 = sphi 0, %s79
      %s94 = sphi 0, %s80
      %s98 = sphi 0, %s98
      %s100 = sphi 0, %s98
      %s101 = sphi 0, %s100
      %s115 = sphi 0, %s101
      %s119 = sphi 0, %s119
      %s121 = sphi 0, %s119
      %s122 = sphi 0, %s121
      %s136 = sphi 0, %s122
      %s140 = sphi 0, %s140
      %s142 = sphi 0, %s140
      %s143 = sphi 0, %s142
      %s157 = sphi 0, %s143
      %s161 = sphi 0, %s161
      %s163 = sphi 0, %s161
      %s164 = sphi 0, %s163
      %s178 = sphi 0, %s164
      %s184 = sphi 0, %s186
      %s187 = sphi 0, %s184
      %s188 = sphi 0, %s187
      %s204 = sphi 0, %s188
    $region4: #{bottleneck_forward.1} parent=1 // loop_header_branch
      %25 = sbr.rel (%p23) target = $region8
    $region5: #{bottleneck_forward.1} parent=1 // loop_body
      %s27 = ssub.s32 %s22, 1
      %s28 = ssub.s32 %s22, 2
      %s29 = sadd.s32 %s22, 1
      %s30 = ssub.s32 %s22, %s29
      %p31 = scmp.eq.s32.totalorder %s30, 0
      %s33 = sadd.s32 %s32, 1
      %s34 = scalar_select %p31, %s32, %s33
      %p37 = pneg %p31
      %p38 = scmp.eq.s32.totalorder %s22, 1
      %p39 = por %p37, %p38
      %p40 = scmp.ne.s32.totalorder %s32, %s35
      %p41 = scmp.eq.s32.totalorder %s22, 0
      %p42 = por %p40, %p41
      %p43 = scmp.ne.s32.totalorder %s32, %s35
      %p44 = scmp.eq.s32.totalorder %s27, 1
      %p45 = por %p43, %p44
      %p46 = scmp.ne.s32.totalorder %s35, %s36
      %p47 = scmp.eq.s32.totalorder %s27, 0
      %p48 = por %p46, %p47
      %p49 = scmp.ne.s32.totalorder %s35, %s36
      %p50 = scmp.eq.s32.totalorder %s28, 1
      %p51 = por %p49, %p50
      %p53 = scmp.ne.s32.totalorder %s36, %s52
      %p54 = scmp.eq.s32.totalorder %s28, 0
      %p55 = por %p53, %p54
      %s57 = sadd.s32 %s56, 1
      %p60 = scmp.eq.s32.totalorder %s22, 1
      %p61 = scmp.ne.s32.totalorder %s56, %s58
      %p62 = scmp.eq.s32.totalorder %s22, 0
      %p63 = por %p61, %p62
      %p64 = scmp.ne.s32.totalorder %s56, %s58
      %p65 = scmp.eq.s32.totalorder %s27, 1
      %p66 = por %p64, %p65
      %p67 = scmp.ne.s32.totalorder %s58, %s59
      %p68 = scmp.eq.s32.totalorder %s27, 0
      %p69 = por %p67, %p68
      %p70 = scmp.ne.s32.totalorder %s58, %s59
      %p71 = scmp.eq.s32.totalorder %s28, 1
      %p72 = por %p70, %p71
      %p74 = scmp.ne.s32.totalorder %s59, %s73
      %p75 = scmp.eq.s32.totalorder %s28, 0
      %p76 = por %p74, %p75
      %s78 = sadd.s32 %s77, 1
      %p81 = scmp.eq.s32.totalorder %s22, 1
      %p82 = scmp.ne.s32.totalorder %s77, %s79
      %p83 = scmp.eq.s32.totalorder %s22, 0
      %p84 = por %p82, %p83
      %p85 = scmp.ne.s32.totalorder %s77, %s79
      %p86 = scmp.eq.s32.totalorder %s27, 1
      %p87 = por %p85, %p86
      %p88 = scmp.ne.s32.totalorder %s79, %s80
      %p89 = scmp.eq.s32.totalorder %s27, 0
      %p90 = por %p88, %p89
      %p91 = scmp.ne.s32.totalorder %s79, %s80
      %p92 = scmp.eq.s32.totalorder %s28, 1
      %p93 = por %p91, %p92
      %p95 = scmp.ne.s32.totalorder %s80, %s94
      %p96 = scmp.eq.s32.totalorder %s28, 0
      %p97 = por %p95, %p96
      %s99 = sadd.s32 %s98, 1
      %p102 = scmp.eq.s32.totalorder %s22, 1
      %p103 = scmp.ne.s32.totalorder %s98, %s100
      %p104 = scmp.eq.s32.totalorder %s22, 0
      %p105 = por %p103, %p104
      %p106 = scmp.ne.s32.totalorder %s98, %s100
      %p107 = scmp.eq.s32.totalorder %s27, 1
      %p108 = por %p106, %p107
      %p109 = scmp.ne.s32.totalorder %s100, %s101
      %p110 = scmp.eq.s32.totalorder %s27, 0
      %p111 = por %p109, %p110
      %p112 = scmp.ne.s32.totalorder %s100, %s101
      %p113 = scmp.eq.s32.totalorder %s28, 1
      %p114 = por %p112, %p113
      %p116 = scmp.ne.s32.totalorder %s101, %s115
      %p117 = scmp.eq.s32.totalorder %s28, 0
      %p118 = por %p116, %p117
      %s120 = sadd.s32 %s119, 1
      %p123 = scmp.eq.s32.totalorder %s22, 1
      %p124 = scmp.ne.s32.totalorder %s119, %s121
      %p125 = scmp.eq.s32.totalorder %s22, 0
      %p126 = por %p124, %p125
      %p127 = scmp.ne.s32.totalorder %s119, %s121
      %p128 = scmp.eq.s32.totalorder %s27, 1
      %p129 = por %p127, %p128
      %p130 = scmp.ne.s32.totalorder %s121, %s122
      %p131 = scmp.eq.s32.totalorder %s27, 0
      %p132 = por %p130, %p131
      %p133 = scmp.ne.s32.totalorder %s121, %s122
      %p134 = scmp.eq.s32.totalorder %s28, 1
      %p135 = por %p133, %p134
      %p137 = scmp.ne.s32.totalorder %s122, %s136
      %p138 = scmp.eq.s32.totalorder %s28, 0
      %p139 = por %p137, %p138
      %s141 = sadd.s32 %s140, 1
      %p144 = scmp.eq.s32.totalorder %s22, 1
      %p145 = scmp.ne.s32.totalorder %s140, %s142
      %p146 = scmp.eq.s32.totalorder %s22, 0
      %p147 = por %p145, %p146
      %p148 = scmp.ne.s32.totalorder %s140, %s142
      %p149 = scmp.eq.s32.totalorder %s27, 1
      %p150 = por %p148, %p149
      %p151 = scmp.ne.s32.totalorder %s142, %s143
      %p152 = scmp.eq.s32.totalorder %s27, 0
      %p153 = por %p151, %p152
      %p154 = scmp.ne.s32.totalorder %s142, %s143
      %p155 = scmp.eq.s32.totalorder %s28, 1
      %p156 = por %p154, %p155
      %p158 = scmp.ne.s32.totalorder %s143, %s157
      %p159 = scmp.eq.s32.totalorder %s28, 0
      %p160 = por %p158, %p159
      %s162 = sadd.s32 %s161, 1
      %p165 = scmp.eq.s32.totalorder %s22, 1
      %p166 = scmp.ne.s32.totalorder %s161, %s163
      %p167 = scmp.eq.s32.totalorder %s22, 0
      %p168 = por %p166, %p167
      %p169 = scmp.ne.s32.totalorder %s161, %s163
      %p170 = scmp.eq.s32.totalorder %s27, 1
      %p171 = por %p169, %p170
      %p172 = scmp.ne.s32.totalorder %s163, %s164
      %p173 = scmp.eq.s32.totalorder %s27, 0
      %p174 = por %p172, %p173
      %p175 = scmp.ne.s32.totalorder %s163, %s164
      %p176 = scmp.eq.s32.totalorder %s28, 1
      %p177 = por %p175, %p176
      %p179 = scmp.ne.s32.totalorder %s164, %s178
      %p180 = scmp.eq.s32.totalorder %s28, 0
      %p181 = por %p179, %p180
      %s182 = ssub.s32 %s22, %s29
      %p183 = scmp.eq.s32.totalorder %s182, 0
      %s185 = sadd.s32 %s184, 1
      %s186 = scalar_select %p183, %s184, %s185
      %p189 = pneg %p183
      %p190 = scmp.eq.s32.totalorder %s22, 1
      %p191 = por %p189, %p190
      %p192 = scmp.ne.s32.totalorder %s184, %s187
      %p193 = scmp.eq.s32.totalorder %s22, 0
      %p194 = por %p192, %p193
      %p195 = scmp.ne.s32.totalorder %s184, %s187
      %p196 = scmp.eq.s32.totalorder %s27, 1
      %p197 = por %p195, %p196
      %p198 = scmp.ne.s32.totalorder %s187, %s188
      %p199 = scmp.eq.s32.totalorder %s27, 0
      %p200 = por %p198, %p199
      %p201 = scmp.ne.s32.totalorder %s187, %s188
      %p202 = scmp.eq.s32.totalorder %s28, 1
      %p203 = por %p201, %p202
      %p205 = scmp.ne.s32.totalorder %s188, %s204
      %p206 = scmp.eq.s32.totalorder %s28, 0
      %p207 = por %p205, %p206
      %p208 = scmp.le.s32.totalorder 1, %s22
      %p209 = scmp.lt.s32.totalorder %s22, 3
      %p210 = pnand %p208, %p209
      %p211 = pneg %p210
      // Predicated region
      $region9: #{bottleneck_forward.1} parent=5 // pred_check
        _
      $region10: #{bottleneck_forward.1} parent=5 // pred_check_branch
        %213 = sbr.rel (%p210) target = $region12
      $region11: #{bottleneck_forward.1} parent=5 // pred_region
        %s214 = ssub.s32 %s22, 1
        // Predicated region
        $region13: #{bottleneck_forward.1} parent=11 // pred_check
          %p215 = pneg %p69
        $region14: #{bottleneck_forward.1} parent=11 // pred_check_branch
          %217 = sbr.rel (%p215) target = $region16
        $region15: #{bottleneck_forward.1} parent=11 // pred_region
          %s219 = ssub.s32 256, 256
          %220 = vsyncadd [#allocation7], %s219
          %s221 = sshll.u32 [#allocation6], 4
          %s222 = int_to_ptr.vmem [resolvable:$true] %s221
          %227 = dma.hbm_to_vmem [thread:$0]  %s1, 256, %s222, [#allocation7], 128, 128, 8
        $region16: #{bottleneck_forward.1} parent=11 // pred_fallthru
          _
        // Predicated region
        $region17: #{bottleneck_forward.1} parent=11 // pred_check
          %p228 = pneg %p90
        $region18: #{bottleneck_forward.1} parent=11 // pred_check_branch
          %230 = sbr.rel (%p228) target = $region20
        $region19: #{bottleneck_forward.1} parent=11 // pred_region
          %s232 = ssub.s32 16, 16
          %233 = vsyncadd [#allocation7], %s232
          %s235 = sshll.u32 [#allocation8], 4
          %s236 = int_to_ptr.vmem [resolvable:$true] %s235
          %238 = dma.hbm_to_vmem [thread:$0]  %s2, 16, %s236, [#allocation7]
        $region20: #{bottleneck_forward.1} parent=11 // pred_fallthru
          _
        // Predicated region
        $region21: #{bottleneck_forward.1} parent=11 // pred_check
          %p239 = pneg %p111
        $region22: #{bottleneck_forward.1} parent=11 // pred_check_branch
          %241 = sbr.rel (%p239) target = $region24
        $region23: #{bottleneck_forward.1} parent=11 // pred_region
          %s243 = ssub.s32 768, 768
          %244 = vsyncadd [#allocation10], %s243
          %s245 = sshll.u32 [#allocation9], 4
          %s246 = int_to_ptr.vmem [resolvable:$true] %s245
          %251 = dma.hbm_to_vmem [thread:$0]  %s3, 768, %s246, [#allocation10], 128, 128, 8
        $region24: #{bottleneck_forward.1} parent=11 // pred_fallthru
          _
        // Predicated region
        $region25: #{bottleneck_forward.1} parent=11 // pred_check
          %p252 = pneg %p132
        $region26: #{bottleneck_forward.1} parent=11 // pred_check_branch
          %254 = sbr.rel (%p252) target = $region28
        $region27: #{bottleneck_forward.1} parent=11 // pred_region
          %s256 = ssub.s32 16, 16
          %257 = vsyncadd [#allocation10], %s256
          %s259 = sshll.u32 [#allocation11], 4
          %s260 = int_to_ptr.vmem [resolvable:$true] %s259
          %262 = dma.hbm_to_vmem [thread:$0]  %s4, 16, %s260, [#allocation10]
        $region28: #{bottleneck_forward.1} parent=11 // pred_fallthru
          _
        // Predicated region
        $region29: #{bottleneck_forward.1} parent=11 // pred_check
          %p263 = pneg %p153
        $region30: #{bottleneck_forward.1} parent=11 // pred_check_branch
          %265 = sbr.rel (%p263) target = $region32
        $region31: #{bottleneck_forward.1} parent=11 // pred_region
          %s267 = ssub.s32 64, 64
          %268 = vsyncadd [#allocation13], %s267
          %s270 = sshll.u32 [#allocation12], 4
          %s271 = int_to_ptr.vmem [resolvable:$true] %s270
          %273 = dma.hbm_to_vmem [thread:$0]  %s5, 64, %s271, [#allocation13]
        $region32: #{bottleneck_forward.1} parent=11 // pred_fallthru
          _
        // Predicated region
        $region33: #{bottleneck_forward.1} parent=11 // pred_check
          %p274 = pneg %p174
        $region34: #{bottleneck_forward.1} parent=11 // pred_check_branch
          %276 = sbr.rel (%p274) target = $region36
        $region35: #{bottleneck_forward.1} parent=11 // pred_region
          %s278 = ssub.s32 16, 16
          %279 = vsyncadd [#allocation13], %s278
          %s281 = sshll.u32 [#allocation14], 4
          %s282 = int_to_ptr.vmem [resolvable:$true] %s281
          %284 = dma.hbm_to_vmem [thread:$0]  %s6, 16, %s282, [#allocation13]
        $region36: #{bottleneck_forward.1} parent=11 // pred_fallthru
          _
      $region12: #{bottleneck_forward.1} parent=5 // pred_fallthru
        _
      %p285 = scmp.lt.s32.totalorder %s22, 2
      // Predicated region
      $region37: #{bottleneck_forward.1} parent=5 // pred_check
        %p286 = pneg %p285
      $region38: #{bottleneck_forward.1} parent=5 // pred_check_branch
        %288 = sbr.rel (%p286) target = $region40
      $region39: #{bottleneck_forward.1} parent=5 // pred_region
        // Predicated region
        $region41: #{bottleneck_forward.1} parent=39 // pred_check
          %p289 = pneg %p42
        $region42: #{bottleneck_forward.1} parent=39 // pred_check_branch
          %291 = sbr.rel (%p289) target = $region44
        $region43: #{bottleneck_forward.1} parent=39 // pred_region
          %s292 = sand.u32 %s32, 1
          %s293 = scalar_lea.sflag [#allocation4], %s292
          %s294 = sand.u32 %s32, 1
          %s295 = smul.addr %s294, 432
          %s296 = scalar_lea.vmem [#allocation3], %s295
          %s298 = ssub.s32 6912, 6912
          %299 = vsyncadd %s293, %s298
          %s300 = smul.addr %s22, 54
          %s301 = smul.addr %s300, 128
          %s302 = scalar_lea.hbm %s0, %s301
          %s303 = sshll.u32 %s296, 4
          %s304 = int_to_ptr.vmem [resolvable:$true] %s303
          %309 = dma.hbm_to_vmem [thread:$0]  %s302, 6912, %s304, %s293, 128, 128, 8
        $region44: #{bottleneck_forward.1} parent=39 // pred_fallthru
          _
      $region40: #{bottleneck_forward.1} parent=5 // pred_fallthru
        _
      %p310 = scmp.le.s32.totalorder 1, %s22
      %p311 = scmp.lt.s32.totalorder %s22, 3
      %p312 = pnand %p310, %p311
      %p313 = pneg %p312
      // Predicated region
      $region45: #{bottleneck_forward.1} parent=5 // pred_check
        _
      $region46: #{bottleneck_forward.1} parent=5 // pred_check_branch
        %315 = sbr.rel (%p312) target = $region48
      $region47: #{bottleneck_forward.1} parent=5 // pred_region
        %s316 = ssub.s32 %s22, 1
        %s317 = sand.u32 %s35, 1
        %s318 = scalar_lea.sflag [#allocation4], %s317
        %s319 = sand.u32 %s35, 1
        %s320 = smul.addr %s319, 432
        %s321 = scalar_lea.vmem [#allocation3], %s320
        // Predicated region
        $region49: #{bottleneck_forward.1} parent=47 // pred_check
          %p322 = pneg %p48
        $region50: #{bottleneck_forward.1} parent=47 // pred_check_branch
          %324 = sbr.rel (%p322) target = $region52
        $region51: #{bottleneck_forward.1} parent=47 // pred_region
          %325 = dma.done %s318, 6912
        $region52: #{bottleneck_forward.1} parent=47 // pred_fallthru
          _
        // Predicated region
        $region53: #{bottleneck_forward.1} parent=47 // pred_check
          %p326 = pneg %p69
        $region54: #{bottleneck_forward.1} parent=47 // pred_check_branch
          %328 = sbr.rel (%p326) target = $region56
        $region55: #{bottleneck_forward.1} parent=47 // pred_region
          %329 = dma.done [#allocation7], 256
        $region56: #{bottleneck_forward.1} parent=47 // pred_fallthru
          _
        // Predicated region
        $region57: #{bottleneck_forward.1} parent=47 // pred_check
          %p330 = pneg %p90
        $region58: #{bottleneck_forward.1} parent=47 // pred_check_branch
          %332 = sbr.rel (%p330) target = $region60
        $region59: #{bottleneck_forward.1} parent=47 // pred_region
          %333 = dma.done [#allocation7], 16
        $region60: #{bottleneck_forward.1} parent=47 // pred_fallthru
          _
        // Predicated region
        $region61: #{bottleneck_forward.1} parent=47 // pred_check
          %p334 = pneg %p111
        $region62: #{bottleneck_forward.1} parent=47 // pred_check_branch
          %336 = sbr.rel (%p334) target = $region64
        $region63: #{bottleneck_forward.1} parent=47 // pred_region
          %337 = dma.done [#allocation10], 768
        $region64: #{bottleneck_forward.1} parent=47 // pred_fallthru
          _
        // Predicated region
        $region65: #{bottleneck_forward.1} parent=47 // pred_check
          %p338 = pneg %p132
        $region66: #{bottleneck_forward.1} parent=47 // pred_check_branch
          %340 = sbr.rel (%p338) target = $region68
        $region67: #{bottleneck_forward.1} parent=47 // pred_region
          %341 = dma.done [#allocation10], 16
        $region68: #{bottleneck_forward.1} parent=47 // pred_fallthru
          _
        // Predicated region
        $region69: #{bottleneck_forward.1} parent=47 // pred_check
          %p342 = pneg %p153
        $region70: #{bottleneck_forward.1} parent=47 // pred_check_branch
          %344 = sbr.rel (%p342) target = $region72
        $region71: #{bottleneck_forward.1} parent=47 // pred_region
          %345 = dma.done [#allocation13], 64
        $region72: #{bottleneck_forward.1} parent=47 // pred_fallthru
          _
        // Predicated region
        $region73: #{bottleneck_forward.1} parent=47 // pred_check
          %p346 = pneg %p174
        $region74: #{bottleneck_forward.1} parent=47 // pred_check_branch
          %348 = sbr.rel (%p346) target = $region76
        $region75: #{bottleneck_forward.1} parent=47 // pred_region
          %349 = dma.done [#allocation13], 16
        $region76: #{bottleneck_forward.1} parent=47 // pred_fallthru
          _
        %s350 = sand.u32 %s35, 1
        %s351 = scalar_lea.sflag [#allocation4], %s350
        %s352 = sand.u32 %s35, 1
        %s353 = smul.addr %s352, 432
        %s354 = scalar_lea.vmem [#allocation3], %s353
        %p355 = pneg %p48
        %p356 = pneg %p45
        %p357 = pneg %p69
        %p358 = pneg %p66
        %p359 = pneg %p90
        %p360 = pneg %p87
        %p361 = pneg %p111
        %p362 = pneg %p108
        %p363 = pneg %p132
        %p364 = pneg %p129
        %p365 = pneg %p153
        %p366 = pneg %p150
        %p367 = pneg %p174
        %p368 = pneg %p171
        %p369 = pneg %p200
        %p370 = pneg %p197
        %s371 = sand.u32 %s187, 1
        %s372 = scalar_lea.sflag [#allocation5], %s371
        %s373 = sand.u32 %s187, 1
        %s374 = smul.addr %s373, 384
        %s375 = scalar_lea.vmem [#allocation15], %s374
        %v376 = vld [vmem:[%s321 + $0x18] sm:$0xff]
        %v377 = vld [vmem:[%s321 + $0x20] sm:$0xff]
        %v378 = vld [vmem:[%s321 + $0x28] sm:$0xff]
        %v379 = vld [vmem:[%s321 + $0x30] sm:$0xff]
        %v380 = vld [vmem:[%s321 + $0x38] sm:$0xff]
        %v381 = vld [vmem:[%s321 + $0x40] sm:$0xff]
        %v382 = vld [vmem:[%s321 + $0x48] sm:$0xff]
        %v383 = vld [vmem:[%s321 + $0x50] sm:$0xff]
        %v384 = vld [vmem:[%s321 + $0x58] sm:$0xff]
        %v385 = vld [vmem:[%s321 + $0x60] sm:$0xff]
        %v386 = vld [vmem:[%s321 + $0x68] sm:$0xff]
        %v387 = vld [vmem:[%s321 + $0x70] sm:$0xff]
        %v388 = vld [vmem:[%s321 + $0x78] sm:$0xff]
        %v389 = vld [vmem:[%s321 + $0x80] sm:$0xff]
        %v390 = vld [vmem:[%s321 + $0x88] sm:$0xff]
        %v391 = vld [vmem:[%s321 + $0x90] sm:$0xff]
        %v392 = vld [vmem:[%s321 + $0x98] sm:$0xff]
        %v393 = vld [vmem:[%s321 + $0xa0] sm:$0xff]
        %v394 = vld [vmem:[%s321 + $0xa8] sm:$0xff]
        %v395 = vld [vmem:[%s321 + $0xb0] sm:$0xff]
        %v396 = vld [vmem:[%s321 + $0xb8] sm:$0xff]
        %v397 = vld [vmem:[%s321 + $0xc0] sm:$0xff]
        %v398 = vld [vmem:[%s321 + $0xc8] sm:$0xff]
        %v399 = vld [vmem:[%s321 + $0xd0] sm:$0xff]
        %v400 = vld [vmem:[%s321 + $0xd8] sm:$0xff]
        %v401 = vld [vmem:[%s321 + $0xe0] sm:$0xff]
        %v402 = vld [vmem:[%s321 + $0xe8] sm:$0xff]
        %v403 = vld [vmem:[%s321 + $0xf0] sm:$0xff]
        %v404 = vld [vmem:[%s321 + $0xf8] sm:$0xff]
        %v405 = vld [vmem:[%s321 + $0x100] sm:$0xff]
        %v406 = vld [vmem:[%s321 + $0x108] sm:$0xff]
        %v407 = vld [vmem:[%s321 + $0x110] sm:$0xff]
        %v408 = vld [vmem:[%s321 + $0x118] sm:$0xff]
        %v409 = vld [vmem:[%s321 + $0x120] sm:$0xff]
        %v410 = vld [vmem:[%s321 + $0x128] sm:$0xff]
        %v411 = vld [vmem:[%s321 + $0x130] sm:$0xff]
        %v412 = vld [vmem:[%s321 + $0x138] sm:$0xff]
        %v413 = vld [vmem:[%s321 + $0x140] sm:$0xff]
        %v414 = vld [vmem:[%s321 + $0x148] sm:$0xff]
        %v415 = vld [vmem:[%s321 + $0x150] sm:$0xff]
        %v416 = vld [vmem:[%s321 + $0x158] sm:$0xff]
        %v417 = vld [vmem:[%s321 + $0x160] sm:$0xff]
        %v418 = vld [vmem:[%s321 + $0x168] sm:$0xff]
        %v419 = vld [vmem:[%s321 + $0x170] sm:$0xff]
        %v420 = vld [vmem:[%s321 + $0x178] sm:$0xff]
        %v421 = vld [vmem:[%s321 + $0x180] sm:$0xff]
        %v422 = vld [vmem:[%s321 + $0x188] sm:$0xff]
        %v423 = vld [vmem:[%s321 + $0x190] sm:$0xff]
        %v424 = vld [vmem:[#allocation6] sm:$0xff]
        %v425 = vld [vmem:[#allocation6 + $0x8] sm:$0xff]
        %v426 = vlaneseq
        %v427 = vshrl.u32 %v426, 7
        %v428 = vadd.s32 %v427, 8
        %v429 = vadd.s32 %v427, 16
        %v430 = vadd.s32 %v427, 24
        %v431 = vadd.s32 %v427, 32
        %v432 = vadd.s32 %v427, 40
        %v433 = vadd.s32 %v427, 48
        %v434 = vadd.s32 %v427, 56
        %v435 = vadd.s32 %v427, 64
        %v436 = vadd.s32 %v427, 72
        %v437 = vadd.s32 %v427, 80
        %v438 = vadd.s32 %v427, 88
        %v439 = vadd.s32 %v427, 96
        %v440 = vadd.s32 %v427, 104
        %v441 = vadd.s32 %v427, 112
        %v442 = vadd.s32 %v427, 120
        %v443 = vadd.s32 %v427, 128
        %v444 = vadd.s32 %v427, 136
        %v445 = vadd.s32 %v427, 144
        %v446 = vadd.s32 %v427, 152
        %v447 = vadd.s32 %v427, 160
        %v448 = vadd.s32 %v427, 168
        %v449 = vadd.s32 %v427, 176
        %v450 = vadd.s32 %v427, 184
        %v451 = vadd.s32 %v427, 192
        %v452 = vadd.s32 %v427, 200
        %v453 = vadd.s32 %v427, 208
        %v454 = vadd.s32 %v427, 216
        %v455 = vadd.s32 %v427, 224
        %v456 = vadd.s32 %v427, 232
        %v457 = vadd.s32 %v427, 240
        %v458 = vadd.s32 %v427, 248
        %v459 = vadd.s32 %v427, 256
        %v460 = vadd.s32 %v427, 264
        %v461 = vadd.s32 %v427, 272
        %v462 = vadd.s32 %v427, 280
        %v463 = vadd.s32 %v427, 288
        %v464 = vadd.s32 %v427, 296
        %v465 = vadd.s32 %v427, 304
        %v466 = vadd.s32 %v427, 312
        %v467 = vadd.s32 %v427, 320
        %v468 = vadd.s32 %v427, 328
        %v469 = vadd.s32 %v427, 336
        %v470 = vadd.s32 %v427, 344
        %v471 = vadd.s32 %v427, 352
        %v472 = vadd.s32 %v427, 360
        %v473 = vadd.s32 %v427, 368
        %v474 = vadd.s32 %v427, 376
        %vm475 = vcmp.lt.s32.totalorder %v427, 0
        %v476 = vsub.s32 0, %v427
        %v477 = vsel %vm475, %v476, %v427
        %v478 = vmul.u32.u64.compose %v477, 2863311531
        %v479 = vextract.low.u32 %v478
        %v480 = vextract.high.u32 %v478
        %v481 = vshrl.u32 %v480, 4
        %v482 = vmul.u32 %v481, 24
        %v483 = vsub.s32 %v477, %v482
        %v484 = vsub.s32 0, %v483
        %v485 = vsel %vm475, %v484, %v483
        %vm486 = vcmp.lt.s32.totalorder %v428, 0
        %v487 = vsub.s32 0, %v428
        %v488 = vsel %vm486, %v487, %v428
        %v489 = vmul.u32.u64.compose %v488, 2863311531
        %v490 = vextract.low.u32 %v489
        %v491 = vextract.high.u32 %v489
        %v492 = vshrl.u32 %v491, 4
        %v493 = vmul.u32 %v492, 24
        %v494 = vsub.s32 %v488, %v493
        %v495 = vsub.s32 0, %v494
        %v496 = vsel %vm486, %v495, %v494
        %vm497 = vcmp.lt.s32.totalorder %v429, 0
        %v498 = vsub.s32 0, %v429
        %v499 = vsel %vm497, %v498, %v429
        %v500 = vmul.u32.u64.compose %v499, 2863311531
        %v501 = vextract.low.u32 %v500
        %v502 = vextract.high.u32 %v500
        %v503 = vshrl.u32 %v502, 4
        %v504 = vmul.u32 %v503, 24
        %v505 = vsub.s32 %v499, %v504
        %v506 = vsub.s32 0, %v505
        %v507 = vsel %vm497, %v506, %v505
        %vm508 = vcmp.lt.s32.totalorder %v430, 0
        %v509 = vsub.s32 0, %v430
        %v510 = vsel %vm508, %v509, %v430
        %v511 = vmul.u32.u64.compose %v510, 2863311531
        %v512 = vextract.low.u32 %v511
        %v513 = vextract.high.u32 %v511
        %v514 = vshrl.u32 %v513, 4
        %v515 = vmul.u32 %v514, 24
        %v516 = vsub.s32 %v510, %v515
        %v517 = vsub.s32 0, %v516
        %v518 = vsel %vm508, %v517, %v516
        %vm519 = vcmp.lt.s32.totalorder %v431, 0
        %v520 = vsub.s32 0, %v431
        %v521 = vsel %vm519, %v520, %v431
        %v522 = vmul.u32.u64.compose %v521, 2863311531
        %v523 = vextract.low.u32 %v522
        %v524 = vextract.high.u32 %v522
        %v525 = vshrl.u32 %v524, 4
        %v526 = vmul.u32 %v525, 24
        %v527 = vsub.s32 %v521, %v526
        %v528 = vsub.s32 0, %v527
        %v529 = vsel %vm519, %v528, %v527
        %vm530 = vcmp.lt.s32.totalorder %v432, 0
        %v531 = vsub.s32 0, %v432
        %v532 = vsel %vm530, %v531, %v432
        %v533 = vmul.u32.u64.compose %v532, 2863311531
        %v534 = vextract.low.u32 %v533
        %v535 = vextract.high.u32 %v533
        %v536 = vshrl.u32 %v535, 4
        %v537 = vmul.u32 %v536, 24
        %v538 = vsub.s32 %v532, %v537
        %v539 = vsub.s32 0, %v538
        %v540 = vsel %vm530, %v539, %v538
        %vm541 = vcmp.lt.s32.totalorder %v433, 0
        %v542 = vsub.s32 0, %v433
        %v543 = vsel %vm541, %v542, %v433
        %v544 = vmul.u32.u64.compose %v543, 2863311531
        %v545 = vextract.low.u32 %v544
        %v546 = vextract.high.u32 %v544
        %v547 = vshrl.u32 %v546, 4
        %v548 = vmul.u32 %v547, 24
        %v549 = vsub.s32 %v543, %v548
        %v550 = vsub.s32 0, %v549
        %v551 = vsel %vm541, %v550, %v549
        %vm552 = vcmp.lt.s32.totalorder %v434, 0
        %v553 = vsub.s32 0, %v434
        %v554 = vsel %vm552, %v553, %v434
        %v555 = vmul.u32.u64.compose %v554, 2863311531
        %v556 = vextract.low.u32 %v555
        %v557 = vextract.high.u32 %v555
        %v558 = vshrl.u32 %v557, 4
        %v559 = vmul.u32 %v558, 24
        %v560 = vsub.s32 %v554, %v559
        %v561 = vsub.s32 0, %v560
        %v562 = vsel %vm552, %v561, %v560
        %vm563 = vcmp.lt.s32.totalorder %v435, 0
        %v564 = vsub.s32 0, %v435
        %v565 = vsel %vm563, %v564, %v435
        %v566 = vmul.u32.u64.compose %v565, 2863311531
        %v567 = vextract.low.u32 %v566
        %v568 = vextract.high.u32 %v566
        %v569 = vshrl.u32 %v568, 4
        %v570 = vmul.u32 %v569, 24
        %v571 = vsub.s32 %v565, %v570
        %v572 = vsub.s32 0, %v571
        %v573 = vsel %vm563, %v572, %v571
        %vm574 = vcmp.lt.s32.totalorder %v436, 0
        %v575 = vsub.s32 0, %v436
        %v576 = vsel %vm574, %v575, %v436
        %v577 = vmul.u32.u64.compose %v576, 2863311531
        %v578 = vextract.low.u32 %v577
        %v579 = vextract.high.u32 %v577
        %v580 = vshrl.u32 %v579, 4
        %v581 = vmul.u32 %v580, 24
        %v582 = vsub.s32 %v576, %v581
        %v583 = vsub.s32 0, %v582
        %v584 = vsel %vm574, %v583, %v582
        %vm585 = vcmp.lt.s32.totalorder %v437, 0
        %v586 = vsub.s32 0, %v437
        %v587 = vsel %vm585, %v586, %v437
        %v588 = vmul.u32.u64.compose %v587, 2863311531
        %v589 = vextract.low.u32 %v588
        %v590 = vextract.high.u32 %v588
        %v591 = vshrl.u32 %v590, 4
        %v592 = vmul.u32 %v591, 24
        %v593 = vsub.s32 %v587, %v592
        %v594 = vsub.s32 0, %v593
        %v595 = vsel %vm585, %v594, %v593
        %vm596 = vcmp.lt.s32.totalorder %v438, 0
        %v597 = vsub.s32 0, %v438
        %v598 = vsel %vm596, %v597, %v438
        %v599 = vmul.u32.u64.compose %v598, 2863311531
        %v600 = vextract.low.u32 %v599
        %v601 = vextract.high.u32 %v599
        %v602 = vshrl.u32 %v601, 4
        %v603 = vmul.u32 %v602, 24
        %v604 = vsub.s32 %v598, %v603
        %v605 = vsub.s32 0, %v604
        %v606 = vsel %vm596, %v605, %v604
        %vm607 = vcmp.lt.s32.totalorder %v439, 0
        %v608 = vsub.s32 0, %v439
        %v609 = vsel %vm607, %v608, %v439
        %v610 = vmul.u32.u64.compose %v609, 2863311531
        %v611 = vextract.low.u32 %v610
        %v612 = vextract.high.u32 %v610
        %v613 = vshrl.u32 %v612, 4
        %v614 = vmul.u32 %v613, 24
        %v615 = vsub.s32 %v609, %v614
        %v616 = vsub.s32 0, %v615
        %v617 = vsel %vm607, %v616, %v615
        %vm618 = vcmp.lt.s32.totalorder %v440, 0
        %v619 = vsub.s32 0, %v440
        %v620 = vsel %vm618, %v619, %v440
        %v621 = vmul.u32.u64.compose %v620, 2863311531
        %v622 = vextract.low.u32 %v621
        %v623 = vextract.high.u32 %v621
        %v624 = vshrl.u32 %v623, 4
        %v625 = vmul.u32 %v624, 24
        %v626 = vsub.s32 %v620, %v625
        %v627 = vsub.s32 0, %v626
        %v628 = vsel %vm618, %v627, %v626
        %vm629 = vcmp.lt.s32.totalorder %v441, 0
        %v630 = vsub.s32 0, %v441
        %v631 = vsel %vm629, %v630, %v441
        %v632 = vmul.u32.u64.compose %v631, 2863311531
        %v633 = vextract.low.u32 %v632
        %v634 = vextract.high.u32 %v632
        %v635 = vshrl.u32 %v634, 4
        %v636 = vmul.u32 %v635, 24
        %v637 = vsub.s32 %v631, %v636
        %v638 = vsub.s32 0, %v637
        %v639 = vsel %vm629, %v638, %v637
        %vm640 = vcmp.lt.s32.totalorder %v442, 0
        %v641 = vsub.s32 0, %v442
        %v642 = vsel %vm640, %v641, %v442
        %v643 = vmul.u32.u64.compose %v642, 2863311531
        %v644 = vextract.low.u32 %v643
        %v645 = vextract.high.u32 %v643
        %v646 = vshrl.u32 %v645, 4
        %v647 = vmul.u32 %v646, 24
        %v648 = vsub.s32 %v642, %v647
        %v649 = vsub.s32 0, %v648
        %v650 = vsel %vm640, %v649, %v648
        %vm651 = vcmp.lt.s32.totalorder %v443, 0
        %v652 = vsub.s32 0, %v443
        %v653 = vsel %vm651, %v652, %v443
        %v654 = vmul.u32.u64.compose %v653, 2863311531
        %v655 = vextract.low.u32 %v654
        %v656 = vextract.high.u32 %v654
        %v657 = vshrl.u32 %v656, 4
        %v658 = vmul.u32 %v657, 24
        %v659 = vsub.s32 %v653, %v658
        %v660 = vsub.s32 0, %v659
        %v661 = vsel %vm651, %v660, %v659
        %vm662 = vcmp.lt.s32.totalorder %v444, 0
        %v663 = vsub.s32 0, %v444
        %v664 = vsel %vm662, %v663, %v444
        %v665 = vmul.u32.u64.compose %v664, 2863311531
        %v666 = vextract.low.u32 %v665
        %v667 = vextract.high.u32 %v665
        %v668 = vshrl.u32 %v667, 4
        %v669 = vmul.u32 %v668, 24
        %v670 = vsub.s32 %v664, %v669
        %v671 = vsub.s32 0, %v670
        %v672 = vsel %vm662, %v671, %v670
        %vm673 = vcmp.lt.s32.totalorder %v445, 0
        %v674 = vsub.s32 0, %v445
        %v675 = vsel %vm673, %v674, %v445
        %v676 = vmul.u32.u64.compose %v675, 2863311531
        %v677 = vextract.low.u32 %v676
        %v678 = vextract.high.u32 %v676
        %v679 = vshrl.u32 %v678, 4
        %v680 = vmul.u32 %v679, 24
        %v681 = vsub.s32 %v675, %v680
        %v682 = vsub.s32 0, %v681
        %v683 = vsel %vm673, %v682, %v681
        %vm684 = vcmp.lt.s32.totalorder %v446, 0
        %v685 = vsub.s32 0, %v446
        %v686 = vsel %vm684, %v685, %v446
        %v687 = vmul.u32.u64.compose %v686, 2863311531
        %v688 = vextract.low.u32 %v687
        %v689 = vextract.high.u32 %v687
        %v690 = vshrl.u32 %v689, 4
        %v691 = vmul.u32 %v690, 24
        %v692 = vsub.s32 %v686, %v691
        %v693 = vsub.s32 0, %v692
        %v694 = vsel %vm684, %v693, %v692
        %vm695 = vcmp.lt.s32.totalorder %v447, 0
        %v696 = vsub.s32 0, %v447
        %v697 = vsel %vm695, %v696, %v447
        %v698 = vmul.u32.u64.compose %v697, 2863311531
        %v699 = vextract.low.u32 %v698
        %v700 = vextract.high.u32 %v698
        %v701 = vshrl.u32 %v700, 4
        %v702 = vmul.u32 %v701, 24
        %v703 = vsub.s32 %v697, %v702
        %v704 = vsub.s32 0, %v703
        %v705 = vsel %vm695, %v704, %v703
        %vm706 = vcmp.lt.s32.totalorder %v448, 0
        %v707 = vsub.s32 0, %v448
        %v708 = vsel %vm706, %v707, %v448
        %v709 = vmul.u32.u64.compose %v708, 2863311531
        %v710 = vextract.low.u32 %v709
        %v711 = vextract.high.u32 %v709
        %v712 = vshrl.u32 %v711, 4
        %v713 = vmul.u32 %v712, 24
        %v714 = vsub.s32 %v708, %v713
        %v715 = vsub.s32 0, %v714
        %v716 = vsel %vm706, %v715, %v714
        %vm717 = vcmp.lt.s32.totalorder %v449, 0
        %v718 = vsub.s32 0, %v449
        %v719 = vsel %vm717, %v718, %v449
        %v720 = vmul.u32.u64.compose %v719, 2863311531
        %v721 = vextract.low.u32 %v720
        %v722 = vextract.high.u32 %v720
        %v723 = vshrl.u32 %v722, 4
        %v724 = vmul.u32 %v723, 24
        %v725 = vsub.s32 %v719, %v724
        %v726 = vsub.s32 0, %v725
        %v727 = vsel %vm717, %v726, %v725
        %vm728 = vcmp.lt.s32.totalorder %v450, 0
        %v729 = vsub.s32 0, %v450
        %v730 = vsel %vm728, %v729, %v450
        %v731 = vmul.u32.u64.compose %v730, 2863311531
        %v732 = vextract.low.u32 %v731
        %v733 = vextract.high.u32 %v731
        %v734 = vshrl.u32 %v733, 4
        %v735 = vmul.u32 %v734, 24
        %v736 = vsub.s32 %v730, %v735
        %v737 = vsub.s32 0, %v736
        %v738 = vsel %vm728, %v737, %v736
        %vm739 = vcmp.lt.s32.totalorder %v451, 0
        %v740 = vsub.s32 0, %v451
        %v741 = vsel %vm739, %v740, %v451
        %v742 = vmul.u32.u64.compose %v741, 2863311531
        %v743 = vextract.low.u32 %v742
        %v744 = vextract.high.u32 %v742
        %v745 = vshrl.u32 %v744, 4
        %v746 = vmul.u32 %v745, 24
        %v747 = vsub.s32 %v741, %v746
        %v748 = vsub.s32 0, %v747
        %v749 = vsel %vm739, %v748, %v747
        %vm750 = vcmp.lt.s32.totalorder %v452, 0
        %v751 = vsub.s32 0, %v452
        %v752 = vsel %vm750, %v751, %v452
        %v753 = vmul.u32.u64.compose %v752, 2863311531
        %v754 = vextract.low.u32 %v753
        %v755 = vextract.high.u32 %v753
        %v756 = vshrl.u32 %v755, 4
        %v757 = vmul.u32 %v756, 24
        %v758 = vsub.s32 %v752, %v757
        %v759 = vsub.s32 0, %v758
        %v760 = vsel %vm750, %v759, %v758
        %vm761 = vcmp.lt.s32.totalorder %v453, 0
        %v762 = vsub.s32 0, %v453
        %v763 = vsel %vm761, %v762, %v453
        %v764 = vmul.u32.u64.compose %v763, 2863311531
        %v765 = vextract.low.u32 %v764
        %v766 = vextract.high.u32 %v764
        %v767 = vshrl.u32 %v766, 4
        %v768 = vmul.u32 %v767, 24
        %v769 = vsub.s32 %v763, %v768
        %v770 = vsub.s32 0, %v769
        %v771 = vsel %vm761, %v770, %v769
        %vm772 = vcmp.lt.s32.totalorder %v454, 0
        %v773 = vsub.s32 0, %v454
        %v774 = vsel %vm772, %v773, %v454
        %v775 = vmul.u32.u64.compose %v774, 2863311531
        %v776 = vextract.low.u32 %v775
        %v777 = vextract.high.u32 %v775
        %v778 = vshrl.u32 %v777, 4
        %v779 = vmul.u32 %v778, 24
        %v780 = vsub.s32 %v774, %v779
        %v781 = vsub.s32 0, %v780
        %v782 = vsel %vm772, %v781, %v780
        %vm783 = vcmp.lt.s32.totalorder %v455, 0
        %v784 = vsub.s32 0, %v455
        %v785 = vsel %vm783, %v784, %v455
        %v786 = vmul.u32.u64.compose %v785, 2863311531
        %v787 = vextract.low.u32 %v786
        %v788 = vextract.high.u32 %v786
        %v789 = vshrl.u32 %v788, 4
        %v790 = vmul.u32 %v789, 24
        %v791 = vsub.s32 %v785, %v790
        %v792 = vsub.s32 0, %v791
        %v793 = vsel %vm783, %v792, %v791
        %vm794 = vcmp.lt.s32.totalorder %v456, 0
        %v795 = vsub.s32 0, %v456
        %v796 = vsel %vm794, %v795, %v456
        %v797 = vmul.u32.u64.compose %v796, 2863311531
        %v798 = vextract.low.u32 %v797
        %v799 = vextract.high.u32 %v797
        %v800 = vshrl.u32 %v799, 4
        %v801 = vmul.u32 %v800, 24
        %v802 = vsub.s32 %v796, %v801
        %v803 = vsub.s32 0, %v802
        %v804 = vsel %vm794, %v803, %v802
        %vm805 = vcmp.lt.s32.totalorder %v457, 0
        %v806 = vsub.s32 0, %v457
        %v807 = vsel %vm805, %v806, %v457
        %v808 = vmul.u32.u64.compose %v807, 2863311531
        %v809 = vextract.low.u32 %v808
        %v810 = vextract.high.u32 %v808
        %v811 = vshrl.u32 %v810, 4
        %v812 = vmul.u32 %v811, 24
        %v813 = vsub.s32 %v807, %v812
        %v814 = vsub.s32 0, %v813
        %v815 = vsel %vm805, %v814, %v813
        %vm816 = vcmp.lt.s32.totalorder %v458, 0
        %v817 = vsub.s32 0, %v458
        %v818 = vsel %vm816, %v817, %v458
        %v819 = vmul.u32.u64.compose %v818, 2863311531
        %v820 = vextract.low.u32 %v819
        %v821 = vextract.high.u32 %v819
        %v822 = vshrl.u32 %v821, 4
        %v823 = vmul.u32 %v822, 24
        %v824 = vsub.s32 %v818, %v823
        %v825 = vsub.s32 0, %v824
        %v826 = vsel %vm816, %v825, %v824
        %vm827 = vcmp.lt.s32.totalorder %v459, 0
        %v828 = vsub.s32 0, %v459
        %v829 = vsel %vm827, %v828, %v459
        %v830 = vmul.u32.u64.compose %v829, 2863311531
        %v831 = vextract.low.u32 %v830
        %v832 = vextract.high.u32 %v830
        %v833 = vshrl.u32 %v832, 4
        %v834 = vmul.u32 %v833, 24
        %v835 = vsub.s32 %v829, %v834
        %v836 = vsub.s32 0, %v835
        %v837 = vsel %vm827, %v836, %v835
        %vm838 = vcmp.lt.s32.totalorder %v460, 0
        %v839 = vsub.s32 0, %v460
        %v840 = vsel %vm838, %v839, %v460
        %v841 = vmul.u32.u64.compose %v840, 2863311531
        %v842 = vextract.low.u32 %v841
        %v843 = vextract.high.u32 %v841
        %v844 = vshrl.u32 %v843, 4
        %v845 = vmul.u32 %v844, 24
        %v846 = vsub.s32 %v840, %v845
        %v847 = vsub.s32 0, %v846
        %v848 = vsel %vm838, %v847, %v846
        %vm849 = vcmp.lt.s32.totalorder %v461, 0
        %v850 = vsub.s32 0, %v461
        %v851 = vsel %vm849, %v850, %v461
        %v852 = vmul.u32.u64.compose %v851, 2863311531
        %v853 = vextract.low.u32 %v852
        %v854 = vextract.high.u32 %v852
        %v855 = vshrl.u32 %v854, 4
        %v856 = vmul.u32 %v855, 24
        %v857 = vsub.s32 %v851, %v856
        %v858 = vsub.s32 0, %v857
        %v859 = vsel %vm849, %v858, %v857
        %vm860 = vcmp.lt.s32.totalorder %v462, 0
        %v861 = vsub.s32 0, %v462
        %v862 = vsel %vm860, %v861, %v462
        %v863 = vmul.u32.u64.compose %v862, 2863311531
        %v864 = vextract.low.u32 %v863
        %v865 = vextract.high.u32 %v863
        %v866 = vshrl.u32 %v865, 4
        %v867 = vmul.u32 %v866, 24
        %v868 = vsub.s32 %v862, %v867
        %v869 = vsub.s32 0, %v868
        %v870 = vsel %vm860, %v869, %v868
        %vm871 = vcmp.lt.s32.totalorder %v463, 0
        %v872 = vsub.s32 0, %v463
        %v873 = vsel %vm871, %v872, %v463
        %v874 = vmul.u32.u64.compose %v873, 2863311531
        %v875 = vextract.low.u32 %v874
        %v876 = vextract.high.u32 %v874
        %v877 = vshrl.u32 %v876, 4
        %v878 = vmul.u32 %v877, 24
        %v879 = vsub.s32 %v873, %v878
        %v880 = vsub.s32 0, %v879
        %v881 = vsel %vm871, %v880, %v879
        %vm882 = vcmp.lt.s32.totalorder %v464, 0
        %v883 = vsub.s32 0, %v464
        %v884 = vsel %vm882, %v883, %v464
        %v885 = vmul.u32.u64.compose %v884, 2863311531
        %v886 = vextract.low.u32 %v885
        %v887 = vextract.high.u32 %v885
        %v888 = vshrl.u32 %v887, 4
        %v889 = vmul.u32 %v888, 24
        %v890 = vsub.s32 %v884, %v889
        %v891 = vsub.s32 0, %v890
        %v892 = vsel %vm882, %v891, %v890
        %vm893 = vcmp.lt.s32.totalorder %v465, 0
        %v894 = vsub.s32 0, %v465
        %v895 = vsel %vm893, %v894, %v465
        %v896 = vmul.u32.u64.compose %v895, 2863311531
        %v897 = vextract.low.u32 %v896
        %v898 = vextract.high.u32 %v896
        %v899 = vshrl.u32 %v898, 4
        %v900 = vmul.u32 %v899, 24
        %v901 = vsub.s32 %v895, %v900
        %v902 = vsub.s32 0, %v901
        %v903 = vsel %vm893, %v902, %v901
        %vm904 = vcmp.lt.s32.totalorder %v466, 0
        %v905 = vsub.s32 0, %v466
        %v906 = vsel %vm904, %v905, %v466
        %v907 = vmul.u32.u64.compose %v906, 2863311531
        %v908 = vextract.low.u32 %v907
        %v909 = vextract.high.u32 %v907
        %v910 = vshrl.u32 %v909, 4
        %v911 = vmul.u32 %v910, 24
        %v912 = vsub.s32 %v906, %v911
        %v913 = vsub.s32 0, %v912
        %v914 = vsel %vm904, %v913, %v912
        %vm915 = vcmp.lt.s32.totalorder %v467, 0
        %v916 = vsub.s32 0, %v467
        %v917 = vsel %vm915, %v916, %v467
        %v918 = vmul.u32.u64.compose %v917, 2863311531
        %v919 = vextract.low.u32 %v918
        %v920 = vextract.high.u32 %v918
        %v921 = vshrl.u32 %v920, 4
        %v922 = vmul.u32 %v921, 24
        %v923 = vsub.s32 %v917, %v922
        %v924 = vsub.s32 0, %v923
        %v925 = vsel %vm915, %v924, %v923
        %vm926 = vcmp.lt.s32.totalorder %v468, 0
        %v927 = vsub.s32 0, %v468
        %v928 = vsel %vm926, %v927, %v468
        %v929 = vmul.u32.u64.compose %v928, 2863311531
        %v930 = vextract.low.u32 %v929
        %v931 = vextract.high.u32 %v929
        %v932 = vshrl.u32 %v931, 4
        %v933 = vmul.u32 %v932, 24
        %v934 = vsub.s32 %v928, %v933
        %v935 = vsub.s32 0, %v934
        %v936 = vsel %vm926, %v935, %v934
        %vm937 = vcmp.lt.s32.totalorder %v469, 0
        %v938 = vsub.s32 0, %v469
        %v939 = vsel %vm937, %v938, %v469
        %v940 = vmul.u32.u64.compose %v939, 2863311531
        %v941 = vextract.low.u32 %v940
        %v942 = vextract.high.u32 %v940
        %v943 = vshrl.u32 %v942, 4
        %v944 = vmul.u32 %v943, 24
        %v945 = vsub.s32 %v939, %v944
        %v946 = vsub.s32 0, %v945
        %v947 = vsel %vm937, %v946, %v945
        %vm948 = vcmp.lt.s32.totalorder %v470, 0
        %v949 = vsub.s32 0, %v470
        %v950 = vsel %vm948, %v949, %v470
        %v951 = vmul.u32.u64.compose %v950, 2863311531
        %v952 = vextract.low.u32 %v951
        %v953 = vextract.high.u32 %v951
        %v954 = vshrl.u32 %v953, 4
        %v955 = vmul.u32 %v954, 24
        %v956 = vsub.s32 %v950, %v955
        %v957 = vsub.s32 0, %v956
        %v958 = vsel %vm948, %v957, %v956
        %vm959 = vcmp.lt.s32.totalorder %v471, 0
        %v960 = vsub.s32 0, %v471
        %v961 = vsel %vm959, %v960, %v471
        %v962 = vmul.u32.u64.compose %v961, 2863311531
        %v963 = vextract.low.u32 %v962
        %v964 = vextract.high.u32 %v962
        %v965 = vshrl.u32 %v964, 4
        %v966 = vmul.u32 %v965, 24
        %v967 = vsub.s32 %v961, %v966
        %v968 = vsub.s32 0, %v967
        %v969 = vsel %vm959, %v968, %v967
        %vm970 = vcmp.lt.s32.totalorder %v472, 0
        %v971 = vsub.s32 0, %v472
        %v972 = vsel %vm970, %v971, %v472
        %v973 = vmul.u32.u64.compose %v972, 2863311531
        %v974 = vextract.low.u32 %v973
        %v975 = vextract.high.u32 %v973
        %v976 = vshrl.u32 %v975, 4
        %v977 = vmul.u32 %v976, 24
        %v978 = vsub.s32 %v972, %v977
        %v979 = vsub.s32 0, %v978
        %v980 = vsel %vm970, %v979, %v978
        %vm981 = vcmp.lt.s32.totalorder %v473, 0
        %v982 = vsub.s32 0, %v473
        %v983 = vsel %vm981, %v982, %v473
        %v984 = vmul.u32.u64.compose %v983, 2863311531
        %v985 = vextract.low.u32 %v984
        %v986 = vextract.high.u32 %v984
        %v987 = vshrl.u32 %v986, 4
        %v988 = vmul.u32 %v987, 24
        %v989 = vsub.s32 %v983, %v988
        %v990 = vsub.s32 0, %v989
        %v991 = vsel %vm981, %v990, %v989
        %vm992 = vcmp.lt.s32.totalorder %v474, 0
        %v993 = vsub.s32 0, %v474
        %v994 = vsel %vm992, %v993, %v474
        %v995 = vmul.u32.u64.compose %v994, 2863311531
        %v996 = vextract.low.u32 %v995
        %v997 = vextract.high.u32 %v995
        %v998 = vshrl.u32 %v997, 4
        %v999 = vmul.u32 %v998, 24
        %v1000 = vsub.s32 %v994, %v999
        %v1001 = vsub.s32 0, %v1000
        %v1002 = vsel %vm992, %v1001, %v1000
        %vm1003 = vcmp.ne.s32.totalorder %v485, 0
        %vm1004 = vcmp.ne.s32.totalorder %v496, 0
        %vm1005 = vcmp.ne.s32.totalorder %v507, 0
        %vm1006 = vcmp.ne.s32.totalorder %v518, 0
        %vm1007 = vcmp.ne.s32.totalorder %v529, 0
        %vm1008 = vcmp.ne.s32.totalorder %v540, 0
        %vm1009 = vcmp.ne.s32.totalorder %v551, 0
        %vm1010 = vcmp.ne.s32.totalorder %v562, 0
        %vm1011 = vcmp.ne.s32.totalorder %v573, 0
        %vm1012 = vcmp.ne.s32.totalorder %v584, 0
        %vm1013 = vcmp.ne.s32.totalorder %v595, 0
        %vm1014 = vcmp.ne.s32.totalorder %v606, 0
        %vm1015 = vcmp.ne.s32.totalorder %v617, 0
        %vm1016 = vcmp.ne.s32.totalorder %v628, 0
        %vm1017 = vcmp.ne.s32.totalorder %v639, 0
        %vm1018 = vcmp.ne.s32.totalorder %v650, 0
        %vm1019 = vcmp.ne.s32.totalorder %v661, 0
        %vm1020 = vcmp.ne.s32.totalorder %v672, 0
        %vm1021 = vcmp.ne.s32.totalorder %v683, 0
        %vm1022 = vcmp.ne.s32.totalorder %v694, 0
        %vm1023 = vcmp.ne.s32.totalorder %v705, 0
        %vm1024 = vcmp.ne.s32.totalorder %v716, 0
        %vm1025 = vcmp.ne.s32.totalorder %v727, 0
        %vm1026 = vcmp.ne.s32.totalorder %v738, 0
        %vm1027 = vcmp.ne.s32.totalorder %v749, 0
        %vm1028 = vcmp.ne.s32.totalorder %v760, 0
        %vm1029 = vcmp.ne.s32.totalorder %v771, 0
        %vm1030 = vcmp.ne.s32.totalorder %v782, 0
        %vm1031 = vcmp.ne.s32.totalorder %v793, 0
        %vm1032 = vcmp.ne.s32.totalorder %v804, 0
        %vm1033 = vcmp.ne.s32.totalorder %v815, 0
        %vm1034 = vcmp.ne.s32.totalorder %v826, 0
        %vm1035 = vcmp.ne.s32.totalorder %v837, 0
        %vm1036 = vcmp.ne.s32.totalorder %v848, 0
        %vm1037 = vcmp.ne.s32.totalorder %v859, 0
        %vm1038 = vcmp.ne.s32.totalorder %v870, 0
        %vm1039 = vcmp.ne.s32.totalorder %v881, 0
        %vm1040 = vcmp.ne.s32.totalorder %v892, 0
        %vm1041 = vcmp.ne.s32.totalorder %v903, 0
        %vm1042 = vcmp.ne.s32.totalorder %v914, 0
        %vm1043 = vcmp.ne.s32.totalorder %v925, 0
        %vm1044 = vcmp.ne.s32.totalorder %v936, 0
        %vm1045 = vcmp.ne.s32.totalorder %v947, 0
        %vm1046 = vcmp.ne.s32.totalorder %v958, 0
        %vm1047 = vcmp.ne.s32.totalorder %v969, 0
        %vm1048 = vcmp.ne.s32.totalorder %v980, 0
        %vm1049 = vcmp.ne.s32.totalorder %v991, 0
        %vm1050 = vcmp.ne.s32.totalorder %v1002, 0
        %vm1051 = vcmp.lt.s32.totalorder %v485, 0
        %vm1052 = vcmp.lt.s32.totalorder %v496, 0
        %vm1053 = vcmp.lt.s32.totalorder %v507, 0
        %vm1054 = vcmp.lt.s32.totalorder %v518, 0
        %vm1055 = vcmp.lt.s32.totalorder %v529, 0
        %vm1056 = vcmp.lt.s32.totalorder %v540, 0
        %vm1057 = vcmp.lt.s32.totalorder %v551, 0
        %vm1058 = vcmp.lt.s32.totalorder %v562, 0
        %vm1059 = vcmp.lt.s32.totalorder %v573, 0
        %vm1060 = vcmp.lt.s32.totalorder %v584, 0
        %vm1061 = vcmp.lt.s32.totalorder %v595, 0
        %vm1062 = vcmp.lt.s32.totalorder %v606, 0
        %vm1063 = vcmp.lt.s32.totalorder %v617, 0
        %vm1064 = vcmp.lt.s32.totalorder %v628, 0
        %vm1065 = vcmp.lt.s32.totalorder %v639, 0
        %vm1066 = vcmp.lt.s32.totalorder %v650, 0
        %vm1067 = vcmp.lt.s32.totalorder %v661, 0
        %vm1068 = vcmp.lt.s32.totalorder %v672, 0
        %vm1069 = vcmp.lt.s32.totalorder %v683, 0
        %vm1070 = vcmp.lt.s32.totalorder %v694, 0
        %vm1071 = vcmp.lt.s32.totalorder %v705, 0
        %vm1072 = vcmp.lt.s32.totalorder %v716, 0
        %vm1073 = vcmp.lt.s32.totalorder %v727, 0
        %vm1074 = vcmp.lt.s32.totalorder %v738, 0
        %vm1075 = vcmp.lt.s32.totalorder %v749, 0
        %vm1076 = vcmp.lt.s32.totalorder %v760, 0
        %vm1077 = vcmp.lt.s32.totalorder %v771, 0
        %vm1078 = vcmp.lt.s32.totalorder %v782, 0
        %vm1079 = vcmp.lt.s32.totalorder %v793, 0
        %vm1080 = vcmp.lt.s32.totalorder %v804, 0
        %vm1081 = vcmp.lt.s32.totalorder %v815, 0
        %vm1082 = vcmp.lt.s32.totalorder %v826, 0
        %vm1083 = vcmp.lt.s32.totalorder %v837, 0
        %vm1084 = vcmp.lt.s32.totalorder %v848, 0
        %vm1085 = vcmp.lt.s32.totalorder %v859, 0
        %vm1086 = vcmp.lt.s32.totalorder %v870, 0
        %vm1087 = vcmp.lt.s32.totalorder %v881, 0
        %vm1088 = vcmp.lt.s32.totalorder %v892, 0
        %vm1089 = vcmp.lt.s32.totalorder %v903, 0
        %vm1090 = vcmp.lt.s32.totalorder %v914, 0
        %vm1091 = vcmp.lt.s32.totalorder %v925, 0
        %vm1092 = vcmp.lt.s32.totalorder %v936, 0
        %vm1093 = vcmp.lt.s32.totalorder %v947, 0
        %vm1094 = vcmp.lt.s32.totalorder %v958, 0
        %vm1095 = vcmp.lt.s32.totalorder %v969, 0
        %vm1096 = vcmp.lt.s32.totalorder %v980, 0
        %vm1097 = vcmp.lt.s32.totalorder %v991, 0
        %vm1098 = vcmp.lt.s32.totalorder %v1002, 0
        %vm1099 = vmand %vm1051, %vm1003
        %vm1100 = vmand %vm1052, %vm1004
        %vm1101 = vmand %vm1053, %vm1005
        %vm1102 = vmand %vm1054, %vm1006
        %vm1103 = vmand %vm1055, %vm1007
        %vm1104 = vmand %vm1056, %vm1008
        %vm1105 = vmand %vm1057, %vm1009
        %vm1106 = vmand %vm1058, %vm1010
        %vm1107 = vmand %vm1059, %vm1011
        %vm1108 = vmand %vm1060, %vm1012
        %vm1109 = vmand %vm1061, %vm1013
        %vm1110 = vmand %vm1062, %vm1014
        %vm1111 = vmand %vm1063, %vm1015
        %vm1112 = vmand %vm1064, %vm1016
        %vm1113 = vmand %vm1065, %vm1017
        %vm1114 = vmand %vm1066, %vm1018
        %vm1115 = vmand %vm1067, %vm1019
        %vm1116 = vmand %vm1068, %vm1020
        %vm1117 = vmand %vm1069, %vm1021
        %vm1118 = vmand %vm1070, %vm1022
        %vm1119 = vmand %vm1071, %vm1023
        %vm1120 = vmand %vm1072, %vm1024
        %vm1121 = vmand %vm1073, %vm1025
        %vm1122 = vmand %vm1074, %vm1026
        %vm1123 = vmand %vm1075, %vm1027
        %vm1124 = vmand %vm1076, %vm1028
        %vm1125 = vmand %vm1077, %vm1029
        %vm1126 = vmand %vm1078, %vm1030
        %vm1127 = vmand %vm1079, %vm1031
        %vm1128 = vmand %vm1080, %vm1032
        %vm1129 = vmand %vm1081, %vm1033
        %vm1130 = vmand %vm1082, %vm1034
        %vm1131 = vmand %vm1083, %vm1035
        %vm1132 = vmand %vm1084, %vm1036
        %vm1133 = vmand %vm1085, %vm1037
        %vm1134 = vmand %vm1086, %vm1038
        %vm1135 = vmand %vm1087, %vm1039
        %vm1136 = vmand %vm1088, %vm1040
        %vm1137 = vmand %vm1089, %vm1041
        %vm1138 = vmand %vm1090, %vm1042
        %vm1139 = vmand %vm1091, %vm1043
        %vm1140 = vmand %vm1092, %vm1044
        %vm1141 = vmand %vm1093, %vm1045
        %vm1142 = vmand %vm1094, %vm1046
        %vm1143 = vmand %vm1095, %vm1047
        %vm1144 = vmand %vm1096, %vm1048
        %vm1145 = vmand %vm1097, %vm1049
        %vm1146 = vmand %vm1098, %vm1050
        %v1147 = vadd.s32 %v485, 24
        %v1148 = vadd.s32 %v496, 24
        %v1149 = vadd.s32 %v507, 24
        %v1150 = vadd.s32 %v518, 24
        %v1151 = vadd.s32 %v529, 24
        %v1152 = vadd.s32 %v540, 24
        %v1153 = vadd.s32 %v551, 24
        %v1154 = vadd.s32 %v562, 24
        %v1155 = vadd.s32 %v573, 24
        %v1156 = vadd.s32 %v584, 24
        %v1157 = vadd.s32 %v595, 24
        %v1158 = vadd.s32 %v606, 24
        %v1159 = vadd.s32 %v617, 24
        %v1160 = vadd.s32 %v628, 24
        %v1161 = vadd.s32 %v639, 24
        %v1162 = vadd.s32 %v650, 24
        %v1163 = vadd.s32 %v661, 24
        %v1164 = vadd.s32 %v672, 24
        %v1165 = vadd.s32 %v683, 24
        %v1166 = vadd.s32 %v694, 24
        %v1167 = vadd.s32 %v705, 24
        %v1168 = vadd.s32 %v716, 24
        %v1169 = vadd.s32 %v727, 24
        %v1170 = vadd.s32 %v738, 24
        %v1171 = vadd.s32 %v749, 24
        %v1172 = vadd.s32 %v760, 24
        %v1173 = vadd.s32 %v771, 24
        %v1174 = vadd.s32 %v782, 24
        %v1175 = vadd.s32 %v793, 24
        %v1176 = vadd.s32 %v804, 24
        %v1177 = vadd.s32 %v815, 24
        %v1178 = vadd.s32 %v826, 24
        %v1179 = vadd.s32 %v837, 24
        %v1180 = vadd.s32 %v848, 24
        %v1181 = vadd.s32 %v859, 24
        %v1182 = vadd.s32 %v870, 24
        %v1183 = vadd.s32 %v881, 24
        %v1184 = vadd.s32 %v892, 24
        %v1185 = vadd.s32 %v903, 24
        %v1186 = vadd.s32 %v914, 24
        %v1187 = vadd.s32 %v925, 24
        %v1188 = vadd.s32 %v936, 24
        %v1189 = vadd.s32 %v947, 24
        %v1190 = vadd.s32 %v958, 24
        %v1191 = vadd.s32 %v969, 24
        %v1192 = vadd.s32 %v980, 24
        %v1193 = vadd.s32 %v991, 24
        %v1194 = vadd.s32 %v1002, 24
        %v1195 = vsel %vm1099, %v1147, %v485
        %v1196 = vsel %vm1100, %v1148, %v496
        %v1197 = vsel %vm1101, %v1149, %v507
        %v1198 = vsel %vm1102, %v1150, %v518
        %v1199 = vsel %vm1103, %v1151, %v529
        %v1200 = vsel %vm1104, %v1152, %v540
        %v1201 = vsel %vm1105, %v1153, %v551
        %v1202 = vsel %vm1106, %v1154, %v562
        %v1203 = vsel %vm1107, %v1155, %v573
        %v1204 = vsel %vm1108, %v1156, %v584
        %v1205 = vsel %vm1109, %v1157, %v595
        %v1206 = vsel %vm1110, %v1158, %v606
        %v1207 = vsel %vm1111, %v1159, %v617
        %v1208 = vsel %vm1112, %v1160, %v628
        %v1209 = vsel %vm1113, %v1161, %v639
        %v1210 = vsel %vm1114, %v1162, %v650
        %v1211 = vsel %vm1115, %v1163, %v661
        %v1212 = vsel %vm1116, %v1164, %v672
        %v1213 = vsel %vm1117, %v1165, %v683
        %v1214 = vsel %vm1118, %v1166, %v694
        %v1215 = vsel %vm1119, %v1167, %v705
        %v1216 = vsel %vm1120, %v1168, %v716
        %v1217 = vsel %vm1121, %v1169, %v727
        %v1218 = vsel %vm1122, %v1170, %v738
        %v1219 = vsel %vm1123, %v1171, %v749
        %v1220 = vsel %vm1124, %v1172, %v760
        %v1221 = vsel %vm1125, %v1173, %v771
        %v1222 = vsel %vm1126, %v1174, %v782
        %v1223 = vsel %vm1127, %v1175, %v793
        %v1224 = vsel %vm1128, %v1176, %v804
        %v1225 = vsel %vm1129, %v1177, %v815
        %v1226 = vsel %vm1130, %v1178, %v826
        %v1227 = vsel %vm1131, %v1179, %v837
        %v1228 = vsel %vm1132, %v1180, %v848
        %v1229 = vsel %vm1133, %v1181, %v859
        %v1230 = vsel %vm1134, %v1182, %v870
        %v1231 = vsel %vm1135, %v1183, %v881
        %v1232 = vsel %vm1136, %v1184, %v892
        %v1233 = vsel %vm1137, %v1185, %v903
        %v1234 = vsel %vm1138, %v1186, %v914
        %v1235 = vsel %vm1139, %v1187, %v925
        %v1236 = vsel %vm1140, %v1188, %v936
        %v1237 = vsel %vm1141, %v1189, %v947
        %v1238 = vsel %vm1142, %v1190, %v958
        %v1239 = vsel %vm1143, %v1191, %v969
        %v1240 = vsel %vm1144, %v1192, %v980
        %v1241 = vsel %vm1145, %v1193, %v991
        %v1242 = vsel %vm1146, %v1194, %v1002
        %vm1243 = vcmp.ge.s32.totalorder %v1195, 1
        %vm1244 = vcmp.ge.s32.totalorder %v1196, 1
        %vm1245 = vcmp.ge.s32.totalorder %v1197, 1
        %vm1246 = vcmp.ge.s32.totalorder %v1198, 1
        %vm1247 = vcmp.ge.s32.totalorder %v1199, 1
        %vm1248 = vcmp.ge.s32.totalorder %v1200, 1
        %vm1249 = vcmp.ge.s32.totalorder %v1201, 1
        %vm1250 = vcmp.ge.s32.totalorder %v1202, 1
        %vm1251 = vcmp.ge.s32.totalorder %v1203, 1
        %vm1252 = vcmp.ge.s32.totalorder %v1204, 1
        %vm1253 = vcmp.ge.s32.totalorder %v1205, 1
        %vm1254 = vcmp.ge.s32.totalorder %v1206, 1
        %vm1255 = vcmp.ge.s32.totalorder %v1207, 1
        %vm1256 = vcmp.ge.s32.totalorder %v1208, 1
        %vm1257 = vcmp.ge.s32.totalorder %v1209, 1
        %vm1258 = vcmp.ge.s32.totalorder %v1210, 1
        %vm1259 = vcmp.ge.s32.totalorder %v1211, 1
        %vm1260 = vcmp.ge.s32.totalorder %v1212, 1
        %vm1261 = vcmp.ge.s32.totalorder %v1213, 1
        %vm1262 = vcmp.ge.s32.totalorder %v1214, 1
        %vm1263 = vcmp.ge.s32.totalorder %v1215, 1
        %vm1264 = vcmp.ge.s32.totalorder %v1216, 1
        %vm1265 = vcmp.ge.s32.totalorder %v1217, 1
        %vm1266 = vcmp.ge.s32.totalorder %v1218, 1
        %vm1267 = vcmp.ge.s32.totalorder %v1219, 1
        %vm1268 = vcmp.ge.s32.totalorder %v1220, 1
        %vm1269 = vcmp.ge.s32.totalorder %v1221, 1
        %vm1270 = vcmp.ge.s32.totalorder %v1222, 1
        %vm1271 = vcmp.ge.s32.totalorder %v1223, 1
        %vm1272 = vcmp.ge.s32.totalorder %v1224, 1
        %vm1273 = vcmp.ge.s32.totalorder %v1225, 1
        %vm1274 = vcmp.ge.s32.totalorder %v1226, 1
        %vm1275 = vcmp.ge.s32.totalorder %v1227, 1
        %vm1276 = vcmp.ge.s32.totalorder %v1228, 1
        %vm1277 = vcmp.ge.s32.totalorder %v1229, 1
        %vm1278 = vcmp.ge.s32.totalorder %v1230, 1
        %vm1279 = vcmp.ge.s32.totalorder %v1231, 1
        %vm1280 = vcmp.ge.s32.totalorder %v1232, 1
        %vm1281 = vcmp.ge.s32.totalorder %v1233, 1
        %vm1282 = vcmp.ge.s32.totalorder %v1234, 1
        %vm1283 = vcmp.ge.s32.totalorder %v1235, 1
        %vm1284 = vcmp.ge.s32.totalorder %v1236, 1
        %vm1285 = vcmp.ge.s32.totalorder %v1237, 1
        %vm1286 = vcmp.ge.s32.totalorder %v1238, 1
        %vm1287 = vcmp.ge.s32.totalorder %v1239, 1
        %vm1288 = vcmp.ge.s32.totalorder %v1240, 1
        %vm1289 = vcmp.ge.s32.totalorder %v1241, 1
        %vm1290 = vcmp.ge.s32.totalorder %v1242, 1
        %vm1291 = vcmp.le.s32.totalorder %v1195, 16
        %vm1292 = vcmp.le.s32.totalorder %v1196, 16
        %vm1293 = vcmp.le.s32.totalorder %v1197, 16
        %vm1294 = vcmp.le.s32.totalorder %v1198, 16
        %vm1295 = vcmp.le.s32.totalorder %v1199, 16
        %vm1296 = vcmp.le.s32.totalorder %v1200, 16
        %vm1297 = vcmp.le.s32.totalorder %v1201, 16
        %vm1298 = vcmp.le.s32.totalorder %v1202, 16
        %vm1299 = vcmp.le.s32.totalorder %v1203, 16
        %vm1300 = vcmp.le.s32.totalorder %v1204, 16
        %vm1301 = vcmp.le.s32.totalorder %v1205, 16
        %vm1302 = vcmp.le.s32.totalorder %v1206, 16
        %vm1303 = vcmp.le.s32.totalorder %v1207, 16
        %vm1304 = vcmp.le.s32.totalorder %v1208, 16
        %vm1305 = vcmp.le.s32.totalorder %v1209, 16
        %vm1306 = vcmp.le.s32.totalorder %v1210, 16
        %vm1307 = vcmp.le.s32.totalorder %v1211, 16
        %vm1308 = vcmp.le.s32.totalorder %v1212, 16
        %vm1309 = vcmp.le.s32.totalorder %v1213, 16
        %vm1310 = vcmp.le.s32.totalorder %v1214, 16
        %vm1311 = vcmp.le.s32.totalorder %v1215, 16
        %vm1312 = vcmp.le.s32.totalorder %v1216, 16
        %vm1313 = vcmp.le.s32.totalorder %v1217, 16
        %vm1314 = vcmp.le.s32.totalorder %v1218, 16
        %vm1315 = vcmp.le.s32.totalorder %v1219, 16
        %vm1316 = vcmp.le.s32.totalorder %v1220, 16
        %vm1317 = vcmp.le.s32.totalorder %v1221, 16
        %vm1318 = vcmp.le.s32.totalorder %v1222, 16
        %vm1319 = vcmp.le.s32.totalorder %v1223, 16
        %vm1320 = vcmp.le.s32.totalorder %v1224, 16
        %vm1321 = vcmp.le.s32.totalorder %v1225, 16
        %vm1322 = vcmp.le.s32.totalorder %v1226, 16
        %vm1323 = vcmp.le.s32.totalorder %v1227, 16
        %vm1324 = vcmp.le.s32.totalorder %v1228, 16
        %vm1325 = vcmp.le.s32.totalorder %v1229, 16
        %vm1326 = vcmp.le.s32.totalorder %v1230, 16
        %vm1327 = vcmp.le.s32.totalorder %v1231, 16
        %vm1328 = vcmp.le.s32.totalorder %v1232, 16
        %vm1329 = vcmp.le.s32.totalorder %v1233, 16
        %vm1330 = vcmp.le.s32.totalorder %v1234, 16
        %vm1331 = vcmp.le.s32.totalorder %v1235, 16
        %vm1332 = vcmp.le.s32.totalorder %v1236, 16
        %vm1333 = vcmp.le.s32.totalorder %v1237, 16
        %vm1334 = vcmp.le.s32.totalorder %v1238, 16
        %vm1335 = vcmp.le.s32.totalorder %v1239, 16
        %vm1336 = vcmp.le.s32.totalorder %v1240, 16
        %vm1337 = vcmp.le.s32.totalorder %v1241, 16
        %vm1338 = vcmp.le.s32.totalorder %v1242, 16
        %vm1339 = vmand %vm1243, %vm1291
        %vm1340 = vmand %vm1244, %vm1292
        %vm1341 = vmand %vm1245, %vm1293
        %vm1342 = vmand %vm1246, %vm1294
        %vm1343 = vmand %vm1247, %vm1295
        %vm1344 = vmand %vm1248, %vm1296
        %vm1345 = vmand %vm1249, %vm1297
        %vm1346 = vmand %vm1250, %vm1298
        %vm1347 = vmand %vm1251, %vm1299
        %vm1348 = vmand %vm1252, %vm1300
        %vm1349 = vmand %vm1253, %vm1301
        %vm1350 = vmand %vm1254, %vm1302
        %vm1351 = vmand %vm1255, %vm1303
        %vm1352 = vmand %vm1256, %vm1304
        %vm1353 = vmand %vm1257, %vm1305
        %vm1354 = vmand %vm1258, %vm1306
        %vm1355 = vmand %vm1259, %vm1307
        %vm1356 = vmand %vm1260, %vm1308
        %vm1357 = vmand %vm1261, %vm1309
        %vm1358 = vmand %vm1262, %vm1310
        %vm1359 = vmand %vm1263, %vm1311
        %vm1360 = vmand %vm1264, %vm1312
        %vm1361 = vmand %vm1265, %vm1313
        %vm1362 = vmand %vm1266, %vm1314
        %vm1363 = vmand %vm1267, %vm1315
        %vm1364 = vmand %vm1268, %vm1316
        %vm1365 = vmand %vm1269, %vm1317
        %vm1366 = vmand %vm1270, %vm1318
        %vm1367 = vmand %vm1271, %vm1319
        %vm1368 = vmand %vm1272, %vm1320
        %vm1369 = vmand %vm1273, %vm1321
        %vm1370 = vmand %vm1274, %vm1322
        %vm1371 = vmand %vm1275, %vm1323
        %vm1372 = vmand %vm1276, %vm1324
        %vm1373 = vmand %vm1277, %vm1325
        %vm1374 = vmand %vm1278, %vm1326
        %vm1375 = vmand %vm1279, %vm1327
        %vm1376 = vmand %vm1280, %vm1328
        %vm1377 = vmand %vm1281, %vm1329
        %vm1378 = vmand %vm1282, %vm1330
        %vm1379 = vmand %vm1283, %vm1331
        %vm1380 = vmand %vm1284, %vm1332
        %vm1381 = vmand %vm1285, %vm1333
        %vm1382 = vmand %vm1286, %vm1334
        %vm1383 = vmand %vm1287, %vm1335
        %vm1384 = vmand %vm1288, %vm1336
        %vm1385 = vmand %vm1289, %vm1337
        %vm1386 = vmand %vm1290, %vm1338
        %v1387 = vld [vmem:[#allocation8] sm:$0x1]
        %v1389 = vlaneseq
        %v1390 = vshrl.u32 %v1389, 7
        %v1391 = vsub.s32 0, %v1390
        %v1392 = vrot.slane %v1387, %v1391
        %vm1394 = vcmask 130048
        %v1396 = vsel %vm1394, %v376, 0
        %v1399 = vsel %vm1394, %v377, 0
        %v1402 = vsel %vm1394, %v378, 0
        %v1405 = vsel %vm1394, %v379, 0
        %v1408 = vsel %vm1394, %v380, 0
        %v1411 = vsel %vm1394, %v381, 0
        %v1414 = vsel %vm1394, %v382, 0
        %v1417 = vsel %vm1394, %v383, 0
        %v1420 = vsel %vm1394, %v384, 0
        %v1423 = vsel %vm1394, %v385, 0
        %v1426 = vsel %vm1394, %v386, 0
        %v1429 = vsel %vm1394, %v387, 0
        %v1432 = vsel %vm1394, %v388, 0
        %v1435 = vsel %vm1394, %v389, 0
        %v1438 = vsel %vm1394, %v390, 0
        %v1441 = vsel %vm1394, %v391, 0
        %v1444 = vsel %vm1394, %v392, 0
        %v1447 = vsel %vm1394, %v393, 0
        %v1450 = vsel %vm1394, %v394, 0
        %v1453 = vsel %vm1394, %v395, 0
        %v1456 = vsel %vm1394, %v396, 0
        %v1459 = vsel %vm1394, %v397, 0
        %v1462 = vsel %vm1394, %v398, 0
        %v1465 = vsel %vm1394, %v399, 0
        %v1468 = vsel %vm1394, %v400, 0
        %v1471 = vsel %vm1394, %v401, 0
        %v1474 = vsel %vm1394, %v402, 0
        %v1477 = vsel %vm1394, %v403, 0
        %v1480 = vsel %vm1394, %v404, 0
        %v1483 = vsel %vm1394, %v405, 0
        %v1486 = vsel %vm1394, %v406, 0
        %v1489 = vsel %vm1394, %v407, 0
        %v1492 = vsel %vm1394, %v408, 0
        %v1495 = vsel %vm1394, %v409, 0
        %v1498 = vsel %vm1394, %v410, 0
        %v1501 = vsel %vm1394, %v411, 0
        %v1504 = vsel %vm1394, %v412, 0
        %v1507 = vsel %vm1394, %v413, 0
        %v1510 = vsel %vm1394, %v414, 0
        %v1513 = vsel %vm1394, %v415, 0
        %v1516 = vsel %vm1394, %v416, 0
        %v1519 = vsel %vm1394, %v417, 0
        %v1522 = vsel %vm1394, %v418, 0
        %v1525 = vsel %vm1394, %v419, 0
        %v1528 = vsel %vm1394, %v420, 0
        %v1531 = vsel %vm1394, %v421, 0
        %v1534 = vsel %vm1394, %v422, 0
        %v1537 = vsel %vm1394, %v423, 0
        %1539 = vmatprep.subr.mxu0 0.0
        %1540 = vmatpush1.msra.mxu0 %v424
        %1541 = vmatprep.subr.mxu0 0.0
        %1542 = vmatpush1.msra.mxu0 %v425
        %1543 = vmatprep.subr.mxu0 0.0
        %1544 = vmatpush1.msra.mxu0 0.0
        %1545 = vmatprep.subr.mxu0 0.0
        %1546 = vmatpush1.msra.mxu0 0.0
        %1547 = vmatprep.subr.mxu0 0.0
        %1548 = vmatpush1.msra.mxu0 0.0
        %1549 = vmatprep.subr.mxu0 0.0
        %1550 = vmatpush1.msra.mxu0 0.0
        %1551 = vmatprep.subr.mxu0 0.0
        %1552 = vmatpush1.msra.mxu0 0.0
        %1553 = vmatprep.subr.mxu0 0.0
        %1554 = vmatpush1.msra.mxu0 0.0
        %1555 = vmatprep.subr.mxu0 0.0
        %1556 = vmatpush1.msra.mxu0 0.0
        %1557 = vmatprep.subr.mxu0 0.0
        %1558 = vmatpush1.msra.mxu0 0.0
        %1559 = vmatprep.subr.mxu0 0.0
        %1560 = vmatpush1.msra.mxu0 0.0
        %1561 = vmatprep.subr.mxu0 0.0
        %1562 = vmatpush1.msra.mxu0 0.0
        %1563 = vmatprep.subr.mxu0 0.0
        %1564 = vmatpush1.msra.mxu0 0.0
        %1565 = vmatprep.subr.mxu0 0.0
        %1566 = vmatpush1.msra.mxu0 0.0
        %1567 = vmatprep.subr.mxu0 0.0
        %1568 = vmatpush1.msra.mxu0 0.0
        %1569 = vmatprep.subr.mxu0 0.0
        %1570 = vmatpush1.msra.mxu0 0.0
        %1571 = vmatprep.subr.mxu0 0.0
        %1572 = vmatpush1.msra.mxu0 0.0
        %1573 = vmatprep.subr.mxu0 0.0
        %1574 = vmatpush1.msra.mxu0 0.0
        %1575 = vmatprep.subr.mxu0 0.0
        %1576 = vmatpush1.msra.mxu0 0.0
        %1577 = vmatprep.subr.mxu0 0.0
        %1578 = vmatpush1.msra.mxu0 0.0
        %1579 = vmatprep.subr.mxu0 0.0
        %1580 = vmatpush1.msra.mxu0 0.0
        %1581 = vmatprep.subr.mxu0 0.0
        %1582 = vmatpush1.msra.mxu0 0.0
        %1583 = vmatprep.subr.mxu0 0.0
        %1584 = vmatpush1.msra.mxu0 0.0
        %1585 = vmatprep.subr.mxu0 0.0
        %1586 = vmatpush1.msra.mxu0 0.0
        %1587 = vmatprep.subr.mxu0 0.0
        %1588 = vmatpush1.msra.mxu0 0.0
        %1589 = vmatprep.subr.mxu0 0.0
        %1590 = vmatpush1.msra.mxu0 0.0
        %1591 = vmatprep.subr.mxu0 0.0
        %1592 = vmatpush1.msra.mxu0 0.0
        %1593 = vmatprep.subr.mxu0 0.0
        %1594 = vmatpush1.msra.mxu0 0.0
        %1595 = vmatprep.subr.mxu0 0.0
        %1596 = vmatpush1.msra.mxu0 0.0
        %1597 = vmatprep.subr.mxu0 0.0
        %1598 = vmatpush1.msra.mxu0 0.0
        %1599 = vmatprep.subr.mxu0 0.0
        %1600 = vmatpush1.msra.mxu0 0.0
        %1601 = vmatprep.subr.mxu0 0.0
        %1602 = vmatpush1.msra.mxu0 0.0
        %1603 = vmatprep.mubr.f32.mxu0 0.0
        %1604 = vmatmul.mubr.f32.gmra.mrb[0].mxu0 %v1396
        %v1605 = vpop.f32.mrb[0].mxu0
        %v1606 = vadd.f32 %v1392, %v1605
        %v1607 = vpop.f32.mrb[0].mxu0
        %1608 = vmatprep.mubr.f32.mxu0 0.0
        %1609 = vmatmul.mubr.f32.gmra.mrb[0].mxu0 %v1399
        %v1610 = vpop.f32.mrb[0].mxu0
        %v1611 = vadd.f32 %v1392, %v1610
        %v1612 = vpop.f32.mrb[0].mxu0
        %1613 = vmatprep.mubr.f32.mxu0 0.0
        %1614 = vmatmul.mubr.f32.gmra.mrb[0].mxu0 %v1402
        %v1615 = vpop.f32.mrb[0].mxu0
        %v1616 = vadd.f32 %v1392, %v1615
        %v1617 = vpop.f32.mrb[0].mxu0
        %1618 = vmatprep.mubr.f32.mxu0 0.0
        %1619 = vmatmul.mubr.f32.gmra.mrb[0].mxu0 %v1405
        %v1620 = vpop.f32.mrb[0].mxu0
        %v1621 = vadd.f32 %v1392, %v1620
        %v1622 = vpop.f32.mrb[0].mxu0
        %1623 = vmatprep.mubr.f32.mxu0 0.0
        %1624 = vmatmul.mubr.f32.gmra.mrb[0].mxu0 %v1408
        %v1625 = vpop.f32.mrb[0].mxu0
        %v1626 = vadd.f32 %v1392, %v1625
        %v1627 = vpop.f32.mrb[0].mxu0
        %1628 = vmatprep.mubr.f32.mxu0 0.0
        %1629 = vmatmul.mubr.f32.gmra.mrb[0].mxu0 %v1411
        %v1630 = vpop.f32.mrb[0].mxu0
        %v1631 = vadd.f32 %v1392, %v1630
        %v1632 = vpop.f32.mrb[0].mxu0
        %1633 = vmatprep.mubr.f32.mxu0 0.0
        %1634 = vmatmul.mubr.f32.gmra.mrb[0].mxu0 %v1414
        %v1635 = vpop.f32.mrb[0].mxu0
        %v1636 = vadd.f32 %v1392, %v1635
        %v1637 = vpop.f32.mrb[0].mxu0
        %1638 = vmatprep.mubr.f32.mxu0 0.0
        %1639 = vmatmul.mubr.f32.gmra.mrb[0].mxu0 %v1417
        %v1640 = vpop.f32.mrb[0].mxu0
        %v1641 = vadd.f32 %v1392, %v1640
        %v1642 = vpop.f32.mrb[0].mxu0
        %1643 = vmatprep.mubr.f32.mxu0 0.0
        %1644 = vmatmul.mubr.f32.gmra.mrb[0].mxu0 %v1420
        %v1645 = vpop.f32.mrb[0].mxu0
        %v1646 = vadd.f32 %v1392, %v1645
        %v1647 = vpop.f32.mrb[0].mxu0
        %1648 = vmatprep.mubr.f32.mxu0 0.0
        %1649 = vmatmul.mubr.f32.gmra.mrb[0].mxu0 %v1423
        %v1650 = vpop.f32.mrb[0].mxu0
        %v1651 = vadd.f32 %v1392, %v1650
        %v1652 = vpop.f32.mrb[0].mxu0
        %1653 = vmatprep.mubr.f32.mxu0 0.0
        %1654 = vmatmul.mubr.f32.gmra.mrb[0].mxu0 %v1426
        %v1655 = vpop.f32.mrb[0].mxu0
        %v1656 = vadd.f32 %v1392, %v1655
        %v1657 = vpop.f32.mrb[0].mxu0
        %1658 = vmatprep.mubr.f32.mxu0 0.0
        %1659 = vmatmul.mubr.f32.gmra.mrb[0].mxu0 %v1429
        %v1660 = vpop.f32.mrb[0].mxu0
        %v1661 = vadd.f32 %v1392, %v1660
        %v1662 = vpop.f32.mrb[0].mxu0
        %1663 = vmatprep.mubr.f32.mxu0 0.0
        %1664 = vmatmul.mubr.f32.gmra.mrb[0].mxu0 %v1432
        %v1665 = vpop.f32.mrb[0].mxu0
        %v1666 = vadd.f32 %v1392, %v1665
        %v1667 = vpop.f32.mrb[0].mxu0
        %1668 = vmatprep.mubr.f32.mxu0 0.0
        %1669 = vmatmul.mubr.f32.gmra.mrb[0].mxu0 %v1435
        %v1670 = vpop.f32.mrb[0].mxu0
        %v1671 = vadd.f32 %v1392, %v1670
        %v1672 = vpop.f32.mrb[0].mxu0
        %1673 = vmatprep.mubr.f32.mxu0 0.0
        %1674 = vmatmul.mubr.f32.gmra.mrb[0].mxu0 %v1438
        %v1675 = vpop.f32.mrb[0].mxu0
        %v1676 = vadd.f32 %v1392, %v1675
        %v1677 = vpop.f32.mrb[0].mxu0
        %1678 = vmatprep.mubr.f32.mxu0 0.0
        %1679 = vmatmul.mubr.f32.gmra.mrb[0].mxu0 %v1441
        %v1680 = vpop.f32.mrb[0].mxu0
        %v1681 = vadd.f32 %v1392, %v1680
        %v1682 = vpop.f32.mrb[0].mxu0
        %1683 = vmatprep.mubr.f32.mxu0 0.0
        %1684 = vmatmul.mubr.f32.gmra.mrb[0].mxu0 %v1444
        %v1685 = vpop.f32.mrb[0].mxu0
        %v1686 = vadd.f32 %v1392, %v1685
        %v1687 = vpop.f32.mrb[0].mxu0
        %1688 = vmatprep.mubr.f32.mxu0 0.0
        %1689 = vmatmul.mubr.f32.gmra.mrb[0].mxu0 %v1447
        %v1690 = vpop.f32.mrb[0].mxu0
        %v1691 = vadd.f32 %v1392, %v1690
        %v1692 = vpop.f32.mrb[0].mxu0
        %1693 = vmatprep.mubr.f32.mxu0 0.0
        %1694 = vmatmul.mubr.f32.gmra.mrb[0].mxu0 %v1450
        %v1695 = vpop.f32.mrb[0].mxu0
        %v1696 = vadd.f32 %v1392, %v1695
        %v1697 = vpop.f32.mrb[0].mxu0
        %1698 = vmatprep.mubr.f32.mxu0 0.0
        %1699 = vmatmul.mubr.f32.gmra.mrb[0].mxu0 %v1453
        %v1700 = vpop.f32.mrb[0].mxu0
        %v1701 = vadd.f32 %v1392, %v1700
        %v1702 = vpop.f32.mrb[0].mxu0
        %1703 = vmatprep.mubr.f32.mxu0 0.0
        %1704 = vmatmul.mubr.f32.gmra.mrb[0].mxu0 %v1456
        %v1705 = vpop.f32.mrb[0].mxu0
        %v1706 = vadd.f32 %v1392, %v1705
        %v1707 = vpop.f32.mrb[0].mxu0
        %1708 = vmatprep.mubr.f32.mxu0 0.0
        %1709 = vmatmul.mubr.f32.gmra.mrb[0].mxu0 %v1459
        %v1710 = vpop.f32.mrb[0].mxu0
        %v1711 = vadd.f32 %v1392, %v1710
        %v1712 = vpop.f32.mrb[0].mxu0
        %1713 = vmatprep.mubr.f32.mxu0 0.0
        %1714 = vmatmul.mubr.f32.gmra.mrb[0].mxu0 %v1462
        %v1715 = vpop.f32.mrb[0].mxu0
        %v1716 = vadd.f32 %v1392, %v1715
        %v1717 = vpop.f32.mrb[0].mxu0
        %1718 = vmatprep.mubr.f32.mxu0 0.0
        %1719 = vmatmul.mubr.f32.gmra.mrb[0].mxu0 %v1465
        %v1720 = vpop.f32.mrb[0].mxu0
        %v1721 = vadd.f32 %v1392, %v1720
        %v1722 = vpop.f32.mrb[0].mxu0
        %1723 = vmatprep.mubr.f32.mxu0 0.0
        %1724 = vmatmul.mubr.f32.gmra.mrb[0].mxu0 %v1468
        %v1725 = vpop.f32.mrb[0].mxu0
        %v1726 = vadd.f32 %v1392, %v1725
        %v1727 = vpop.f32.mrb[0].mxu0
        %1728 = vmatprep.mubr.f32.mxu0 0.0
        %1729 = vmatmul.mubr.f32.gmra.mrb[0].mxu0 %v1471
        %v1730 = vpop.f32.mrb[0].mxu0
        %v1731 = vadd.f32 %v1392, %v1730
        %v1732 = vpop.f32.mrb[0].mxu0
        %1733 = vmatprep.mubr.f32.mxu0 0.0
        %1734 = vmatmul.mubr.f32.gmra.mrb[0].mxu0 %v1474
        %v1735 = vpop.f32.mrb[0].mxu0
        %v1736 = vadd.f32 %v1392, %v1735
        %v1737 = vpop.f32.mrb[0].mxu0
        %1738 = vmatprep.mubr.f32.mxu0 0.0
        %1739 = vmatmul.mubr.f32.gmra.mrb[0].mxu0 %v1477
        %v1740 = vpop.f32.mrb[0].mxu0
        %v1741 = vadd.f32 %v1392, %v1740
        %v1742 = vpop.f32.mrb[0].mxu0
        %1743 = vmatprep.mubr.f32.mxu0 0.0
        %1744 = vmatmul.mubr.f32.gmra.mrb[0].mxu0 %v1480
        %v1745 = vpop.f32.mrb[0].mxu0
        %v1746 = vadd.f32 %v1392, %v1745
        %v1747 = vpop.f32.mrb[0].mxu0
        %1748 = vmatprep.mubr.f32.mxu0 0.0
        %1749 = vmatmul.mubr.f32.gmra.mrb[0].mxu0 %v1483
        %v1750 = vpop.f32.mrb[0].mxu0
        %v1751 = vadd.f32 %v1392, %v1750
        %v1752 = vpop.f32.mrb[0].mxu0
        %1753 = vmatprep.mubr.f32.mxu0 0.0
        %1754 = vmatmul.mubr.f32.gmra.mrb[0].mxu0 %v1486
        %v1755 = vpop.f32.mrb[0].mxu0
        %v1756 = vadd.f32 %v1392, %v1755
        %v1757 = vpop.f32.mrb[0].mxu0
        %1758 = vmatprep.mubr.f32.mxu0 0.0
        %1759 = vmatmul.mubr.f32.gmra.mrb[0].mxu0 %v1489
        %v1760 = vpop.f32.mrb[0].mxu0
        %v1761 = vadd.f32 %v1392, %v1760
        %v1762 = vpop.f32.mrb[0].mxu0
        %1763 = vmatprep.mubr.f32.mxu0 0.0
        %1764 = vmatmul.mubr.f32.gmra.mrb[0].mxu0 %v1492
        %v1765 = vpop.f32.mrb[0].mxu0
        %v1766 = vadd.f32 %v1392, %v1765
        %v1767 = vpop.f32.mrb[0].mxu0
        %1768 = vmatprep.mubr.f32.mxu0 0.0
        %1769 = vmatmul.mubr.f32.gmra.mrb[0].mxu0 %v1495
        %v1770 = vpop.f32.mrb[0].mxu0
        %v1771 = vadd.f32 %v1392, %v1770
        %v1772 = vpop.f32.mrb[0].mxu0
        %1773 = vmatprep.mubr.f32.mxu0 0.0
        %1774 = vmatmul.mubr.f32.gmra.mrb[0].mxu0 %v1498
        %v1775 = vpop.f32.mrb[0].mxu0
        %v1776 = vadd.f32 %v1392, %v1775
        %v1777 = vpop.f32.mrb[0].mxu0
        %1778 = vmatprep.mubr.f32.mxu0 0.0
        %1779 = vmatmul.mubr.f32.gmra.mrb[0].mxu0 %v1501
        %v1780 = vpop.f32.mrb[0].mxu0
        %v1781 = vadd.f32 %v1392, %v1780
        %v1782 = vpop.f32.mrb[0].mxu0
        %1783 = vmatprep.mubr.f32.mxu0 0.0
        %1784 = vmatmul.mubr.f32.gmra.mrb[0].mxu0 %v1504
        %v1785 = vpop.f32.mrb[0].mxu0
        %v1786 = vadd.f32 %v1392, %v1785
        %v1787 = vpop.f32.mrb[0].mxu0
        %1788 = vmatprep.mubr.f32.mxu0 0.0
        %1789 = vmatmul.mubr.f32.gmra.mrb[0].mxu0 %v1507
        %v1790 = vpop.f32.mrb[0].mxu0
        %v1791 = vadd.f32 %v1392, %v1790
        %v1792 = vpop.f32.mrb[0].mxu0
        %1793 = vmatprep.mubr.f32.mxu0 0.0
        %1794 = vmatmul.mubr.f32.gmra.mrb[0].mxu0 %v1510
        %v1795 = vpop.f32.mrb[0].mxu0
        %v1796 = vadd.f32 %v1392, %v1795
        %v1797 = vpop.f32.mrb[0].mxu0
        %1798 = vmatprep.mubr.f32.mxu0 0.0
        %1799 = vmatmul.mubr.f32.gmra.mrb[0].mxu0 %v1513
        %v1800 = vpop.f32.mrb[0].mxu0
        %v1801 = vadd.f32 %v1392, %v1800
        %v1802 = vpop.f32.mrb[0].mxu0
        %1803 = vmatprep.mubr.f32.mxu0 0.0
        %1804 = vmatmul.mubr.f32.gmra.mrb[0].mxu0 %v1516
        %v1805 = vpop.f32.mrb[0].mxu0
        %v1806 = vadd.f32 %v1392, %v1805
        %v1807 = vpop.f32.mrb[0].mxu0
        %1808 = vmatprep.mubr.f32.mxu0 0.0
        %1809 = vmatmul.mubr.f32.gmra.mrb[0].mxu0 %v1519
        %v1810 = vpop.f32.mrb[0].mxu0
        %v1811 = vadd.f32 %v1392, %v1810
        %v1812 = vpop.f32.mrb[0].mxu0
        %1813 = vmatprep.mubr.f32.mxu0 0.0
        %1814 = vmatmul.mubr.f32.gmra.mrb[0].mxu0 %v1522
        %v1815 = vpop.f32.mrb[0].mxu0
        %v1816 = vadd.f32 %v1392, %v1815
        %v1817 = vpop.f32.mrb[0].mxu0
        %1818 = vmatprep.mubr.f32.mxu0 0.0
        %1819 = vmatmul.mubr.f32.gmra.mrb[0].mxu0 %v1525
        %v1820 = vpop.f32.mrb[0].mxu0
        %v1821 = vadd.f32 %v1392, %v1820
        %v1822 = vpop.f32.mrb[0].mxu0
        %1823 = vmatprep.mubr.f32.mxu0 0.0
        %1824 = vmatmul.mubr.f32.gmra.mrb[0].mxu0 %v1528
        %v1825 = vpop.f32.mrb[0].mxu0
        %v1826 = vadd.f32 %v1392, %v1825
        %v1827 = vpop.f32.mrb[0].mxu0
        %1828 = vmatprep.mubr.f32.mxu0 0.0
        %1829 = vmatmul.mubr.f32.gmra.mrb[0].mxu0 %v1531
        %v1830 = vpop.f32.mrb[0].mxu0
        %v1831 = vadd.f32 %v1392, %v1830
        %v1832 = vpop.f32.mrb[0].mxu0
        %1833 = vmatprep.mubr.f32.mxu0 0.0
        %1834 = vmatmul.mubr.f32.gmra.mrb[0].mxu0 %v1534
        %v1835 = vpop.f32.mrb[0].mxu0
        %v1836 = vadd.f32 %v1392, %v1835
        %v1837 = vpop.f32.mrb[0].mxu0
        %1838 = vmatprep.mubr.f32.mxu0 0.0
        %1839 = vmatmul.mubr.f32.gmra.mrb[0].mxu0 %v1537
        %v1840 = vpop.f32.mrb[0].mxu0
        %v1841 = vadd.f32 %v1392, %v1840
        %v1842 = vpop.f32.mrb[0].mxu0
        %1843 = vdwg.mxu0
        %v1844 = vmax.f32 %v1606, 0.0
        %v1845 = vmax.f32 %v1611, 0.0
        %v1846 = vmax.f32 %v1616, 0.0
        %v1847 = vmax.f32 %v1621, 0.0
        %v1848 = vmax.f32 %v1626, 0.0
        %v1849 = vmax.f32 %v1631, 0.0
        %v1850 = vmax.f32 %v1636, 0.0
        %v1851 = vmax.f32 %v1641, 0.0
        %v1852 = vmax.f32 %v1646, 0.0
        %v1853 = vmax.f32 %v1651, 0.0
        %v1854 = vmax.f32 %v1656, 0.0
        %v1855 = vmax.f32 %v1661, 0.0
        %v1856 = vmax.f32 %v1666, 0.0
        %v1857 = vmax.f32 %v1671, 0.0
        %v1858 = vmax.f32 %v1676, 0.0
        %v1859 = vmax.f32 %v1681, 0.0
        %v1860 = vmax.f32 %v1686, 0.0
        %v1861 = vmax.f32 %v1691, 0.0
        %v1862 = vmax.f32 %v1696, 0.0
        %v1863 = vmax.f32 %v1701, 0.0
        %v1864 = vmax.f32 %v1706, 0.0
        %v1865 = vmax.f32 %v1711, 0.0
        %v1866 = vmax.f32 %v1716, 0.0
        %v1867 = vmax.f32 %v1721, 0.0
        %v1868 = vmax.f32 %v1726, 0.0
        %v1869 = vmax.f32 %v1731, 0.0
        %v1870 = vmax.f32 %v1736, 0.0
        %v1871 = vmax.f32 %v1741, 0.0
        %v1872 = vmax.f32 %v1746, 0.0
        %v1873 = vmax.f32 %v1751, 0.0
        %v1874 = vmax.f32 %v1756, 0.0
        %v1875 = vmax.f32 %v1761, 0.0
        %v1876 = vmax.f32 %v1766, 0.0
        %v1877 = vmax.f32 %v1771, 0.0
        %v1878 = vmax.f32 %v1776, 0.0
        %v1879 = vmax.f32 %v1781, 0.0
        %v1880 = vmax.f32 %v1786, 0.0
        %v1881 = vmax.f32 %v1791, 0.0
        %v1882 = vmax.f32 %v1796, 0.0
        %v1883 = vmax.f32 %v1801, 0.0
        %v1884 = vmax.f32 %v1806, 0.0
        %v1885 = vmax.f32 %v1811, 0.0
        %v1886 = vmax.f32 %v1816, 0.0
        %v1887 = vmax.f32 %v1821, 0.0
        %v1888 = vmax.f32 %v1826, 0.0
        %v1889 = vmax.f32 %v1831, 0.0
        %v1890 = vmax.f32 %v1836, 0.0
        %v1891 = vmax.f32 %v1841, 0.0
        %v1892 = vsel %vm1339, 1, 0
        %v1893 = vsel %vm1340, 1, 0
        %v1894 = vsel %vm1341, 1, 0
        %v1895 = vsel %vm1342, 1, 0
        %v1896 = vsel %vm1343, 1, 0
        %v1897 = vsel %vm1344, 1, 0
        %v1898 = vsel %vm1345, 1, 0
        %v1899 = vsel %vm1346, 1, 0
        %v1900 = vsel %vm1347, 1, 0
        %v1901 = vsel %vm1348, 1, 0
        %v1902 = vsel %vm1349, 1, 0
        %v1903 = vsel %vm1350, 1, 0
        %v1904 = vsel %vm1351, 1, 0
        %v1905 = vsel %vm1352, 1, 0
        %v1906 = vsel %vm1353, 1, 0
        %v1907 = vsel %vm1354, 1, 0
        %v1908 = vsel %vm1355, 1, 0
        %v1909 = vsel %vm1356, 1, 0
        %v1910 = vsel %vm1357, 1, 0
        %v1911 = vsel %vm1358, 1, 0
        %v1912 = vsel %vm1359, 1, 0
        %v1913 = vsel %vm1360, 1, 0
        %v1914 = vsel %vm1361, 1, 0
        %v1915 = vsel %vm1362, 1, 0
        %v1916 = vsel %vm1363, 1, 0
        %v1917 = vsel %vm1364, 1, 0
        %v1918 = vsel %vm1365, 1, 0
        %v1919 = vsel %vm1366, 1, 0
        %v1920 = vsel %vm1367, 1, 0
        %v1921 = vsel %vm1368, 1, 0
        %v1922 = vsel %vm1369, 1, 0
        %v1923 = vsel %vm1370, 1, 0
        %v1924 = vsel %vm1371, 1, 0
        %v1925 = vsel %vm1372, 1, 0
        %v1926 = vsel %vm1373, 1, 0
        %v1927 = vsel %vm1374, 1, 0
        %v1928 = vsel %vm1375, 1, 0
        %v1929 = vsel %vm1376, 1, 0
        %v1930 = vsel %vm1377, 1, 0
        %v1931 = vsel %vm1378, 1, 0
        %v1932 = vsel %vm1379, 1, 0
        %v1933 = vsel %vm1380, 1, 0
        %v1934 = vsel %vm1381, 1, 0
        %v1935 = vsel %vm1382, 1, 0
        %v1936 = vsel %vm1383, 1, 0
        %v1937 = vsel %vm1384, 1, 0
        %v1938 = vsel %vm1385, 1, 0
        %v1939 = vsel %vm1386, 1, 0
        %vm1940 = vcmp.eq.s32.totalorder %v1892, 1
        %vm1941 = vcmp.eq.s32.totalorder %v1893, 1
        %vm1942 = vcmp.eq.s32.totalorder %v1894, 1
        %vm1943 = vcmp.eq.s32.totalorder %v1895, 1
        %vm1944 = vcmp.eq.s32.totalorder %v1896, 1
        %vm1945 = vcmp.eq.s32.totalorder %v1897, 1
        %vm1946 = vcmp.eq.s32.totalorder %v1898, 1
        %vm1947 = vcmp.eq.s32.totalorder %v1899, 1
        %vm1948 = vcmp.eq.s32.totalorder %v1900, 1
        %vm1949 = vcmp.eq.s32.totalorder %v1901, 1
        %vm1950 = vcmp.eq.s32.totalorder %v1902, 1
        %vm1951 = vcmp.eq.s32.totalorder %v1903, 1
        %vm1952 = vcmp.eq.s32.totalorder %v1904, 1
        %vm1953 = vcmp.eq.s32.totalorder %v1905, 1
        %vm1954 = vcmp.eq.s32.totalorder %v1906, 1
        %vm1955 = vcmp.eq.s32.totalorder %v1907, 1
        %vm1956 = vcmp.eq.s32.totalorder %v1908, 1
        %vm1957 = vcmp.eq.s32.totalorder %v1909, 1
        %vm1958 = vcmp.eq.s32.totalorder %v1910, 1
        %vm1959 = vcmp.eq.s32.totalorder %v1911, 1
        %vm1960 = vcmp.eq.s32.totalorder %v1912, 1
        %vm1961 = vcmp.eq.s32.totalorder %v1913, 1
        %vm1962 = vcmp.eq.s32.totalorder %v1914, 1
        %vm1963 = vcmp.eq.s32.totalorder %v1915, 1
        %vm1964 = vcmp.eq.s32.totalorder %v1916, 1
        %vm1965 = vcmp.eq.s32.totalorder %v1917, 1
        %vm1966 = vcmp.eq.s32.totalorder %v1918, 1
        %vm1967 = vcmp.eq.s32.totalorder %v1919, 1
        %vm1968 = vcmp.eq.s32.totalorder %v1920, 1
        %vm1969 = vcmp.eq.s32.totalorder %v1921, 1
        %vm1970 = vcmp.eq.s32.totalorder %v1922, 1
        %vm1971 = vcmp.eq.s32.totalorder %v1923, 1
        %vm1972 = vcmp.eq.s32.totalorder %v1924, 1
        %vm1973 = vcmp.eq.s32.totalorder %v1925, 1
        %vm1974 = vcmp.eq.s32.totalorder %v1926, 1
        %vm1975 = vcmp.eq.s32.totalorder %v1927, 1
        %vm1976 = vcmp.eq.s32.totalorder %v1928, 1
        %vm1977 = vcmp.eq.s32.totalorder %v1929, 1
        %vm1978 = vcmp.eq.s32.totalorder %v1930, 1
        %vm1979 = vcmp.eq.s32.totalorder %v1931, 1
        %vm1980 = vcmp.eq.s32.totalorder %v1932, 1
        %vm1981 = vcmp.eq.s32.totalorder %v1933, 1
        %vm1982 = vcmp.eq.s32.totalorder %v1934, 1
        %vm1983 = vcmp.eq.s32.totalorder %v1935, 1
        %vm1984 = vcmp.eq.s32.totalorder %v1936, 1
        %vm1985 = vcmp.eq.s32.totalorder %v1937, 1
        %vm1986 = vcmp.eq.s32.totalorder %v1938, 1
        %vm1987 = vcmp.eq.s32.totalorder %v1939, 1
        %v1988 = vsel %vm1940, %v1844, 0.0
        %v1989 = vsel %vm1941, %v1845, 0.0
        %v1990 = vsel %vm1942, %v1846, 0.0
        %v1991 = vsel %vm1943, %v1847, 0.0
        %v1992 = vsel %vm1944, %v1848, 0.0
        %v1993 = vsel %vm1945, %v1849, 0.0
        %v1994 = vsel %vm1946, %v1850, 0.0
        %v1995 = vsel %vm1947, %v1851, 0.0
        %v1996 = vsel %vm1948, %v1852, 0.0
        %v1997 = vsel %vm1949, %v1853, 0.0
        %v1998 = vsel %vm1950, %v1854, 0.0
        %v1999 = vsel %vm1951, %v1855, 0.0
        %v2000 = vsel %vm1952, %v1856, 0.0
        %v2001 = vsel %vm1953, %v1857, 0.0
        %v2002 = vsel %vm1954, %v1858, 0.0
        %v2003 = vsel %vm1955, %v1859, 0.0
        %v2004 = vsel %vm1956, %v1860, 0.0
        %v2005 = vsel %vm1957, %v1861, 0.0
        %v2006 = vsel %vm1958, %v1862, 0.0
        %v2007 = vsel %vm1959, %v1863, 0.0
        %v2008 = vsel %vm1960, %v1864, 0.0
        %v2009 = vsel %vm1961, %v1865, 0.0
        %v2010 = vsel %vm1962, %v1866, 0.0
        %v2011 = vsel %vm1963, %v1867, 0.0
        %v2012 = vsel %vm1964, %v1868, 0.0
        %v2013 = vsel %vm1965, %v1869, 0.0
        %v2014 = vsel %vm1966, %v1870, 0.0
        %v2015 = vsel %vm1967, %v1871, 0.0
        %v2016 = vsel %vm1968, %v1872, 0.0
        %v2017 = vsel %vm1969, %v1873, 0.0
        %v2018 = vsel %vm1970, %v1874, 0.0
        %v2019 = vsel %vm1971, %v1875, 0.0
        %v2020 = vsel %vm1972, %v1876, 0.0
        %v2021 = vsel %vm1973, %v1877, 0.0
        %v2022 = vsel %vm1974, %v1878, 0.0
        %v2023 = vsel %vm1975, %v1879, 0.0
        %v2024 = vsel %vm1976, %v1880, 0.0
        %v2025 = vsel %vm1977, %v1881, 0.0
        %v2026 = vsel %vm1978, %v1882, 0.0
        %v2027 = vsel %vm1979, %v1883, 0.0
        %v2028 = vsel %vm1980, %v1884, 0.0
        %v2029 = vsel %vm1981, %v1885, 0.0
        %v2030 = vsel %vm1982, %v1886, 0.0
        %v2031 = vsel %vm1983, %v1887, 0.0
        %v2032 = vsel %vm1984, %v1888, 0.0
        %v2033 = vsel %vm1985, %v1889, 0.0
        %v2034 = vsel %vm1986, %v1890, 0.0
        %v2035 = vsel %vm1987, %v1891, 0.0
        %vm2084 = vcmask 1046528
        %v2085 = vrot.slane %v1988, 1
        %v2086 = vrot.slane %v1989, 1
        %v2087 = vsel %vm2084, %v2085, %v2086
        %v2088 = vrot.slane %v1990, 1
        %v2089 = vsel %vm2084, %v2086, %v2088
        %v2090 = vrot.slane %v1991, 1
        %v2091 = vsel %vm2084, %v2088, %v2090
        %v2092 = vrot.slane %v1992, 1
        %v2093 = vsel %vm2084, %v2090, %v2092
        %v2094 = vrot.slane %v1993, 1
        %v2095 = vsel %vm2084, %v2092, %v2094
        %v2096 = vrot.slane %v1994, 1
        %v2097 = vsel %vm2084, %v2094, %v2096
        %v2098 = vrot.slane %v1995, 1
        %v2099 = vsel %vm2084, %v2096, %v2098
        %v2100 = vrot.slane %v1996, 1
        %v2101 = vsel %vm2084, %v2098, %v2100
        %v2102 = vrot.slane %v1997, 1
        %v2103 = vsel %vm2084, %v2100, %v2102
        %v2104 = vrot.slane %v1998, 1
        %v2105 = vsel %vm2084, %v2102, %v2104
        %v2106 = vrot.slane %v1999, 1
        %v2107 = vsel %vm2084, %v2104, %v2106
        %v2108 = vrot.slane %v2000, 1
        %v2109 = vsel %vm2084, %v2106, %v2108
        %v2110 = vrot.slane %v2001, 1
        %v2111 = vsel %vm2084, %v2108, %v2110
        %v2112 = vrot.slane %v2002, 1
        %v2113 = vsel %vm2084, %v2110, %v2112
        %v2114 = vrot.slane %v2003, 1
        %v2115 = vsel %vm2084, %v2112, %v2114
        %v2116 = vrot.slane %v2004, 1
        %v2117 = vsel %vm2084, %v2114, %v2116
        %v2118 = vrot.slane %v2005, 1
        %v2119 = vsel %vm2084, %v2116, %v2118
        %v2120 = vrot.slane %v2006, 1
        %v2121 = vsel %vm2084, %v2118, %v2120
        %v2122 = vrot.slane %v2007, 1
        %v2123 = vsel %vm2084, %v2120, %v2122
        %v2124 = vrot.slane %v2008, 1
        %v2125 = vsel %vm2084, %v2122, %v2124
        %v2126 = vrot.slane %v2009, 1
        %v2127 = vsel %vm2084, %v2124, %v2126
        %v2128 = vrot.slane %v2010, 1
        %v2129 = vsel %vm2084, %v2126, %v2128
        %v2130 = vrot.slane %v2011, 1
        %v2131 = vsel %vm2084, %v2128, %v2130
        %v2132 = vrot.slane %v2012, 1
        %v2133 = vsel %vm2084, %v2130, %v2132
        %v2134 = vrot.slane %v2013, 1
        %v2135 = vsel %vm2084, %v2132, %v2134
        %v2136 = vrot.slane %v2014, 1
        %v2137 = vsel %vm2084, %v2134, %v2136
        %v2138 = vrot.slane %v2015, 1
        %v2139 = vsel %vm2084, %v2136, %v2138
        %v2140 = vrot.slane %v2016, 1
        %v2141 = vsel %vm2084, %v2138, %v2140
        %v2142 = vrot.slane %v2017, 1
        %v2143 = vsel %vm2084, %v2140, %v2142
        %v2144 = vrot.slane %v2018, 1
        %v2145 = vsel %vm2084, %v2142, %v2144
        %v2146 = vrot.slane %v2019, 1
        %v2147 = vsel %vm2084, %v2144, %v2146
        %v2148 = vrot.slane %v2020, 1
        %v2149 = vsel %vm2084, %v2146, %v2148
        %v2150 = vrot.slane %v2021, 1
        %v2151 = vsel %vm2084, %v2148, %v2150
        %v2152 = vrot.slane %v2022, 1
        %v2153 = vsel %vm2084, %v2150, %v2152
        %v2154 = vrot.slane %v2023, 1
        %v2155 = vsel %vm2084, %v2152, %v2154
        %v2156 = vrot.slane %v2024, 1
        %v2157 = vsel %vm2084, %v2154, %v2156
        %v2158 = vrot.slane %v2025, 1
        %v2159 = vsel %vm2084, %v2156, %v2158
        %v2160 = vrot.slane %v2026, 1
        %v2161 = vsel %vm2084, %v2158, %v2160
        %v2162 = vrot.slane %v2027, 1
        %v2163 = vsel %vm2084, %v2160, %v2162
        %v2164 = vrot.slane %v2028, 1
        %v2165 = vsel %vm2084, %v2162, %v2164
        %v2166 = vrot.slane %v2029, 1
        %v2167 = vsel %vm2084, %v2164, %v2166
        %v2168 = vrot.slane %v2030, 1
        %v2169 = vsel %vm2084, %v2166, %v2168
        %v2170 = vrot.slane %v2031, 1
        %v2171 = vsel %vm2084, %v2168, %v2170
        %v2172 = vrot.slane %v2032, 1
        %v2173 = vsel %vm2084, %v2170, %v2172
        %v2174 = vrot.slane %v2033, 1
        %v2175 = vsel %vm2084, %v2172, %v2174
        %v2176 = vrot.slane %v2034, 1
        %v2177 = vsel %vm2084, %v2174, %v2176
        %v2178 = vrot.slane %v2035, 1
        %v2179 = vsel %vm2084, %v2176, %v2178
        %v2182 = vsel %vm2084, 0.0, %v2085
        %v2183 = vsel %vm2084, %v2178, 0.0
        %vm2184 = vcmask 1045504
        %v2185 = vrot.slane %v1988, 2
        %v2186 = vrot.slane %v1989, 2
        %v2187 = vsel %vm2184, %v2185, %v2186
        %v2188 = vrot.slane %v1990, 2
        %v2189 = vsel %vm2184, %v2186, %v2188
        %v2190 = vrot.slane %v1991, 2
        %v2191 = vsel %vm2184, %v2188, %v2190
        %v2192 = vrot.slane %v1992, 2
        %v2193 = vsel %vm2184, %v2190, %v2192
        %v2194 = vrot.slane %v1993, 2
        %v2195 = vsel %vm2184, %v2192, %v2194
        %v2196 = vrot.slane %v1994, 2
        %v2197 = vsel %vm2184, %v2194, %v2196
        %v2198 = vrot.slane %v1995, 2
        %v2199 = vsel %vm2184, %v2196, %v2198
        %v2200 = vrot.slane %v1996, 2
        %v2201 = vsel %vm2184, %v2198, %v2200
        %v2202 = vrot.slane %v1997, 2
        %v2203 = vsel %vm2184, %v2200, %v2202
        %v2204 = vrot.slane %v1998, 2
        %v2205 = vsel %vm2184, %v2202, %v2204
        %v2206 = vrot.slane %v1999, 2
        %v2207 = vsel %vm2184, %v2204, %v2206
        %v2208 = vrot.slane %v2000, 2
        %v2209 = vsel %vm2184, %v2206, %v2208
        %v2210 = vrot.slane %v2001, 2
        %v2211 = vsel %vm2184, %v2208, %v2210
        %v2212 = vrot.slane %v2002, 2
        %v2213 = vsel %vm2184, %v2210, %v2212
        %v2214 = vrot.slane %v2003, 2
        %v2215 = vsel %vm2184, %v2212, %v2214
        %v2216 = vrot.slane %v2004, 2
        %v2217 = vsel %vm2184, %v2214, %v2216
        %v2218 = vrot.slane %v2005, 2
        %v2219 = vsel %vm2184, %v2216, %v2218
        %v2220 = vrot.slane %v2006, 2
        %v2221 = vsel %vm2184, %v2218, %v2220
        %v2222 = vrot.slane %v2007, 2
        %v2223 = vsel %vm2184, %v2220, %v2222
        %v2224 = vrot.slane %v2008, 2
        %v2225 = vsel %vm2184, %v2222, %v2224
        %v2226 = vrot.slane %v2009, 2
        %v2227 = vsel %vm2184, %v2224, %v2226
        %v2228 = vrot.slane %v2010, 2
        %v2229 = vsel %vm2184, %v2226, %v2228
        %v2230 = vrot.slane %v2011, 2
        %v2231 = vsel %vm2184, %v2228, %v2230
        %v2232 = vrot.slane %v2012, 2
        %v2233 = vsel %vm2184, %v2230, %v2232
        %v2234 = vrot.slane %v2013, 2
        %v2235 = vsel %vm2184, %v2232, %v2234
        %v2236 = vrot.slane %v2014, 2
        %v2237 = vsel %vm2184, %v2234, %v2236
        %v2238 = vrot.slane %v2015, 2
        %v2239 = vsel %vm2184, %v2236, %v2238
        %v2240 = vrot.slane %v2016, 2
        %v2241 = vsel %vm2184, %v2238, %v2240
        %v2242 = vrot.slane %v2017, 2
        %v2243 = vsel %vm2184, %v2240, %v2242
        %v2244 = vrot.slane %v2018, 2
        %v2245 = vsel %vm2184, %v2242, %v2244
        %v2246 = vrot.slane %v2019, 2
        %v2247 = vsel %vm2184, %v2244, %v2246
        %v2248 = vrot.slane %v2020, 2
        %v2249 = vsel %vm2184, %v2246, %v2248
        %v2250 = vrot.slane %v2021, 2
        %v2251 = vsel %vm2184, %v2248, %v2250
        %v2252 = vrot.slane %v2022, 2
        %v2253 = vsel %vm2184, %v2250, %v2252
        %v2254 = vrot.slane %v2023, 2
        %v2255 = vsel %vm2184, %v2252, %v2254
        %v2256 = vrot.slane %v2024, 2
        %v2257 = vsel %vm2184, %v2254, %v2256
        %v2258 = vrot.slane %v2025, 2
        %v2259 = vsel %vm2184, %v2256, %v2258
        %v2260 = vrot.slane %v2026, 2
        %v2261 = vsel %vm2184, %v2258, %v2260
        %v2262 = vrot.slane %v2027, 2
        %v2263 = vsel %vm2184, %v2260, %v2262
        %v2264 = vrot.slane %v2028, 2
        %v2265 = vsel %vm2184, %v2262, %v2264
        %v2266 = vrot.slane %v2029, 2
        %v2267 = vsel %vm2184, %v2264, %v2266
        %v2268 = vrot.slane %v2030, 2
        %v2269 = vsel %vm2184, %v2266, %v2268
        %v2270 = vrot.slane %v2031, 2
        %v2271 = vsel %vm2184, %v2268, %v2270
        %v2272 = vrot.slane %v2032, 2
        %v2273 = vsel %vm2184, %v2270, %v2272
        %v2274 = vrot.slane %v2033, 2
        %v2275 = vsel %vm2184, %v2272, %v2274
        %v2276 = vrot.slane %v2034, 2
        %v2277 = vsel %vm2184, %v2274, %v2276
        %v2278 = vrot.slane %v2035, 2
        %v2279 = vsel %vm2184, %v2276, %v2278
        %v2282 = vsel %vm2184, 0.0, %v2185
        %v2283 = vsel %vm2184, %v2278, 0.0
        %2287 = vrot.lane.b32.xlu0 0.0, 4
        %v2288 = vpop.permute.xlu0 %2287
        %2289 = vrot.lane.b32.xlu0 %v2182, 4
        %v2290 = vpop.permute.xlu0 %2289
        %2291 = vrot.lane.b32.xlu0 %v2087, 4
        %v2292 = vpop.permute.xlu0 %2291
        %2293 = vrot.lane.b32.xlu0 %v2089, 4
        %v2294 = vpop.permute.xlu0 %2293
        %2295 = vrot.lane.b32.xlu0 %v2091, 4
        %v2296 = vpop.permute.xlu0 %2295
        %2297 = vrot.lane.b32.xlu0 %v2093, 4
        %v2298 = vpop.permute.xlu0 %2297
        %2299 = vrot.lane.b32.xlu0 %v2095, 4
        %v2300 = vpop.permute.xlu0 %2299
        %2301 = vrot.lane.b32.xlu0 %v2097, 4
        %v2302 = vpop.permute.xlu0 %2301
        %2303 = vrot.lane.b32.xlu0 %v2099, 4
        %v2304 = vpop.permute.xlu0 %2303
        %2305 = vrot.lane.b32.xlu0 %v2101, 4
        %v2306 = vpop.permute.xlu0 %2305
        %2307 = vrot.lane.b32.xlu0 %v2103, 4
        %v2308 = vpop.permute.xlu0 %2307
        %2309 = vrot.lane.b32.xlu0 %v2105, 4
        %v2310 = vpop.permute.xlu0 %2309
        %2311 = vrot.lane.b32.xlu0 %v2107, 4
        %v2312 = vpop.permute.xlu0 %2311
        %2313 = vrot.lane.b32.xlu0 %v2109, 4
        %v2314 = vpop.permute.xlu0 %2313
        %2315 = vrot.lane.b32.xlu0 %v2111, 4
        %v2316 = vpop.permute.xlu0 %2315
        %2317 = vrot.lane.b32.xlu0 %v2113, 4
        %v2318 = vpop.permute.xlu0 %2317
        %2319 = vrot.lane.b32.xlu0 %v2115, 4
        %v2320 = vpop.permute.xlu0 %2319
        %2321 = vrot.lane.b32.xlu0 %v2117, 4
        %v2322 = vpop.permute.xlu0 %2321
        %2323 = vrot.lane.b32.xlu0 %v2119, 4
        %v2324 = vpop.permute.xlu0 %2323
        %2325 = vrot.lane.b32.xlu0 %v2121, 4
        %v2326 = vpop.permute.xlu0 %2325
        %2327 = vrot.lane.b32.xlu0 %v2123, 4
        %v2328 = vpop.permute.xlu0 %2327
        %2329 = vrot.lane.b32.xlu0 %v2125, 4
        %v2330 = vpop.permute.xlu0 %2329
        %2331 = vrot.lane.b32.xlu0 %v2127, 4
        %v2332 = vpop.permute.xlu0 %2331
        %2333 = vrot.lane.b32.xlu0 %v2129, 4
        %v2334 = vpop.permute.xlu0 %2333
        %2335 = vrot.lane.b32.xlu0 %v2131, 4
        %v2336 = vpop.permute.xlu0 %2335
        %2337 = vrot.lane.b32.xlu0 %v2133, 4
        %v2338 = vpop.permute.xlu0 %2337
        %2339 = vrot.lane.b32.xlu0 %v2135, 4
        %v2340 = vpop.permute.xlu0 %2339
        %2341 = vrot.lane.b32.xlu0 %v2137, 4
        %v2342 = vpop.permute.xlu0 %2341
        %2343 = vrot.lane.b32.xlu0 %v2139, 4
        %v2344 = vpop.permute.xlu0 %2343
        %2345 = vrot.lane.b32.xlu0 %v2141, 4
        %v2346 = vpop.permute.xlu0 %2345
        %2347 = vrot.lane.b32.xlu0 %v2143, 4
        %v2348 = vpop.permute.xlu0 %2347
        %2349 = vrot.lane.b32.xlu0 %v2145, 4
        %v2350 = vpop.permute.xlu0 %2349
        %2351 = vrot.lane.b32.xlu0 %v2147, 4
        %v2352 = vpop.permute.xlu0 %2351
        %2353 = vrot.lane.b32.xlu0 %v2149, 4
        %v2354 = vpop.permute.xlu0 %2353
        %2355 = vrot.lane.b32.xlu0 %v2151, 4
        %v2356 = vpop.permute.xlu0 %2355
        %2357 = vrot.lane.b32.xlu0 %v2153, 4
        %v2358 = vpop.permute.xlu0 %2357
        %2359 = vrot.lane.b32.xlu0 %v2155, 4
        %v2360 = vpop.permute.xlu0 %2359
        %2361 = vrot.lane.b32.xlu0 %v2157, 4
        %v2362 = vpop.permute.xlu0 %2361
        %2363 = vrot.lane.b32.xlu0 %v2159, 4
        %v2364 = vpop.permute.xlu0 %2363
        %2365 = vrot.lane.b32.xlu0 %v2161, 4
        %v2366 = vpop.permute.xlu0 %2365
        %2367 = vrot.lane.b32.xlu0 %v2163, 4
        %v2368 = vpop.permute.xlu0 %2367
        %2369 = vrot.lane.b32.xlu0 %v2165, 4
        %v2370 = vpop.permute.xlu0 %2369
        %2371 = vrot.lane.b32.xlu0 %v2167, 4
        %v2372 = vpop.permute.xlu0 %2371
        %2373 = vrot.lane.b32.xlu0 %v2169, 4
        %v2374 = vpop.permute.xlu0 %2373
        %2375 = vrot.lane.b32.xlu0 %v2171, 4
        %v2376 = vpop.permute.xlu0 %2375
        %2377 = vrot.lane.b32.xlu0 %v2173, 4
        %v2378 = vpop.permute.xlu0 %2377
        %2379 = vrot.lane.b32.xlu0 %v2175, 4
        %v2380 = vpop.permute.xlu0 %2379
        %2381 = vrot.lane.b32.xlu0 %v2177, 4
        %v2382 = vpop.permute.xlu0 %2381
        %2383 = vrot.lane.b32.xlu0 %v2179, 4
        %v2384 = vpop.permute.xlu0 %2383
        %2385 = vrot.lane.b32.xlu0 %v2183, 4
        %v2386 = vpop.permute.xlu0 %2385
        %2439 = vrot.lane.b32.xlu0 0.0, 8
        %v2440 = vpop.permute.xlu0 %2439
        %2441 = vrot.lane.b32.xlu0 %v2282, 8
        %v2442 = vpop.permute.xlu0 %2441
        %2443 = vrot.lane.b32.xlu0 %v2187, 8
        %v2444 = vpop.permute.xlu0 %2443
        %2445 = vrot.lane.b32.xlu0 %v2189, 8
        %v2446 = vpop.permute.xlu0 %2445
        %2447 = vrot.lane.b32.xlu0 %v2191, 8
        %v2448 = vpop.permute.xlu0 %2447
        %2449 = vrot.lane.b32.xlu0 %v2193, 8
        %v2450 = vpop.permute.xlu0 %2449
        %2451 = vrot.lane.b32.xlu0 %v2195, 8
        %v2452 = vpop.permute.xlu0 %2451
        %2453 = vrot.lane.b32.xlu0 %v2197, 8
        %v2454 = vpop.permute.xlu0 %2453
        %2455 = vrot.lane.b32.xlu0 %v2199, 8
        %v2456 = vpop.permute.xlu0 %2455
        %2457 = vrot.lane.b32.xlu0 %v2201, 8
        %v2458 = vpop.permute.xlu0 %2457
        %2459 = vrot.lane.b32.xlu0 %v2203, 8
        %v2460 = vpop.permute.xlu0 %2459
        %2461 = vrot.lane.b32.xlu0 %v2205, 8
        %v2462 = vpop.permute.xlu0 %2461
        %2463 = vrot.lane.b32.xlu0 %v2207, 8
        %v2464 = vpop.permute.xlu0 %2463
        %2465 = vrot.lane.b32.xlu0 %v2209, 8
        %v2466 = vpop.permute.xlu0 %2465
        %2467 = vrot.lane.b32.xlu0 %v2211, 8
        %v2468 = vpop.permute.xlu0 %2467
        %2469 = vrot.lane.b32.xlu0 %v2213, 8
        %v2470 = vpop.permute.xlu0 %2469
        %2471 = vrot.lane.b32.xlu0 %v2215, 8
        %v2472 = vpop.permute.xlu0 %2471
        %2473 = vrot.lane.b32.xlu0 %v2217, 8
        %v2474 = vpop.permute.xlu0 %2473
        %2475 = vrot.lane.b32.xlu0 %v2219, 8
        %v2476 = vpop.permute.xlu0 %2475
        %2477 = vrot.lane.b32.xlu0 %v2221, 8
        %v2478 = vpop.permute.xlu0 %2477
        %2479 = vrot.lane.b32.xlu0 %v2223, 8
        %v2480 = vpop.permute.xlu0 %2479
        %2481 = vrot.lane.b32.xlu0 %v2225, 8
        %v2482 = vpop.permute.xlu0 %2481
        %2483 = vrot.lane.b32.xlu0 %v2227, 8
        %v2484 = vpop.permute.xlu0 %2483
        %2485 = vrot.lane.b32.xlu0 %v2229, 8
        %v2486 = vpop.permute.xlu0 %2485
        %2487 = vrot.lane.b32.xlu0 %v2231, 8
        %v2488 = vpop.permute.xlu0 %2487
        %2489 = vrot.lane.b32.xlu0 %v2233, 8
        %v2490 = vpop.permute.xlu0 %2489
        %2491 = vrot.lane.b32.xlu0 %v2235, 8
        %v2492 = vpop.permute.xlu0 %2491
        %2493 = vrot.lane.b32.xlu0 %v2237, 8
        %v2494 = vpop.permute.xlu0 %2493
        %2495 = vrot.lane.b32.xlu0 %v2239, 8
        %v2496 = vpop.permute.xlu0 %2495
        %2497 = vrot.lane.b32.xlu0 %v2241, 8
        %v2498 = vpop.permute.xlu0 %2497
        %2499 = vrot.lane.b32.xlu0 %v2243, 8
        %v2500 = vpop.permute.xlu0 %2499
        %2501 = vrot.lane.b32.xlu0 %v2245, 8
        %v2502 = vpop.permute.xlu0 %2501
        %2503 = vrot.lane.b32.xlu0 %v2247, 8
        %v2504 = vpop.permute.xlu0 %2503
        %2505 = vrot.lane.b32.xlu0 %v2249, 8
        %v2506 = vpop.permute.xlu0 %2505
        %2507 = vrot.lane.b32.xlu0 %v2251, 8
        %v2508 = vpop.permute.xlu0 %2507
        %2509 = vrot.lane.b32.xlu0 %v2253, 8
        %v2510 = vpop.permute.xlu0 %2509
        %2511 = vrot.lane.b32.xlu0 %v2255, 8
        %v2512 = vpop.permute.xlu0 %2511
        %2513 = vrot.lane.b32.xlu0 %v2257, 8
        %v2514 = vpop.permute.xlu0 %2513
        %2515 = vrot.lane.b32.xlu0 %v2259, 8
        %v2516 = vpop.permute.xlu0 %2515
        %2517 = vrot.lane.b32.xlu0 %v2261, 8
        %v2518 = vpop.permute.xlu0 %2517
        %2519 = vrot.lane.b32.xlu0 %v2263, 8
        %v2520 = vpop.permute.xlu0 %2519
        %2521 = vrot.lane.b32.xlu0 %v2265, 8
        %v2522 = vpop.permute.xlu0 %2521
        %2523 = vrot.lane.b32.xlu0 %v2267, 8
        %v2524 = vpop.permute.xlu0 %2523
        %2525 = vrot.lane.b32.xlu0 %v2269, 8
        %v2526 = vpop.permute.xlu0 %2525
        %2527 = vrot.lane.b32.xlu0 %v2271, 8
        %v2528 = vpop.permute.xlu0 %2527
        %2529 = vrot.lane.b32.xlu0 %v2273, 8
        %v2530 = vpop.permute.xlu0 %2529
        %2531 = vrot.lane.b32.xlu0 %v2275, 8
        %v2532 = vpop.permute.xlu0 %2531
        %2533 = vrot.lane.b32.xlu0 %v2277, 8
        %v2534 = vpop.permute.xlu0 %2533
        %2535 = vrot.lane.b32.xlu0 %v2279, 8
        %v2536 = vpop.permute.xlu0 %2535
        %2537 = vrot.lane.b32.xlu0 %v2283, 8
        %v2538 = vpop.permute.xlu0 %2537
        %vm2589 = vcmask 31744
        %v2590 = vsel %vm2589, 0.0, %v2288
        %v2591 = vsel %vm2589, 0.0, %v2290
        %v2592 = vsel %vm2589, %v1988, %v2292
        %v2593 = vsel %vm2589, %v1989, %v2294
        %v2594 = vsel %vm2589, %v1990, %v2296
        %v2595 = vsel %vm2589, %v1991, %v2298
        %v2596 = vsel %vm2589, %v1992, %v2300
        %v2597 = vsel %vm2589, %v1993, %v2302
        %v2598 = vsel %vm2589, %v1994, %v2304
        %v2599 = vsel %vm2589, %v1995, %v2306
        %v2600 = vsel %vm2589, %v1996, %v2308
        %v2601 = vsel %vm2589, %v1997, %v2310
        %v2602 = vsel %vm2589, %v1998, %v2312
        %v2603 = vsel %vm2589, %v1999, %v2314
        %v2604 = vsel %vm2589, %v2000, %v2316
        %v2605 = vsel %vm2589, %v2001, %v2318
        %v2606 = vsel %vm2589, %v2002, %v2320
        %v2607 = vsel %vm2589, %v2003, %v2322
        %v2608 = vsel %vm2589, %v2004, %v2324
        %v2609 = vsel %vm2589, %v2005, %v2326
        %v2610 = vsel %vm2589, %v2006, %v2328
        %v2611 = vsel %vm2589, %v2007, %v2330
        %v2612 = vsel %vm2589, %v2008, %v2332
        %v2613 = vsel %vm2589, %v2009, %v2334
        %v2614 = vsel %vm2589, %v2010, %v2336
        %v2615 = vsel %vm2589, %v2011, %v2338
        %v2616 = vsel %vm2589, %v2012, %v2340
        %v2617 = vsel %vm2589, %v2013, %v2342
        %v2618 = vsel %vm2589, %v2014, %v2344
        %v2619 = vsel %vm2589, %v2015, %v2346
        %v2620 = vsel %vm2589, %v2016, %v2348
        %v2621 = vsel %vm2589, %v2017, %v2350
        %v2622 = vsel %vm2589, %v2018, %v2352
        %v2623 = vsel %vm2589, %v2019, %v2354
        %v2624 = vsel %vm2589, %v2020, %v2356
        %v2625 = vsel %vm2589, %v2021, %v2358
        %v2626 = vsel %vm2589, %v2022, %v2360
        %v2627 = vsel %vm2589, %v2023, %v2362
        %v2628 = vsel %vm2589, %v2024, %v2364
        %v2629 = vsel %vm2589, %v2025, %v2366
        %v2630 = vsel %vm2589, %v2026, %v2368
        %v2631 = vsel %vm2589, %v2027, %v2370
        %v2632 = vsel %vm2589, %v2028, %v2372
        %v2633 = vsel %vm2589, %v2029, %v2374
        %v2634 = vsel %vm2589, %v2030, %v2376
        %v2635 = vsel %vm2589, %v2031, %v2378
        %v2636 = vsel %vm2589, %v2032, %v2380
        %v2637 = vsel %vm2589, %v2033, %v2382
        %v2638 = vsel %vm2589, %v2034, %v2384
        %v2639 = vsel %vm2589, %v2035, %v2386
        %vm2640 = vcmask 64512
        %v2641 = vsel %vm2640, %v2590, %v2440
        %v2642 = vsel %vm2640, %v2591, %v2442
        %v2643 = vsel %vm2640, %v2592, %v2444
        %v2644 = vsel %vm2640, %v2593, %v2446
        %v2645 = vsel %vm2640, %v2594, %v2448
        %v2646 = vsel %vm2640, %v2595, %v2450
        %v2647 = vsel %vm2640, %v2596, %v2452
        %v2648 = vsel %vm2640, %v2597, %v2454
        %v2649 = vsel %vm2640, %v2598, %v2456
        %v2650 = vsel %vm2640, %v2599, %v2458
        %v2651 = vsel %vm2640, %v2600, %v2460
        %v2652 = vsel %vm2640, %v2601, %v2462
        %v2653 = vsel %vm2640, %v2602, %v2464
        %v2654 = vsel %vm2640, %v2603, %v2466
        %v2655 = vsel %vm2640, %v2604, %v2468
        %v2656 = vsel %vm2640, %v2605, %v2470
        %v2657 = vsel %vm2640, %v2606, %v2472
        %v2658 = vsel %vm2640, %v2607, %v2474
        %v2659 = vsel %vm2640, %v2608, %v2476
        %v2660 = vsel %vm2640, %v2609, %v2478
        %v2661 = vsel %vm2640, %v2610, %v2480
        %v2662 = vsel %vm2640, %v2611, %v2482
        %v2663 = vsel %vm2640, %v2612, %v2484
        %v2664 = vsel %vm2640, %v2613, %v2486
        %v2665 = vsel %vm2640, %v2614, %v2488
        %v2666 = vsel %vm2640, %v2615, %v2490
        %v2667 = vsel %vm2640, %v2616, %v2492
        %v2668 = vsel %vm2640, %v2617, %v2494
        %v2669 = vsel %vm2640, %v2618, %v2496
        %v2670 = vsel %vm2640, %v2619, %v2498
        %v2671 = vsel %vm2640, %v2620, %v2500
        %v2672 = vsel %vm2640, %v2621, %v2502
        %v2673 = vsel %vm2640, %v2622, %v2504
        %v2674 = vsel %vm2640, %v2623, %v2506
        %v2675 = vsel %vm2640, %v2624, %v2508
        %v2676 = vsel %vm2640, %v2625, %v2510
        %v2677 = vsel %vm2640, %v2626, %v2512
        %v2678 = vsel %vm2640, %v2627, %v2514
        %v2679 = vsel %vm2640, %v2628, %v2516
        %v2680 = vsel %vm2640, %v2629, %v2518
        %v2681 = vsel %vm2640, %v2630, %v2520
        %v2682 = vsel %vm2640, %v2631, %v2522
        %v2683 = vsel %vm2640, %v2632, %v2524
        %v2684 = vsel %vm2640, %v2633, %v2526
        %v2685 = vsel %vm2640, %v2634, %v2528
        %v2686 = vsel %vm2640, %v2635, %v2530
        %v2687 = vsel %vm2640, %v2636, %v2532
        %v2688 = vsel %vm2640, %v2637, %v2534
        %v2689 = vsel %vm2640, %v2638, %v2536
        %v2690 = vsel %vm2640, %v2639, %v2538
        %vm2691 = vcmask 97280
        %2692 = vst.msk [vmem:[#allocation2] sm:$0xff] %vm2691, %v2641
        %2693 = vst.msk [vmem:[#allocation2 + $0x8] sm:$0xff] %vm2691, %v2641
        %2694 = vst.msk [vmem:[#allocation2 + $0x10] sm:$0xff] %vm2691, %v2642
        %2695 = vst.msk [vmem:[#allocation2 + $0x18] sm:$0xff] %vm2691, %v2643
        %2696 = vst.msk [vmem:[#allocation2 + $0x20] sm:$0xff] %vm2691, %v2644
        %2697 = vst.msk [vmem:[#allocation2 + $0x28] sm:$0xff] %vm2691, %v2645
        %2698 = vst.msk [vmem:[#allocation2 + $0x30] sm:$0xff] %vm2691, %v2646
        %2699 = vst.msk [vmem:[#allocation2 + $0x38] sm:$0xff] %vm2691, %v2647
        %2700 = vst.msk [vmem:[#allocation2 + $0x40] sm:$0xff] %vm2691, %v2648
        %2701 = vst.msk [vmem:[#allocation2 + $0x48] sm:$0xff] %vm2691, %v2649
        %2702 = vst.msk [vmem:[#allocation2 + $0x50] sm:$0xff] %vm2691, %v2650
        %2703 = vst.msk [vmem:[#allocation2 + $0x58] sm:$0xff] %vm2691, %v2651
        %2704 = vst.msk [vmem:[#allocation2 + $0x60] sm:$0xff] %vm2691, %v2652
        %2705 = vst.msk [vmem:[#allocation2 + $0x68] sm:$0xff] %vm2691, %v2653
        %2706 = vst.msk [vmem:[#allocation2 + $0x70] sm:$0xff] %vm2691, %v2654
        %2707 = vst.msk [vmem:[#allocation2 + $0x78] sm:$0xff] %vm2691, %v2655
        %2708 = vst.msk [vmem:[#allocation2 + $0x80] sm:$0xff] %vm2691, %v2656
        %2709 = vst.msk [vmem:[#allocation2 + $0x88] sm:$0xff] %vm2691, %v2657
        %2710 = vst.msk [vmem:[#allocation2 + $0x90] sm:$0xff] %vm2691, %v2658
        %2711 = vst.msk [vmem:[#allocation2 + $0x98] sm:$0xff] %vm2691, %v2659
        %2712 = vst.msk [vmem:[#allocation2 + $0xa0] sm:$0xff] %vm2691, %v2660
        %2713 = vst.msk [vmem:[#allocation2 + $0xa8] sm:$0xff] %vm2691, %v2661
        %2714 = vst.msk [vmem:[#allocation2 + $0xb0] sm:$0xff] %vm2691, %v2662
        %2715 = vst.msk [vmem:[#allocation2 + $0xb8] sm:$0xff] %vm2691, %v2663
        %2716 = vst.msk [vmem:[#allocation2 + $0xc0] sm:$0xff] %vm2691, %v2664
        %2717 = vst.msk [vmem:[#allocation2 + $0xc8] sm:$0xff] %vm2691, %v2665
        %2718 = vst.msk [vmem:[#allocation2 + $0xd0] sm:$0xff] %vm2691, %v2666
        %2719 = vst.msk [vmem:[#allocation2 + $0xd8] sm:$0xff] %vm2691, %v2667
        %2720 = vst.msk [vmem:[#allocation2 + $0xe0] sm:$0xff] %vm2691, %v2668
        %2721 = vst.msk [vmem:[#allocation2 + $0xe8] sm:$0xff] %vm2691, %v2669
        %2722 = vst.msk [vmem:[#allocation2 + $0xf0] sm:$0xff] %vm2691, %v2670
        %2723 = vst.msk [vmem:[#allocation2 + $0xf8] sm:$0xff] %vm2691, %v2671
        %2724 = vst.msk [vmem:[#allocation2 + $0x100] sm:$0xff] %vm2691, %v2672
        %2725 = vst.msk [vmem:[#allocation2 + $0x108] sm:$0xff] %vm2691, %v2673
        %2726 = vst.msk [vmem:[#allocation2 + $0x110] sm:$0xff] %vm2691, %v2674
        %2727 = vst.msk [vmem:[#allocation2 + $0x118] sm:$0xff] %vm2691, %v2675
        %2728 = vst.msk [vmem:[#allocation2 + $0x120] sm:$0xff] %vm2691, %v2676
        %2729 = vst.msk [vmem:[#allocation2 + $0x128] sm:$0xff] %vm2691, %v2677
        %2730 = vst.msk [vmem:[#allocation2 + $0x130] sm:$0xff] %vm2691, %v2678
        %2731 = vst.msk [vmem:[#allocation2 + $0x138] sm:$0xff] %vm2691, %v2679
        %2732 = vst.msk [vmem:[#allocation2 + $0x140] sm:$0xff] %vm2691, %v2680
        %2733 = vst.msk [vmem:[#allocation2 + $0x148] sm:$0xff] %vm2691, %v2681
        %2734 = vst.msk [vmem:[#allocation2 + $0x150] sm:$0xff] %vm2691, %v2682
        %2735 = vst.msk [vmem:[#allocation2 + $0x158] sm:$0xff] %vm2691, %v2683
        %2736 = vst.msk [vmem:[#allocation2 + $0x160] sm:$0xff] %vm2691, %v2684
        %2737 = vst.msk [vmem:[#allocation2 + $0x168] sm:$0xff] %vm2691, %v2685
        %2738 = vst.msk [vmem:[#allocation2 + $0x170] sm:$0xff] %vm2691, %v2686
        %2739 = vst.msk [vmem:[#allocation2 + $0x178] sm:$0xff] %vm2691, %v2687
        %2740 = vst.msk [vmem:[#allocation2 + $0x180] sm:$0xff] %vm2691, %v2688
        %2741 = vst.msk [vmem:[#allocation2 + $0x188] sm:$0xff] %vm2691, %v2689
        %2742 = vst.msk [vmem:[#allocation2 + $0x190] sm:$0xff] %vm2691, %v2690
        %2743 = vst.msk [vmem:[#allocation2 + $0x198] sm:$0xff] %vm2691, %v2641
        %2744 = vst.msk [vmem:[#allocation2 + $0x1a0] sm:$0xff] %vm2691, %v2641
        %2745 = vst.msk [vmem:[#allocation2 + $0x1a8] sm:$0xff] %vm2691, %v2641
        %v2746 = vld [vmem:[#allocation2] sm:$0xff]
        %v2747 = vld [vmem:[#allocation2 + $0x8] sm:$0xff]
        %v2748 = vld [vmem:[#allocation2 + $0x10] sm:$0xff]
        %v2749 = vld [vmem:[#allocation2 + $0x18] sm:$0xff]
        %v2750 = vld [vmem:[#allocation2 + $0x20] sm:$0xff]
        %v2751 = vld [vmem:[#allocation2 + $0x28] sm:$0xff]
        %v2752 = vld [vmem:[#allocation2 + $0x30] sm:$0xff]
        %v2753 = vld [vmem:[#allocation2 + $0x38] sm:$0xff]
        %v2754 = vld [vmem:[#allocation2 + $0x40] sm:$0xff]
        %v2755 = vld [vmem:[#allocation2 + $0x48] sm:$0xff]
        %v2756 = vld [vmem:[#allocation2 + $0x50] sm:$0xff]
        %v2757 = vld [vmem:[#allocation2 + $0x58] sm:$0xff]
        %v2758 = vld [vmem:[#allocation2 + $0x60] sm:$0xff]
        %v2759 = vld [vmem:[#allocation2 + $0x68] sm:$0xff]
        %v2760 = vld [vmem:[#allocation2 + $0x70] sm:$0xff]
        %v2761 = vld [vmem:[#allocation2 + $0x78] sm:$0xff]
        %v2762 = vld [vmem:[#allocation2 + $0x80] sm:$0xff]
        %v2763 = vld [vmem:[#allocation2 + $0x88] sm:$0xff]
        %v2764 = vld [vmem:[#allocation2 + $0x90] sm:$0xff]
        %v2765 = vld [vmem:[#allocation2 + $0x98] sm:$0xff]
        %v2766 = vld [vmem:[#allocation2 + $0xa0] sm:$0xff]
        %v2767 = vld [vmem:[#allocation2 + $0xa8] sm:$0xff]
        %v2768 = vld [vmem:[#allocation2 + $0xb0] sm:$0xff]
        %v2769 = vld [vmem:[#allocation2 + $0xb8] sm:$0xff]
        %v2770 = vld [vmem:[#allocation2 + $0xc0] sm:$0xff]
        %v2771 = vld [vmem:[#allocation2 + $0xc8] sm:$0xff]
        %v2772 = vld [vmem:[#allocation2 + $0xd0] sm:$0xff]
        %v2773 = vld [vmem:[#allocation2 + $0xd8] sm:$0xff]
        %v2774 = vld [vmem:[#allocation2 + $0xe0] sm:$0xff]
        %v2775 = vld [vmem:[#allocation2 + $0xe8] sm:$0xff]
        %v2776 = vld [vmem:[#allocation2 + $0xf0] sm:$0xff]
        %v2777 = vld [vmem:[#allocation2 + $0xf8] sm:$0xff]
        %v2778 = vld [vmem:[#allocation2 + $0x100] sm:$0xff]
        %v2779 = vld [vmem:[#allocation2 + $0x108] sm:$0xff]
        %v2780 = vld [vmem:[#allocation2 + $0x110] sm:$0xff]
        %v2781 = vld [vmem:[#allocation2 + $0x118] sm:$0xff]
        %v2782 = vld [vmem:[#allocation2 + $0x120] sm:$0xff]
        %v2783 = vld [vmem:[#allocation2 + $0x128] sm:$0xff]
        %v2784 = vld [vmem:[#allocation2 + $0x130] sm:$0xff]
        %v2785 = vld [vmem:[#allocation2 + $0x138] sm:$0xff]
        %v2786 = vld [vmem:[#allocation2 + $0x140] sm:$0xff]
        %v2787 = vld [vmem:[#allocation2 + $0x148] sm:$0xff]
        %v2788 = vld [vmem:[#allocation2 + $0x150] sm:$0xff]
        %v2789 = vld [vmem:[#allocation2 + $0x158] sm:$0xff]
        %v2790 = vld [vmem:[#allocation2 + $0x160] sm:$0xff]
        %v2791 = vld [vmem:[#allocation2 + $0x168] sm:$0xff]
        %v2792 = vld [vmem:[#allocation2 + $0x170] sm:$0xff]
        %v2793 = vld [vmem:[#allocation2 + $0x178] sm:$0xff]
        %v2794 = vld [vmem:[#allocation9] sm:$0xff]
        %v2795 = vld [vmem:[#allocation9 + $0x8] sm:$0xf]
        %v2796 = vld [vmem:[#allocation2 + $0x180] sm:$0xff]
        %v2797 = vld [vmem:[#allocation2 + $0x188] sm:$0xff]
        %v2798 = vld [vmem:[#allocation2 + $0x190] sm:$0xff]
        %s2799 = scalar_lea.vmem [#allocation9], 16
        %v2800 = vld [vmem:[%s2799] sm:$0xff]
        %v2801 = vld [vmem:[%s2799 + $0x8] sm:$0xf]
        %v2803 = vsel %vm2691, %v2749, 0
        %v2806 = vsel %vm2691, %v2750, 0
        %v2809 = vsel %vm2691, %v2751, 0
        %v2812 = vsel %vm2691, %v2752, 0
        %v2815 = vsel %vm2691, %v2753, 0
        %v2818 = vsel %vm2691, %v2754, 0
        %v2821 = vsel %vm2691, %v2755, 0
        %v2824 = vsel %vm2691, %v2756, 0
        %v2827 = vsel %vm2691, %v2757, 0
        %v2830 = vsel %vm2691, %v2758, 0
        %v2833 = vsel %vm2691, %v2759, 0
        %v2836 = vsel %vm2691, %v2760, 0
        %v2839 = vsel %vm2691, %v2761, 0
        %v2842 = vsel %vm2691, %v2762, 0
        %v2845 = vsel %vm2691, %v2763, 0
        %v2848 = vsel %vm2691, %v2764, 0
        %v2851 = vsel %vm2691, %v2765, 0
        %v2854 = vsel %vm2691, %v2766, 0
        %v2857 = vsel %vm2691, %v2767, 0
        %v2860 = vsel %vm2691, %v2768, 0
        %v2863 = vsel %vm2691, %v2769, 0
        %v2866 = vsel %vm2691, %v2770, 0
        %v2869 = vsel %vm2691, %v2771, 0
        %v2872 = vsel %vm2691, %v2772, 0
        %v2875 = vsel %vm2691, %v2773, 0
        %v2878 = vsel %vm2691, %v2774, 0
        %v2881 = vsel %vm2691, %v2775, 0
        %v2884 = vsel %vm2691, %v2776, 0
        %v2887 = vsel %vm2691, %v2777, 0
        %v2890 = vsel %vm2691, %v2778, 0
        %v2893 = vsel %vm2691, %v2779, 0
        %v2896 = vsel %vm2691, %v2780, 0
        %v2899 = vsel %vm2691, %v2781, 0
        %v2902 = vsel %vm2691, %v2782, 0
        %v2905 = vsel %vm2691, %v2783, 0
        %v2908 = vsel %vm2691, %v2784, 0
        %v2911 = vsel %vm2691, %v2785, 0
        %v2914 = vsel %vm2691, %v2786, 0
        %v2917 = vsel %vm2691, %v2787, 0
        %v2920 = vsel %vm2691, %v2788, 0
        %v2923 = vsel %vm2691, %v2789, 0
        %v2926 = vsel %vm2691, %v2790, 0
        %v2929 = vsel %vm2691, %v2791, 0
        %v2932 = vsel %vm2691, %v2792, 0
        %v2935 = vsel %vm2691, %v2793, 0
        %v2938 = vsel %vm2691, %v2796, 0
        %v2941 = vsel %vm2691, %v2797, 0
        %v2944 = vsel %vm2691, %v2798, 0
        %vm2946 = vcmask 1043456
        %v2948 = vsel %vm2946, %v2801, 0
        %2950 = vmatprep.subr.mxu0 0.0
        %2951 = vmatpush1.msra.mxu0 %v2800
        %2952 = vmatprep.subr.mxu0 0.0
        %2953 = vmatpush1.msra.mxu0 %v2948
        %2954 = vmatprep.subr.mxu0 0.0
        %2955 = vmatpush1.msra.mxu0 0.0
        %2956 = vmatprep.subr.mxu0 0.0
        %2957 = vmatpush1.msra.mxu0 0.0
        %2958 = vmatprep.subr.mxu0 0.0
        %2959 = vmatpush1.msra.mxu0 0.0
        %2960 = vmatprep.subr.mxu0 0.0
        %2961 = vmatpush1.msra.mxu0 0.0
        %2962 = vmatprep.subr.mxu0 0.0
        %2963 = vmatpush1.msra.mxu0 0.0
        %2964 = vmatprep.subr.mxu0 0.0
        %2965 = vmatpush1.msra.mxu0 0.0
        %2966 = vmatprep.subr.mxu0 0.0
        %2967 = vmatpush1.msra.mxu0 0.0
        %2968 = vmatprep.subr.mxu0 0.0
        %2969 = vmatpush1.msra.mxu0 0.0
        %2970 = vmatprep.subr.mxu0 0.0
        %2971 = vmatpush1.msra.mxu0 0.0
        %2972 = vmatprep.subr.mxu0 0.0
        %2973 = vmatpush1.msra.mxu0 0.0
        %2974 = vmatprep.subr.mxu0 0.0
        %2975 = vmatpush1.msra.mxu0 0.0
        %2976 = vmatprep.subr.mxu0 0.0
        %2977 = vmatpush1.msra.mxu0 0.0
        %2978 = vmatprep.subr.mxu0 0.0
        %2979 = vmatpush1.msra.mxu0 0.0
        %2980 = vmatprep.subr.mxu0 0.0
        %2981 = vmatpush1.msra.mxu0 0.0
        %2982 = vmatprep.subr.mxu0 0.0
        %2983 = vmatpush1.msra.mxu0 0.0
        %2984 = vmatprep.subr.mxu0 0.0
        %2985 = vmatpush1.msra.mxu0 0.0
        %2986 = vmatprep.subr.mxu0 0.0
        %2987 = vmatpush1.msra.mxu0 0.0
        %2988 = vmatprep.subr.mxu0 0.0
        %2989 = vmatpush1.msra.mxu0 0.0
        %2990 = vmatprep.subr.mxu0 0.0
        %2991 = vmatpush1.msra.mxu0 0.0
        %2992 = vmatprep.subr.mxu0 0.0
        %2993 = vmatpush1.msra.mxu0 0.0
        %2994 = vmatprep.subr.mxu0 0.0
        %2995 = vmatpush1.msra.mxu0 0.0
        %2996 = vmatprep.subr.mxu0 0.0
        %2997 = vmatpush1.msra.mxu0 0.0
        %2998 = vmatprep.subr.mxu0 0.0
        %2999 = vmatpush1.msra.mxu0 0.0
        %3000 = vmatprep.subr.mxu0 0.0
        %3001 = vmatpush1.msra.mxu0 0.0
        %3002 = vmatprep.subr.mxu0 0.0
        %3003 = vmatpush1.msra.mxu0 0.0
        %3004 = vmatprep.subr.mxu0 0.0
        %3005 = vmatpush1.msra.mxu0 0.0
        %3006 = vmatprep.subr.mxu0 0.0
        %3007 = vmatpush1.msra.mxu0 0.0
        %3008 = vmatprep.subr.mxu0 0.0
        %3009 = vmatpush1.msra.mxu0 0.0
        %3010 = vmatprep.subr.mxu0 0.0
        %3011 = vmatpush1.msra.mxu0 0.0
        %3012 = vmatprep.subr.mxu0 0.0
        %3013 = vmatpush1.msra.mxu0 0.0
        %3014 = vmatprep.mubr.f32.mxu0 0.0
        %3015 = vmatmul.mubr.f32.gmra.mrb[0].mxu0 %v2803
        %v3016 = vpop.f32.mrb[0].mxu0
        %v3017 = vadd.f32 0.0, %v3016
        %v3018 = vpop.f32.mrb[0].mxu0
        %3019 = vmatprep.mubr.f32.mxu0 0.0
        %3020 = vmatmul.mubr.f32.gmra.mrb[0].mxu0 %v2806
        %v3021 = vpop.f32.mrb[0].mxu0
        %v3022 = vadd.f32 0.0, %v3021
        %v3023 = vpop.f32.mrb[0].mxu0
        %3024 = vmatprep.mubr.f32.mxu0 0.0
        %3025 = vmatmul.mubr.f32.gmra.mrb[0].mxu0 %v2809
        %v3026 = vpop.f32.mrb[0].mxu0
        %v3027 = vadd.f32 0.0, %v3026
        %v3028 = vpop.f32.mrb[0].mxu0
        %3029 = vmatprep.mubr.f32.mxu0 0.0
        %3030 = vmatmul.mubr.f32.gmra.mrb[0].mxu0 %v2812
        %v3031 = vpop.f32.mrb[0].mxu0
        %v3032 = vadd.f32 0.0, %v3031
        %v3033 = vpop.f32.mrb[0].mxu0
        %3034 = vmatprep.mubr.f32.mxu0 0.0
        %3035 = vmatmul.mubr.f32.gmra.mrb[0].mxu0 %v2815
        %v3036 = vpop.f32.mrb[0].mxu0
        %v3037 = vadd.f32 0.0, %v3036
        %v3038 = vpop.f32.mrb[0].mxu0
        %3039 = vmatprep.mubr.f32.mxu0 0.0
        %3040 = vmatmul.mubr.f32.gmra.mrb[0].mxu0 %v2818
        %v3041 = vpop.f32.mrb[0].mxu0
        %v3042 = vadd.f32 0.0, %v3041
        %v3043 = vpop.f32.mrb[0].mxu0
        %3044 = vmatprep.mubr.f32.mxu0 0.0
        %3045 = vmatmul.mubr.f32.gmra.mrb[0].mxu0 %v2821
        %v3046 = vpop.f32.mrb[0].mxu0
        %v3047 = vadd.f32 0.0, %v3046
        %v3048 = vpop.f32.mrb[0].mxu0
        %3049 = vmatprep.mubr.f32.mxu0 0.0
        %3050 = vmatmul.mubr.f32.gmra.mrb[0].mxu0 %v2824
        %v3051 = vpop.f32.mrb[0].mxu0
        %v3052 = vadd.f32 0.0, %v3051
        %v3053 = vpop.f32.mrb[0].mxu0
        %3054 = vmatprep.mubr.f32.mxu0 0.0
        %3055 = vmatmul.mubr.f32.gmra.mrb[0].mxu0 %v2827
        %v3056 = vpop.f32.mrb[0].mxu0
        %v3057 = vadd.f32 0.0, %v3056
        %v3058 = vpop.f32.mrb[0].mxu0
        %3059 = vmatprep.mubr.f32.mxu0 0.0
        %3060 = vmatmul.mubr.f32.gmra.mrb[0].mxu0 %v2830
        %v3061 = vpop.f32.mrb[0].mxu0
        %v3062 = vadd.f32 0.0, %v3061
        %v3063 = vpop.f32.mrb[0].mxu0
        %3064 = vmatprep.mubr.f32.mxu0 0.0
        %3065 = vmatmul.mubr.f32.gmra.mrb[0].mxu0 %v2833
        %v3066 = vpop.f32.mrb[0].mxu0
        %v3067 = vadd.f32 0.0, %v3066
        %v3068 = vpop.f32.mrb[0].mxu0
        %3069 = vmatprep.mubr.f32.mxu0 0.0
        %3070 = vmatmul.mubr.f32.gmra.mrb[0].mxu0 %v2836
        %v3071 = vpop.f32.mrb[0].mxu0
        %v3072 = vadd.f32 0.0, %v3071
        %v3073 = vpop.f32.mrb[0].mxu0
        %3074 = vmatprep.mubr.f32.mxu0 0.0
        %3075 = vmatmul.mubr.f32.gmra.mrb[0].mxu0 %v2839
        %v3076 = vpop.f32.mrb[0].mxu0
        %v3077 = vadd.f32 0.0, %v3076
        %v3078 = vpop.f32.mrb[0].mxu0
        %3079 = vmatprep.mubr.f32.mxu0 0.0
        %3080 = vmatmul.mubr.f32.gmra.mrb[0].mxu0 %v2842
        %v3081 = vpop.f32.mrb[0].mxu0
        %v3082 = vadd.f32 0.0, %v3081
        %v3083 = vpop.f32.mrb[0].mxu0
        %3084 = vmatprep.mubr.f32.mxu0 0.0
        %3085 = vmatmul.mubr.f32.gmra.mrb[0].mxu0 %v2845
        %v3086 = vpop.f32.mrb[0].mxu0
        %v3087 = vadd.f32 0.0, %v3086
        %v3088 = vpop.f32.mrb[0].mxu0
        %3089 = vmatprep.mubr.f32.mxu0 0.0
        %3090 = vmatmul.mubr.f32.gmra.mrb[0].mxu0 %v2848
        %v3091 = vpop.f32.mrb[0].mxu0
        %v3092 = vadd.f32 0.0, %v3091
        %v3093 = vpop.f32.mrb[0].mxu0
        %3094 = vmatprep.mubr.f32.mxu0 0.0
        %3095 = vmatmul.mubr.f32.gmra.mrb[0].mxu0 %v2851
        %v3096 = vpop.f32.mrb[0].mxu0
        %v3097 = vadd.f32 0.0, %v3096
        %v3098 = vpop.f32.mrb[0].mxu0
        %3099 = vmatprep.mubr.f32.mxu0 0.0
        %3100 = vmatmul.mubr.f32.gmra.mrb[0].mxu0 %v2854
        %v3101 = vpop.f32.mrb[0].mxu0
        %v3102 = vadd.f32 0.0, %v3101
        %v3103 = vpop.f32.mrb[0].mxu0
        %3104 = vmatprep.mubr.f32.mxu0 0.0
        %3105 = vmatmul.mubr.f32.gmra.mrb[0].mxu0 %v2857
        %v3106 = vpop.f32.mrb[0].mxu0
        %v3107 = vadd.f32 0.0, %v3106
        %v3108 = vpop.f32.mrb[0].mxu0
        %3109 = vmatprep.mubr.f32.mxu0 0.0
        %3110 = vmatmul.mubr.f32.gmra.mrb[0].mxu0 %v2860
        %v3111 = vpop.f32.mrb[0].mxu0
        %v3112 = vadd.f32 0.0, %v3111
        %v3113 = vpop.f32.mrb[0].mxu0
        %3114 = vmatprep.mubr.f32.mxu0 0.0
        %3115 = vmatmul.mubr.f32.gmra.mrb[0].mxu0 %v2863
        %v3116 = vpop.f32.mrb[0].mxu0
        %v3117 = vadd.f32 0.0, %v3116
        %v3118 = vpop.f32.mrb[0].mxu0
        %3119 = vmatprep.mubr.f32.mxu0 0.0
        %3120 = vmatmul.mubr.f32.gmra.mrb[0].mxu0 %v2866
        %v3121 = vpop.f32.mrb[0].mxu0
        %v3122 = vadd.f32 0.0, %v3121
        %v3123 = vpop.f32.mrb[0].mxu0
        %3124 = vmatprep.mubr.f32.mxu0 0.0
        %3125 = vmatmul.mubr.f32.gmra.mrb[0].mxu0 %v2869
        %v3126 = vpop.f32.mrb[0].mxu0
        %v3127 = vadd.f32 0.0, %v3126
        %v3128 = vpop.f32.mrb[0].mxu0
        %3129 = vmatprep.mubr.f32.mxu0 0.0
        %3130 = vmatmul.mubr.f32.gmra.mrb[0].mxu0 %v2872
        %v3131 = vpop.f32.mrb[0].mxu0
        %v3132 = vadd.f32 0.0, %v3131
        %v3133 = vpop.f32.mrb[0].mxu0
        %3134 = vmatprep.mubr.f32.mxu0 0.0
        %3135 = vmatmul.mubr.f32.gmra.mrb[0].mxu0 %v2875
        %v3136 = vpop.f32.mrb[0].mxu0
        %v3137 = vadd.f32 0.0, %v3136
        %v3138 = vpop.f32.mrb[0].mxu0
        %3139 = vmatprep.mubr.f32.mxu0 0.0
        %3140 = vmatmul.mubr.f32.gmra.mrb[0].mxu0 %v2878
        %v3141 = vpop.f32.mrb[0].mxu0
        %v3142 = vadd.f32 0.0, %v3141
        %v3143 = vpop.f32.mrb[0].mxu0
        %3144 = vmatprep.mubr.f32.mxu0 0.0
        %3145 = vmatmul.mubr.f32.gmra.mrb[0].mxu0 %v2881
        %v3146 = vpop.f32.mrb[0].mxu0
        %v3147 = vadd.f32 0.0, %v3146
        %v3148 = vpop.f32.mrb[0].mxu0
        %3149 = vmatprep.mubr.f32.mxu0 0.0
        %3150 = vmatmul.mubr.f32.gmra.mrb[0].mxu0 %v2884
        %v3151 = vpop.f32.mrb[0].mxu0
        %v3152 = vadd.f32 0.0, %v3151
        %v3153 = vpop.f32.mrb[0].mxu0
        %3154 = vmatprep.mubr.f32.mxu0 0.0
        %3155 = vmatmul.mubr.f32.gmra.mrb[0].mxu0 %v2887
        %v3156 = vpop.f32.mrb[0].mxu0
        %v3157 = vadd.f32 0.0, %v3156
        %v3158 = vpop.f32.mrb[0].mxu0
        %3159 = vmatprep.mubr.f32.mxu0 0.0
        %3160 = vmatmul.mubr.f32.gmra.mrb[0].mxu0 %v2890
        %v3161 = vpop.f32.mrb[0].mxu0
        %v3162 = vadd.f32 0.0, %v3161
        %v3163 = vpop.f32.mrb[0].mxu0
        %3164 = vmatprep.mubr.f32.mxu0 0.0
        %3165 = vmatmul.mubr.f32.gmra.mrb[0].mxu0 %v2893
        %v3166 = vpop.f32.mrb[0].mxu0
        %v3167 = vadd.f32 0.0, %v3166
        %v3168 = vpop.f32.mrb[0].mxu0
        %3169 = vmatprep.mubr.f32.mxu0 0.0
        %3170 = vmatmul.mubr.f32.gmra.mrb[0].mxu0 %v2896
        %v3171 = vpop.f32.mrb[0].mxu0
        %v3172 = vadd.f32 0.0, %v3171
        %v3173 = vpop.f32.mrb[0].mxu0
        %3174 = vmatprep.mubr.f32.mxu0 0.0
        %3175 = vmatmul.mubr.f32.gmra.mrb[0].mxu0 %v2899
        %v3176 = vpop.f32.mrb[0].mxu0
        %v3177 = vadd.f32 0.0, %v3176
        %v3178 = vpop.f32.mrb[0].mxu0
        %3179 = vmatprep.mubr.f32.mxu0 0.0
        %3180 = vmatmul.mubr.f32.gmra.mrb[0].mxu0 %v2902
        %v3181 = vpop.f32.mrb[0].mxu0
        %v3182 = vadd.f32 0.0, %v3181
        %v3183 = vpop.f32.mrb[0].mxu0
        %3184 = vmatprep.mubr.f32.mxu0 0.0
        %3185 = vmatmul.mubr.f32.gmra.mrb[0].mxu0 %v2905
        %v3186 = vpop.f32.mrb[0].mxu0
        %v3187 = vadd.f32 0.0, %v3186
        %v3188 = vpop.f32.mrb[0].mxu0
        %3189 = vmatprep.mubr.f32.mxu0 0.0
        %3190 = vmatmul.mubr.f32.gmra.mrb[0].mxu0 %v2908
        %v3191 = vpop.f32.mrb[0].mxu0
        %v3192 = vadd.f32 0.0, %v3191
        %v3193 = vpop.f32.mrb[0].mxu0
        %3194 = vmatprep.mubr.f32.mxu0 0.0
        %3195 = vmatmul.mubr.f32.gmra.mrb[0].mxu0 %v2911
        %v3196 = vpop.f32.mrb[0].mxu0
        %v3197 = vadd.f32 0.0, %v3196
        %v3198 = vpop.f32.mrb[0].mxu0
        %3199 = vmatprep.mubr.f32.mxu0 0.0
        %3200 = vmatmul.mubr.f32.gmra.mrb[0].mxu0 %v2914
        %v3201 = vpop.f32.mrb[0].mxu0
        %v3202 = vadd.f32 0.0, %v3201
        %v3203 = vpop.f32.mrb[0].mxu0
        %3204 = vmatprep.mubr.f32.mxu0 0.0
        %3205 = vmatmul.mubr.f32.gmra.mrb[0].mxu0 %v2917
        %v3206 = vpop.f32.mrb[0].mxu0
        %v3207 = vadd.f32 0.0, %v3206
        %v3208 = vpop.f32.mrb[0].mxu0
        %3209 = vmatprep.mubr.f32.mxu0 0.0
        %3210 = vmatmul.mubr.f32.gmra.mrb[0].mxu0 %v2920
        %v3211 = vpop.f32.mrb[0].mxu0
        %v3212 = vadd.f32 0.0, %v3211
        %v3213 = vpop.f32.mrb[0].mxu0
        %3214 = vmatprep.mubr.f32.mxu0 0.0
        %3215 = vmatmul.mubr.f32.gmra.mrb[0].mxu0 %v2923
        %v3216 = vpop.f32.mrb[0].mxu0
        %v3217 = vadd.f32 0.0, %v3216
        %v3218 = vpop.f32.mrb[0].mxu0
        %3219 = vmatprep.mubr.f32.mxu0 0.0
        %3220 = vmatmul.mubr.f32.gmra.mrb[0].mxu0 %v2926
        %v3221 = vpop.f32.mrb[0].mxu0
        %v3222 = vadd.f32 0.0, %v3221
        %v3223 = vpop.f32.mrb[0].mxu0
        %3224 = vmatprep.mubr.f32.mxu0 0.0
        %3225 = vmatmul.mubr.f32.gmra.mrb[0].mxu0 %v2929
        %v3226 = vpop.f32.mrb[0].mxu0
        %v3227 = vadd.f32 0.0, %v3226
        %v3228 = vpop.f32.mrb[0].mxu0
        %3229 = vmatprep.mubr.f32.mxu0 0.0
        %3230 = vmatmul.mubr.f32.gmra.mrb[0].mxu0 %v2932
        %v3231 = vpop.f32.mrb[0].mxu0
        %v3232 = vadd.f32 0.0, %v3231
        %v3233 = vpop.f32.mrb[0].mxu0
        %3234 = vmatprep.mubr.f32.mxu0 0.0
        %3235 = vmatmul.mubr.f32.gmra.mrb[0].mxu0 %v2935
        %v3236 = vpop.f32.mrb[0].mxu0
        %v3237 = vadd.f32 0.0, %v3236
        %v3238 = vpop.f32.mrb[0].mxu0
        %3239 = vmatprep.mubr.f32.mxu0 0.0
        %3240 = vmatmul.mubr.f32.gmra.mrb[0].mxu0 %v2938
        %v3241 = vpop.f32.mrb[0].mxu0
        %v3242 = vadd.f32 0.0, %v3241
        %v3243 = vpop.f32.mrb[0].mxu0
        %3244 = vmatprep.mubr.f32.mxu0 0.0
        %3245 = vmatmul.mubr.f32.gmra.mrb[0].mxu0 %v2941
        %v3246 = vpop.f32.mrb[0].mxu0
        %v3247 = vadd.f32 0.0, %v3246
        %v3248 = vpop.f32.mrb[0].mxu0
        %3249 = vmatprep.mubr.f32.mxu0 0.0
        %3250 = vmatmul.mubr.f32.gmra.mrb[0].mxu0 %v2944
        %v3251 = vpop.f32.mrb[0].mxu0
        %v3252 = vadd.f32 0.0, %v3251
        %v3253 = vpop.f32.mrb[0].mxu0
        %3254 = vdwg.mxu0
        %v3256 = vsel %vm2691, %v2746, 0
        %v3259 = vsel %vm2691, %v2747, 0
        %v3262 = vsel %vm2691, %v2748, 0
        %v3265 = vsel %vm2946, %v2795, 0
        %3267 = vmatprep.subr.mxu0 0.0
        %3268 = vmatpush1.msra.mxu0 %v2794
        %3269 = vmatprep.subr.mxu0 0.0
        %3270 = vmatpush1.msra.mxu0 %v3265
        %3271 = vmatprep.subr.mxu0 0.0
        %3272 = vmatpush1.msra.mxu0 0.0
        %3273 = vmatprep.subr.mxu0 0.0
        %3274 = vmatpush1.msra.mxu0 0.0
        %3275 = vmatprep.subr.mxu0 0.0
        %3276 = vmatpush1.msra.mxu0 0.0
        %3277 = vmatprep.subr.mxu0 0.0
        %3278 = vmatpush1.msra.mxu0 0.0
        %3279 = vmatprep.subr.mxu0 0.0
        %3280 = vmatpush1.msra.mxu0 0.0
        %3281 = vmatprep.subr.mxu0 0.0
        %3282 = vmatpush1.msra.mxu0 0.0
        %3283 = vmatprep.subr.mxu0 0.0
        %3284 = vmatpush1.msra.mxu0 0.0
        %3285 = vmatprep.subr.mxu0 0.0
        %3286 = vmatpush1.msra.mxu0 0.0
        %3287 = vmatprep.subr.mxu0 0.0
        %3288 = vmatpush1.msra.mxu0 0.0
        %3289 = vmatprep.subr.mxu0 0.0
        %3290 = vmatpush1.msra.mxu0 0.0
        %3291 = vmatprep.subr.mxu0 0.0
        %3292 = vmatpush1.msra.mxu0 0.0
        %3293 = vmatprep.subr.mxu0 0.0
        %3294 = vmatpush1.msra.mxu0 0.0
        %3295 = vmatprep.subr.mxu0 0.0
        %3296 = vmatpush1.msra.mxu0 0.0
        %3297 = vmatprep.subr.mxu0 0.0
        %3298 = vmatpush1.msra.mxu0 0.0
        %3299 = vmatprep.subr.mxu0 0.0
        %3300 = vmatpush1.msra.mxu0 0.0
        %3301 = vmatprep.subr.mxu0 0.0
        %3302 = vmatpush1.msra.mxu0 0.0
        %3303 = vmatprep.subr.mxu0 0.0
        %3304 = vmatpush1.msra.mxu0 0.0
        %3305 = vmatprep.subr.mxu0 0.0
        %3306 = vmatpush1.msra.mxu0 0.0
        %3307 = vmatprep.subr.mxu0 0.0
        %3308 = vmatpush1.msra.mxu0 0.0
        %3309 = vmatprep.subr.mxu0 0.0
        %3310 = vmatpush1.msra.mxu0 0.0
        %3311 = vmatprep.subr.mxu0 0.0
        %3312 = vmatpush1.msra.mxu0 0.0
        %3313 = vmatprep.subr.mxu0 0.0
        %3314 = vmatpush1.msra.mxu0 0.0
        %3315 = vmatprep.subr.mxu0 0.0
        %3316 = vmatpush1.msra.mxu0 0.0
        %3317 = vmatprep.subr.mxu0 0.0
        %3318 = vmatpush1.msra.mxu0 0.0
        %3319 = vmatprep.subr.mxu0 0.0
        %3320 = vmatpush1.msra.mxu0 0.0
        %3321 = vmatprep.subr.mxu0 0.0
        %3322 = vmatpush1.msra.mxu0 0.0
        %3323 = vmatprep.subr.mxu0 0.0
        %3324 = vmatpush1.msra.mxu0 0.0
        %3325 = vmatprep.subr.mxu0 0.0
        %3326 = vmatpush1.msra.mxu0 0.0
        %3327 = vmatprep.subr.mxu0 0.0
        %3328 = vmatpush1.msra.mxu0 0.0
        %3329 = vmatprep.subr.mxu0 0.0
        %3330 = vmatpush1.msra.mxu0 0.0
        %3331 = vmatprep.mubr.f32.mxu0 0.0
        %3332 = vmatmul.mubr.f32.gmra.mrb[0].mxu0 %v3256
        %v3333 = vpop.f32.mrb[0].mxu0
        %v3334 = vadd.f32 %v3017, %v3333
        %v3335 = vpop.f32.mrb[0].mxu0
        %3336 = vmatprep.mubr.f32.mxu0 0.0
        %3337 = vmatmul.mubr.f32.gmra.mrb[0].mxu0 %v3259
        %v3338 = vpop.f32.mrb[0].mxu0
        %v3339 = vadd.f32 %v3022, %v3338
        %v3340 = vpop.f32.mrb[0].mxu0
        %3341 = vmatprep.mubr.f32.mxu0 0.0
        %3342 = vmatmul.mubr.f32.gmra.mrb[0].mxu0 %v3262
        %v3343 = vpop.f32.mrb[0].mxu0
        %v3344 = vadd.f32 %v3027, %v3343
        %v3345 = vpop.f32.mrb[0].mxu0
        %3346 = vmatprep.mubr.f32.mxu0 0.0
        %3347 = vmatmul.mubr.f32.gmra.mrb[0].mxu0 %v2803
        %v3348 = vpop.f32.mrb[0].mxu0
        %v3349 = vadd.f32 %v3032, %v3348
        %v3350 = vpop.f32.mrb[0].mxu0
        %3351 = vmatprep.mubr.f32.mxu0 0.0
        %3352 = vmatmul.mubr.f32.gmra.mrb[0].mxu0 %v2806
        %v3353 = vpop.f32.mrb[0].mxu0
        %v3354 = vadd.f32 %v3037, %v3353
        %v3355 = vpop.f32.mrb[0].mxu0
        %3356 = vmatprep.mubr.f32.mxu0 0.0
        %3357 = vmatmul.mubr.f32.gmra.mrb[0].mxu0 %v2809
        %v3358 = vpop.f32.mrb[0].mxu0
        %v3359 = vadd.f32 %v3042, %v3358
        %v3360 = vpop.f32.mrb[0].mxu0
        %3361 = vmatprep.mubr.f32.mxu0 0.0
        %3362 = vmatmul.mubr.f32.gmra.mrb[0].mxu0 %v2812
        %v3363 = vpop.f32.mrb[0].mxu0
        %v3364 = vadd.f32 %v3047, %v3363
        %v3365 = vpop.f32.mrb[0].mxu0
        %3366 = vmatprep.mubr.f32.mxu0 0.0
        %3367 = vmatmul.mubr.f32.gmra.mrb[0].mxu0 %v2815
        %v3368 = vpop.f32.mrb[0].mxu0
        %v3369 = vadd.f32 %v3052, %v3368
        %v3370 = vpop.f32.mrb[0].mxu0
        %3371 = vmatprep.mubr.f32.mxu0 0.0
        %3372 = vmatmul.mubr.f32.gmra.mrb[0].mxu0 %v2818
        %v3373 = vpop.f32.mrb[0].mxu0
        %v3374 = vadd.f32 %v3057, %v3373
        %v3375 = vpop.f32.mrb[0].mxu0
        %3376 = vmatprep.mubr.f32.mxu0 0.0
        %3377 = vmatmul.mubr.f32.gmra.mrb[0].mxu0 %v2821
        %v3378 = vpop.f32.mrb[0].mxu0
        %v3379 = vadd.f32 %v3062, %v3378
        %v3380 = vpop.f32.mrb[0].mxu0
        %3381 = vmatprep.mubr.f32.mxu0 0.0
        %3382 = vmatmul.mubr.f32.gmra.mrb[0].mxu0 %v2824
        %v3383 = vpop.f32.mrb[0].mxu0
        %v3384 = vadd.f32 %v3067, %v3383
        %v3385 = vpop.f32.mrb[0].mxu0
        %3386 = vmatprep.mubr.f32.mxu0 0.0
        %3387 = vmatmul.mubr.f32.gmra.mrb[0].mxu0 %v2827
        %v3388 = vpop.f32.mrb[0].mxu0
        %v3389 = vadd.f32 %v3072, %v3388
        %v3390 = vpop.f32.mrb[0].mxu0
        %3391 = vmatprep.mubr.f32.mxu0 0.0
        %3392 = vmatmul.mubr.f32.gmra.mrb[0].mxu0 %v2830
        %v3393 = vpop.f32.mrb[0].mxu0
        %v3394 = vadd.f32 %v3077, %v3393
        %v3395 = vpop.f32.mrb[0].mxu0
        %3396 = vmatprep.mubr.f32.mxu0 0.0
        %3397 = vmatmul.mubr.f32.gmra.mrb[0].mxu0 %v2833
        %v3398 = vpop.f32.mrb[0].mxu0
        %v3399 = vadd.f32 %v3082, %v3398
        %v3400 = vpop.f32.mrb[0].mxu0
        %3401 = vmatprep.mubr.f32.mxu0 0.0
        %3402 = vmatmul.mubr.f32.gmra.mrb[0].mxu0 %v2836
        %v3403 = vpop.f32.mrb[0].mxu0
        %v3404 = vadd.f32 %v3087, %v3403
        %v3405 = vpop.f32.mrb[0].mxu0
        %3406 = vmatprep.mubr.f32.mxu0 0.0
        %3407 = vmatmul.mubr.f32.gmra.mrb[0].mxu0 %v2839
        %v3408 = vpop.f32.mrb[0].mxu0
        %v3409 = vadd.f32 %v3092, %v3408
        %v3410 = vpop.f32.mrb[0].mxu0
        %3411 = vmatprep.mubr.f32.mxu0 0.0
        %3412 = vmatmul.mubr.f32.gmra.mrb[0].mxu0 %v2842
        %v3413 = vpop.f32.mrb[0].mxu0
        %v3414 = vadd.f32 %v3097, %v3413
        %v3415 = vpop.f32.mrb[0].mxu0
        %3416 = vmatprep.mubr.f32.mxu0 0.0
        %3417 = vmatmul.mubr.f32.gmra.mrb[0].mxu0 %v2845
        %v3418 = vpop.f32.mrb[0].mxu0
        %v3419 = vadd.f32 %v3102, %v3418
        %v3420 = vpop.f32.mrb[0].mxu0
        %3421 = vmatprep.mubr.f32.mxu0 0.0
        %3422 = vmatmul.mubr.f32.gmra.mrb[0].mxu0 %v2848
        %v3423 = vpop.f32.mrb[0].mxu0
        %v3424 = vadd.f32 %v3107, %v3423
        %v3425 = vpop.f32.mrb[0].mxu0
        %3426 = vmatprep.mubr.f32.mxu0 0.0
        %3427 = vmatmul.mubr.f32.gmra.mrb[0].mxu0 %v2851
        %v3428 = vpop.f32.mrb[0].mxu0
        %v3429 = vadd.f32 %v3112, %v3428
        %v3430 = vpop.f32.mrb[0].mxu0
        %3431 = vmatprep.mubr.f32.mxu0 0.0
        %3432 = vmatmul.mubr.f32.gmra.mrb[0].mxu0 %v2854
        %v3433 = vpop.f32.mrb[0].mxu0
        %v3434 = vadd.f32 %v3117, %v3433
        %v3435 = vpop.f32.mrb[0].mxu0
        %3436 = vmatprep.mubr.f32.mxu0 0.0
        %3437 = vmatmul.mubr.f32.gmra.mrb[0].mxu0 %v2857
        %v3438 = vpop.f32.mrb[0].mxu0
        %v3439 = vadd.f32 %v3122, %v3438
        %v3440 = vpop.f32.mrb[0].mxu0
        %3441 = vmatprep.mubr.f32.mxu0 0.0
        %3442 = vmatmul.mubr.f32.gmra.mrb[0].mxu0 %v2860
        %v3443 = vpop.f32.mrb[0].mxu0
        %v3444 = vadd.f32 %v3127, %v3443
        %v3445 = vpop.f32.mrb[0].mxu0
        %3446 = vmatprep.mubr.f32.mxu0 0.0
        %3447 = vmatmul.mubr.f32.gmra.mrb[0].mxu0 %v2863
        %v3448 = vpop.f32.mrb[0].mxu0
        %v3449 = vadd.f32 %v3132, %v3448
        %v3450 = vpop.f32.mrb[0].mxu0
        %3451 = vmatprep.mubr.f32.mxu0 0.0
        %3452 = vmatmul.mubr.f32.gmra.mrb[0].mxu0 %v2866
        %v3453 = vpop.f32.mrb[0].mxu0
        %v3454 = vadd.f32 %v3137, %v3453
        %v3455 = vpop.f32.mrb[0].mxu0
        %3456 = vmatprep.mubr.f32.mxu0 0.0
        %3457 = vmatmul.mubr.f32.gmra.mrb[0].mxu0 %v2869
        %v3458 = vpop.f32.mrb[0].mxu0
        %v3459 = vadd.f32 %v3142, %v3458
        %v3460 = vpop.f32.mrb[0].mxu0
        %3461 = vmatprep.mubr.f32.mxu0 0.0
        %3462 = vmatmul.mubr.f32.gmra.mrb[0].mxu0 %v2872
        %v3463 = vpop.f32.mrb[0].mxu0
        %v3464 = vadd.f32 %v3147, %v3463
        %v3465 = vpop.f32.mrb[0].mxu0
        %3466 = vmatprep.mubr.f32.mxu0 0.0
        %3467 = vmatmul.mubr.f32.gmra.mrb[0].mxu0 %v2875
        %v3468 = vpop.f32.mrb[0].mxu0
        %v3469 = vadd.f32 %v3152, %v3468
        %v3470 = vpop.f32.mrb[0].mxu0
        %3471 = vmatprep.mubr.f32.mxu0 0.0
        %3472 = vmatmul.mubr.f32.gmra.mrb[0].mxu0 %v2878
        %v3473 = vpop.f32.mrb[0].mxu0
        %v3474 = vadd.f32 %v3157, %v3473
        %v3475 = vpop.f32.mrb[0].mxu0
        %3476 = vmatprep.mubr.f32.mxu0 0.0
        %3477 = vmatmul.mubr.f32.gmra.mrb[0].mxu0 %v2881
        %v3478 = vpop.f32.mrb[0].mxu0
        %v3479 = vadd.f32 %v3162, %v3478
        %v3480 = vpop.f32.mrb[0].mxu0
        %3481 = vmatprep.mubr.f32.mxu0 0.0
        %3482 = vmatmul.mubr.f32.gmra.mrb[0].mxu0 %v2884
        %v3483 = vpop.f32.mrb[0].mxu0
        %v3484 = vadd.f32 %v3167, %v3483
        %v3485 = vpop.f32.mrb[0].mxu0
        %3486 = vmatprep.mubr.f32.mxu0 0.0
        %3487 = vmatmul.mubr.f32.gmra.mrb[0].mxu0 %v2887
        %v3488 = vpop.f32.mrb[0].mxu0
        %v3489 = vadd.f32 %v3172, %v3488
        %v3490 = vpop.f32.mrb[0].mxu0
        %3491 = vmatprep.mubr.f32.mxu0 0.0
        %3492 = vmatmul.mubr.f32.gmra.mrb[0].mxu0 %v2890
        %v3493 = vpop.f32.mrb[0].mxu0
        %v3494 = vadd.f32 %v3177, %v3493
        %v3495 = vpop.f32.mrb[0].mxu0
        %3496 = vmatprep.mubr.f32.mxu0 0.0
        %3497 = vmatmul.mubr.f32.gmra.mrb[0].mxu0 %v2893
        %v3498 = vpop.f32.mrb[0].mxu0
        %v3499 = vadd.f32 %v3182, %v3498
        %v3500 = vpop.f32.mrb[0].mxu0
        %3501 = vmatprep.mubr.f32.mxu0 0.0
        %3502 = vmatmul.mubr.f32.gmra.mrb[0].mxu0 %v2896
        %v3503 = vpop.f32.mrb[0].mxu0
        %v3504 = vadd.f32 %v3187, %v3503
        %v3505 = vpop.f32.mrb[0].mxu0
        %3506 = vmatprep.mubr.f32.mxu0 0.0
        %3507 = vmatmul.mubr.f32.gmra.mrb[0].mxu0 %v2899
        %v3508 = vpop.f32.mrb[0].mxu0
        %v3509 = vadd.f32 %v3192, %v3508
        %v3510 = vpop.f32.mrb[0].mxu0
        %3511 = vmatprep.mubr.f32.mxu0 0.0
        %3512 = vmatmul.mubr.f32.gmra.mrb[0].mxu0 %v2902
        %v3513 = vpop.f32.mrb[0].mxu0
        %v3514 = vadd.f32 %v3197, %v3513
        %v3515 = vpop.f32.mrb[0].mxu0
        %3516 = vmatprep.mubr.f32.mxu0 0.0
        %3517 = vmatmul.mubr.f32.gmra.mrb[0].mxu0 %v2905
        %v3518 = vpop.f32.mrb[0].mxu0
        %v3519 = vadd.f32 %v3202, %v3518
        %v3520 = vpop.f32.mrb[0].mxu0
        %3521 = vmatprep.mubr.f32.mxu0 0.0
        %3522 = vmatmul.mubr.f32.gmra.mrb[0].mxu0 %v2908
        %v3523 = vpop.f32.mrb[0].mxu0
        %v3524 = vadd.f32 %v3207, %v3523
        %v3525 = vpop.f32.mrb[0].mxu0
        %3526 = vmatprep.mubr.f32.mxu0 0.0
        %3527 = vmatmul.mubr.f32.gmra.mrb[0].mxu0 %v2911
        %v3528 = vpop.f32.mrb[0].mxu0
        %v3529 = vadd.f32 %v3212, %v3528
        %v3530 = vpop.f32.mrb[0].mxu0
        %3531 = vmatprep.mubr.f32.mxu0 0.0
        %3532 = vmatmul.mubr.f32.gmra.mrb[0].mxu0 %v2914
        %v3533 = vpop.f32.mrb[0].mxu0
        %v3534 = vadd.f32 %v3217, %v3533
        %v3535 = vpop.f32.mrb[0].mxu0
        %3536 = vmatprep.mubr.f32.mxu0 0.0
        %3537 = vmatmul.mubr.f32.gmra.mrb[0].mxu0 %v2917
        %v3538 = vpop.f32.mrb[0].mxu0
        %v3539 = vadd.f32 %v3222, %v3538
        %v3540 = vpop.f32.mrb[0].mxu0
        %3541 = vmatprep.mubr.f32.mxu0 0.0
        %3542 = vmatmul.mubr.f32.gmra.mrb[0].mxu0 %v2920
        %v3543 = vpop.f32.mrb[0].mxu0
        %v3544 = vadd.f32 %v3227, %v3543
        %v3545 = vpop.f32.mrb[0].mxu0
        %3546 = vmatprep.mubr.f32.mxu0 0.0
        %3547 = vmatmul.mubr.f32.gmra.mrb[0].mxu0 %v2923
        %v3548 = vpop.f32.mrb[0].mxu0
        %v3549 = vadd.f32 %v3232, %v3548
        %v3550 = vpop.f32.mrb[0].mxu0
        %3551 = vmatprep.mubr.f32.mxu0 0.0
        %3552 = vmatmul.mubr.f32.gmra.mrb[0].mxu0 %v2926
        %v3553 = vpop.f32.mrb[0].mxu0
        %v3554 = vadd.f32 %v3237, %v3553
        %v3555 = vpop.f32.mrb[0].mxu0
        %3556 = vmatprep.mubr.f32.mxu0 0.0
        %3557 = vmatmul.mubr.f32.gmra.mrb[0].mxu0 %v2929
        %v3558 = vpop.f32.mrb[0].mxu0
        %v3559 = vadd.f32 %v3242, %v3558
        %v3560 = vpop.f32.mrb[0].mxu0
        %3561 = vmatprep.mubr.f32.mxu0 0.0
        %3562 = vmatmul.mubr.f32.gmra.mrb[0].mxu0 %v2932
        %v3563 = vpop.f32.mrb[0].mxu0
        %v3564 = vadd.f32 %v3247, %v3563
        %v3565 = vpop.f32.mrb[0].mxu0
        %3566 = vmatprep.mubr.f32.mxu0 0.0
        %3567 = vmatmul.mubr.f32.gmra.mrb[0].mxu0 %v2935
        %v3568 = vpop.f32.mrb[0].mxu0
        %v3569 = vadd.f32 %v3252, %v3568
        %v3570 = vpop.f32.mrb[0].mxu0
        %3571 = vdwg.mxu0
        %v3572 = vld [vmem:[#allocation2 + $0x30] sm:$0xff]
        %v3573 = vld [vmem:[#allocation2 + $0x38] sm:$0xff]
        %v3574 = vld [vmem:[#allocation2 + $0x40] sm:$0xff]
        %v3575 = vld [vmem:[#allocation2 + $0x48] sm:$0xff]
        %v3576 = vld [vmem:[#allocation2 + $0x50] sm:$0xff]
        %v3577 = vld [vmem:[#allocation2 + $0x58] sm:$0xff]
        %v3578 = vld [vmem:[#allocation2 + $0x60] sm:$0xff]
        %v3579 = vld [vmem:[#allocation2 + $0x68] sm:$0xff]
        %v3580 = vld [vmem:[#allocation2 + $0x70] sm:$0xff]
        %v3581 = vld [vmem:[#allocation2 + $0x78] sm:$0xff]
        %v3582 = vld [vmem:[#allocation2 + $0x80] sm:$0xff]
        %v3583 = vld [vmem:[#allocation2 + $0x88] sm:$0xff]
        %v3584 = vld [vmem:[#allocation2 + $0x90] sm:$0xff]
        %v3585 = vld [vmem:[#allocation2 + $0x98] sm:$0xff]
        %v3586 = vld [vmem:[#allocation2 + $0xa0] sm:$0xff]
        %v3587 = vld [vmem:[#allocation2 + $0xa8] sm:$0xff]
        %v3588 = vld [vmem:[#allocation2 + $0xb0] sm:$0xff]
        %v3589 = vld [vmem:[#allocation2 + $0xb8] sm:$0xff]
        %v3590 = vld [vmem:[#allocation2 + $0xc0] sm:$0xff]
        %v3591 = vld [vmem:[#allocation2 + $0xc8] sm:$0xff]
        %v3592 = vld [vmem:[#allocation2 + $0xd0] sm:$0xff]
        %v3593 = vld [vmem:[#allocation2 + $0xd8] sm:$0xff]
        %v3594 = vld [vmem:[#allocation2 + $0xe0] sm:$0xff]
        %v3595 = vld [vmem:[#allocation2 + $0xe8] sm:$0xff]
        %v3596 = vld [vmem:[#allocation2 + $0xf0] sm:$0xff]
        %v3597 = vld [vmem:[#allocation2 + $0xf8] sm:$0xff]
        %v3598 = vld [vmem:[#allocation2 + $0x100] sm:$0xff]
        %v3599 = vld [vmem:[#allocation2 + $0x108] sm:$0xff]
        %v3600 = vld [vmem:[#allocation2 + $0x110] sm:$0xff]
        %v3601 = vld [vmem:[#allocation2 + $0x118] sm:$0xff]
        %v3602 = vld [vmem:[#allocation2 + $0x120] sm:$0xff]
        %v3603 = vld [vmem:[#allocation2 + $0x128] sm:$0xff]
        %v3604 = vld [vmem:[#allocation2 + $0x130] sm:$0xff]
        %v3605 = vld [vmem:[#allocation2 + $0x138] sm:$0xff]
        %v3606 = vld [vmem:[#allocation2 + $0x140] sm:$0xff]
        %v3607 = vld [vmem:[#allocation2 + $0x148] sm:$0xff]
        %v3608 = vld [vmem:[#allocation2 + $0x150] sm:$0xff]
        %v3609 = vld [vmem:[#allocation2 + $0x158] sm:$0xff]
        %v3610 = vld [vmem:[#allocation2 + $0x160] sm:$0xff]
        %v3611 = vld [vmem:[#allocation2 + $0x168] sm:$0xff]
        %v3612 = vld [vmem:[#allocation2 + $0x170] sm:$0xff]
        %v3613 = vld [vmem:[#allocation2 + $0x178] sm:$0xff]
        %v3614 = vld [vmem:[#allocation2 + $0x180] sm:$0xff]
        %v3615 = vld [vmem:[#allocation2 + $0x188] sm:$0xff]
        %v3616 = vld [vmem:[#allocation2 + $0x190] sm:$0xff]
        %v3617 = vld [vmem:[#allocation2 + $0x198] sm:$0xff]
        %v3618 = vld [vmem:[#allocation2 + $0x1a0] sm:$0xff]
        %v3619 = vld [vmem:[#allocation2 + $0x1a8] sm:$0xff]
        %s3620 = scalar_lea.vmem [#allocation9], 32
        %v3621 = vld [vmem:[%s3620] sm:$0xff]
        %v3622 = vld [vmem:[%s3620 + $0x8] sm:$0xf]
        %v3624 = vsel %vm2691, %v3572, 0
        %v3627 = vsel %vm2691, %v3573, 0
        %v3630 = vsel %vm2691, %v3574, 0
        %v3633 = vsel %vm2691, %v3575, 0
        %v3636 = vsel %vm2691, %v3576, 0
        %v3639 = vsel %vm2691, %v3577, 0
        %v3642 = vsel %vm2691, %v3578, 0
        %v3645 = vsel %vm2691, %v3579, 0
        %v3648 = vsel %vm2691, %v3580, 0
        %v3651 = vsel %vm2691, %v3581, 0
        %v3654 = vsel %vm2691, %v3582, 0
        %v3657 = vsel %vm2691, %v3583, 0
        %v3660 = vsel %vm2691, %v3584, 0
        %v3663 = vsel %vm2691, %v3585, 0
        %v3666 = vsel %vm2691, %v3586, 0
        %v3669 = vsel %vm2691, %v3587, 0
        %v3672 = vsel %vm2691, %v3588, 0
        %v3675 = vsel %vm2691, %v3589, 0
        %v3678 = vsel %vm2691, %v3590, 0
        %v3681 = vsel %vm2691, %v3591, 0
        %v3684 = vsel %vm2691, %v3592, 0
        %v3687 = vsel %vm2691, %v3593, 0
        %v3690 = vsel %vm2691, %v3594, 0
        %v3693 = vsel %vm2691, %v3595, 0
        %v3696 = vsel %vm2691, %v3596, 0
        %v3699 = vsel %vm2691, %v3597, 0
        %v3702 = vsel %vm2691, %v3598, 0
        %v3705 = vsel %vm2691, %v3599, 0
        %v3708 = vsel %vm2691, %v3600, 0
        %v3711 = vsel %vm2691, %v3601, 0
        %v3714 = vsel %vm2691, %v3602, 0
        %v3717 = vsel %vm2691, %v3603, 0
        %v3720 = vsel %vm2691, %v3604, 0
        %v3723 = vsel %vm2691, %v3605, 0
        %v3726 = vsel %vm2691, %v3606, 0
        %v3729 = vsel %vm2691, %v3607, 0
        %v3732 = vsel %vm2691, %v3608, 0
        %v3735 = vsel %vm2691, %v3609, 0
        %v3738 = vsel %vm2691, %v3610, 0
        %v3741 = vsel %vm2691, %v3611, 0
        %v3744 = vsel %vm2691, %v3612, 0
        %v3747 = vsel %vm2691, %v3613, 0
        %v3750 = vsel %vm2691, %v3614, 0
        %v3753 = vsel %vm2691, %v3615, 0
        %v3756 = vsel %vm2691, %v3616, 0
        %v3759 = vsel %vm2691, %v3617, 0
        %v3762 = vsel %vm2691, %v3618, 0
        %v3765 = vsel %vm2691, %v3619, 0
        %v3768 = vsel %vm2946, %v3622, 0
        %3770 = vmatprep.subr.mxu0 0.0
        %3771 = vmatpush1.msra.mxu0 %v3621
        %3772 = vmatprep.subr.mxu0 0.0
        %3773 = vmatpush1.msra.mxu0 %v3768
        %3774 = vmatprep.subr.mxu0 0.0
        %3775 = vmatpush1.msra.mxu0 0.0
        %3776 = vmatprep.subr.mxu0 0.0
        %3777 = vmatpush1.msra.mxu0 0.0
        %3778 = vmatprep.subr.mxu0 0.0
        %3779 = vmatpush1.msra.mxu0 0.0
        %3780 = vmatprep.subr.mxu0 0.0
        %3781 = vmatpush1.msra.mxu0 0.0
        %3782 = vmatprep.subr.mxu0 0.0
        %3783 = vmatpush1.msra.mxu0 0.0
        %3784 = vmatprep.subr.mxu0 0.0
        %3785 = vmatpush1.msra.mxu0 0.0
        %3786 = vmatprep.subr.mxu0 0.0
        %3787 = vmatpush1.msra.mxu0 0.0
        %3788 = vmatprep.subr.mxu0 0.0
        %3789 = vmatpush1.msra.mxu0 0.0
        %3790 = vmatprep.subr.mxu0 0.0
        %3791 = vmatpush1.msra.mxu0 0.0
        %3792 = vmatprep.subr.mxu0 0.0
        %3793 = vmatpush1.msra.mxu0 0.0
        %3794 = vmatprep.subr.mxu0 0.0
        %3795 = vmatpush1.msra.mxu0 0.0
        %3796 = vmatprep.subr.mxu0 0.0
        %3797 = vmatpush1.msra.mxu0 0.0
        %3798 = vmatprep.subr.mxu0 0.0
        %3799 = vmatpush1.msra.mxu0 0.0
        %3800 = vmatprep.subr.mxu0 0.0
        %3801 = vmatpush1.msra.mxu0 0.0
        %3802 = vmatprep.subr.mxu0 0.0
        %3803 = vmatpush1.msra.mxu0 0.0
        %3804 = vmatprep.subr.mxu0 0.0
        %3805 = vmatpush1.msra.mxu0 0.0
        %3806 = vmatprep.subr.mxu0 0.0
        %3807 = vmatpush1.msra.mxu0 0.0
        %3808 = vmatprep.subr.mxu0 0.0
        %3809 = vmatpush1.msra.mxu0 0.0
        %3810 = vmatprep.subr.mxu0 0.0
        %3811 = vmatpush1.msra.mxu0 0.0
        %3812 = vmatprep.subr.mxu0 0.0
        %3813 = vmatpush1.msra.mxu0 0.0
        %3814 = vmatprep.subr.mxu0 0.0
        %3815 = vmatpush1.msra.mxu0 0.0
        %3816 = vmatprep.subr.mxu0 0.0
        %3817 = vmatpush1.msra.mxu0 0.0
        %3818 = vmatprep.subr.mxu0 0.0
        %3819 = vmatpush1.msra.mxu0 0.0
        %3820 = vmatprep.subr.mxu0 0.0
        %3821 = vmatpush1.msra.mxu0 0.0
        %3822 = vmatprep.subr.mxu0 0.0
        %3823 = vmatpush1.msra.mxu0 0.0
        %3824 = vmatprep.subr.mxu0 0.0
        %3825 = vmatpush1.msra.mxu0 0.0
        %3826 = vmatprep.subr.mxu0 0.0
        %3827 = vmatpush1.msra.mxu0 0.0
        %3828 = vmatprep.subr.mxu0 0.0
        %3829 = vmatpush1.msra.mxu0 0.0
        %3830 = vmatprep.subr.mxu0 0.0
        %3831 = vmatpush1.msra.mxu0 0.0
        %3832 = vmatprep.subr.mxu0 0.0
        %3833 = vmatpush1.msra.mxu0 0.0
        %3834 = vmatprep.mubr.f32.mxu0 0.0
        %3835 = vmatmul.mubr.f32.gmra.mrb[0].mxu0 %v3624
        %v3836 = vpop.f32.mrb[0].mxu0
        %v3837 = vadd.f32 0.0, %v3836
        %v3838 = vpop.f32.mrb[0].mxu0
        %3839 = vmatprep.mubr.f32.mxu0 0.0
        %3840 = vmatmul.mubr.f32.gmra.mrb[0].mxu0 %v3627
        %v3841 = vpop.f32.mrb[0].mxu0
        %v3842 = vadd.f32 0.0, %v3841
        %v3843 = vpop.f32.mrb[0].mxu0
        %3844 = vmatprep.mubr.f32.mxu0 0.0
        %3845 = vmatmul.mubr.f32.gmra.mrb[0].mxu0 %v3630
        %v3846 = vpop.f32.mrb[0].mxu0
        %v3847 = vadd.f32 0.0, %v3846
        %v3848 = vpop.f32.mrb[0].mxu0
        %3849 = vmatprep.mubr.f32.mxu0 0.0
        %3850 = vmatmul.mubr.f32.gmra.mrb[0].mxu0 %v3633
        %v3851 = vpop.f32.mrb[0].mxu0
        %v3852 = vadd.f32 0.0, %v3851
        %v3853 = vpop.f32.mrb[0].mxu0
        %3854 = vmatprep.mubr.f32.mxu0 0.0
        %3855 = vmatmul.mubr.f32.gmra.mrb[0].mxu0 %v3636
        %v3856 = vpop.f32.mrb[0].mxu0
        %v3857 = vadd.f32 0.0, %v3856
        %v3858 = vpop.f32.mrb[0].mxu0
        %3859 = vmatprep.mubr.f32.mxu0 0.0
        %3860 = vmatmul.mubr.f32.gmra.mrb[0].mxu0 %v3639
        %v3861 = vpop.f32.mrb[0].mxu0
        %v3862 = vadd.f32 0.0, %v3861
        %v3863 = vpop.f32.mrb[0].mxu0
        %3864 = vmatprep.mubr.f32.mxu0 0.0
        %3865 = vmatmul.mubr.f32.gmra.mrb[0].mxu0 %v3642
        %v3866 = vpop.f32.mrb[0].mxu0
        %v3867 = vadd.f32 0.0, %v3866
        %v3868 = vpop.f32.mrb[0].mxu0
        %3869 = vmatprep.mubr.f32.mxu0 0.0
        %3870 = vmatmul.mubr.f32.gmra.mrb[0].mxu0 %v3645
        %v3871 = vpop.f32.mrb[0].mxu0
        %v3872 = vadd.f32 0.0, %v3871
        %v3873 = vpop.f32.mrb[0].mxu0
        %3874 = vmatprep.mubr.f32.mxu0 0.0
        %3875 = vmatmul.mubr.f32.gmra.mrb[0].mxu0 %v3648
        %v3876 = vpop.f32.mrb[0].mxu0
        %v3877 = vadd.f32 0.0, %v3876
        %v3878 = vpop.f32.mrb[0].mxu0
        %3879 = vmatprep.mubr.f32.mxu0 0.0
        %3880 = vmatmul.mubr.f32.gmra.mrb[0].mxu0 %v3651
        %v3881 = vpop.f32.mrb[0].mxu0
        %v3882 = vadd.f32 0.0, %v3881
        %v3883 = vpop.f32.mrb[0].mxu0
        %3884 = vmatprep.mubr.f32.mxu0 0.0
        %3885 = vmatmul.mubr.f32.gmra.mrb[0].mxu0 %v3654
        %v3886 = vpop.f32.mrb[0].mxu0
        %v3887 = vadd.f32 0.0, %v3886
        %v3888 = vpop.f32.mrb[0].mxu0
        %3889 = vmatprep.mubr.f32.mxu0 0.0
        %3890 = vmatmul.mubr.f32.gmra.mrb[0].mxu0 %v3657
        %v3891 = vpop.f32.mrb[0].mxu0
        %v3892 = vadd.f32 0.0, %v3891
        %v3893 = vpop.f32.mrb[0].mxu0
        %3894 = vmatprep.mubr.f32.mxu0 0.0
        %3895 = vmatmul.mubr.f32.gmra.mrb[0].mxu0 %v3660
        %v3896 = vpop.f32.mrb[0].mxu0
        %v3897 = vadd.f32 0.0, %v3896
        %v3898 = vpop.f32.mrb[0].mxu0
        %3899 = vmatprep.mubr.f32.mxu0 0.0
        %3900 = vmatmul.mubr.f32.gmra.mrb[0].mxu0 %v3663
        %v3901 = vpop.f32.mrb[0].mxu0
        %v3902 = vadd.f32 0.0, %v3901
        %v3903 = vpop.f32.mrb[0].mxu0
        %3904 = vmatprep.mubr.f32.mxu0 0.0
        %3905 = vmatmul.mubr.f32.gmra.mrb[0].mxu0 %v3666
        %v3906 = vpop.f32.mrb[0].mxu0
        %v3907 = vadd.f32 0.0, %v3906
        %v3908 = vpop.f32.mrb[0].mxu0
        %3909 = vmatprep.mubr.f32.mxu0 0.0
        %3910 = vmatmul.mubr.f32.gmra.mrb[0].mxu0 %v3669
        %v3911 = vpop.f32.mrb[0].mxu0
        %v3912 = vadd.f32 0.0, %v3911
        %v3913 = vpop.f32.mrb[0].mxu0
        %3914 = vmatprep.mubr.f32.mxu0 0.0
        %3915 = vmatmul.mubr.f32.gmra.mrb[0].mxu0 %v3672
        %v3916 = vpop.f32.mrb[0].mxu0
        %v3917 = vadd.f32 0.0, %v3916
        %v3918 = vpop.f32.mrb[0].mxu0
        %3919 = vmatprep.mubr.f32.mxu0 0.0
        %3920 = vmatmul.mubr.f32.gmra.mrb[0].mxu0 %v3675
        %v3921 = vpop.f32.mrb[0].mxu0
        %v3922 = vadd.f32 0.0, %v3921
        %v3923 = vpop.f32.mrb[0].mxu0
        %3924 = vmatprep.mubr.f32.mxu0 0.0
        %3925 = vmatmul.mubr.f32.gmra.mrb[0].mxu0 %v3678
        %v3926 = vpop.f32.mrb[0].mxu0
        %v3927 = vadd.f32 0.0, %v3926
        %v3928 = vpop.f32.mrb[0].mxu0
        %3929 = vmatprep.mubr.f32.mxu0 0.0
        %3930 = vmatmul.mubr.f32.gmra.mrb[0].mxu0 %v3681
        %v3931 = vpop.f32.mrb[0].mxu0
        %v3932 = vadd.f32 0.0, %v3931
        %v3933 = vpop.f32.mrb[0].mxu0
        %3934 = vmatprep.mubr.f32.mxu0 0.0
        %3935 = vmatmul.mubr.f32.gmra.mrb[0].mxu0 %v3684
        %v3936 = vpop.f32.mrb[0].mxu0
        %v3937 = vadd.f32 0.0, %v3936
        %v3938 = vpop.f32.mrb[0].mxu0
        %3939 = vmatprep.mubr.f32.mxu0 0.0
        %3940 = vmatmul.mubr.f32.gmra.mrb[0].mxu0 %v3687
        %v3941 = vpop.f32.mrb[0].mxu0
        %v3942 = vadd.f32 0.0, %v3941
        %v3943 = vpop.f32.mrb[0].mxu0
        %3944 = vmatprep.mubr.f32.mxu0 0.0
        %3945 = vmatmul.mubr.f32.gmra.mrb[0].mxu0 %v3690
        %v3946 = vpop.f32.mrb[0].mxu0
        %v3947 = vadd.f32 0.0, %v3946
        %v3948 = vpop.f32.mrb[0].mxu0
        %3949 = vmatprep.mubr.f32.mxu0 0.0
        %3950 = vmatmul.mubr.f32.gmra.mrb[0].mxu0 %v3693
        %v3951 = vpop.f32.mrb[0].mxu0
        %v3952 = vadd.f32 0.0, %v3951
        %v3953 = vpop.f32.mrb[0].mxu0
        %3954 = vmatprep.mubr.f32.mxu0 0.0
        %3955 = vmatmul.mubr.f32.gmra.mrb[0].mxu0 %v3696
        %v3956 = vpop.f32.mrb[0].mxu0
        %v3957 = vadd.f32 0.0, %v3956
        %v3958 = vpop.f32.mrb[0].mxu0
        %3959 = vmatprep.mubr.f32.mxu0 0.0
        %3960 = vmatmul.mubr.f32.gmra.mrb[0].mxu0 %v3699
        %v3961 = vpop.f32.mrb[0].mxu0
        %v3962 = vadd.f32 0.0, %v3961
        %v3963 = vpop.f32.mrb[0].mxu0
        %3964 = vmatprep.mubr.f32.mxu0 0.0
        %3965 = vmatmul.mubr.f32.gmra.mrb[0].mxu0 %v3702
        %v3966 = vpop.f32.mrb[0].mxu0
        %v3967 = vadd.f32 0.0, %v3966
        %v3968 = vpop.f32.mrb[0].mxu0
        %3969 = vmatprep.mubr.f32.mxu0 0.0
        %3970 = vmatmul.mubr.f32.gmra.mrb[0].mxu0 %v3705
        %v3971 = vpop.f32.mrb[0].mxu0
        %v3972 = vadd.f32 0.0, %v3971
        %v3973 = vpop.f32.mrb[0].mxu0
        %3974 = vmatprep.mubr.f32.mxu0 0.0
        %3975 = vmatmul.mubr.f32.gmra.mrb[0].mxu0 %v3708
        %v3976 = vpop.f32.mrb[0].mxu0
        %v3977 = vadd.f32 0.0, %v3976
        %v3978 = vpop.f32.mrb[0].mxu0
        %3979 = vmatprep.mubr.f32.mxu0 0.0
        %3980 = vmatmul.mubr.f32.gmra.mrb[0].mxu0 %v3711
        %v3981 = vpop.f32.mrb[0].mxu0
        %v3982 = vadd.f32 0.0, %v3981
        %v3983 = vpop.f32.mrb[0].mxu0
        %3984 = vmatprep.mubr.f32.mxu0 0.0
        %3985 = vmatmul.mubr.f32.gmra.mrb[0].mxu0 %v3714
        %v3986 = vpop.f32.mrb[0].mxu0
        %v3987 = vadd.f32 0.0, %v3986
        %v3988 = vpop.f32.mrb[0].mxu0
        %3989 = vmatprep.mubr.f32.mxu0 0.0
        %3990 = vmatmul.mubr.f32.gmra.mrb[0].mxu0 %v3717
        %v3991 = vpop.f32.mrb[0].mxu0
        %v3992 = vadd.f32 0.0, %v3991
        %v3993 = vpop.f32.mrb[0].mxu0
        %3994 = vmatprep.mubr.f32.mxu0 0.0
        %3995 = vmatmul.mubr.f32.gmra.mrb[0].mxu0 %v3720
        %v3996 = vpop.f32.mrb[0].mxu0
        %v3997 = vadd.f32 0.0, %v3996
        %v3998 = vpop.f32.mrb[0].mxu0
        %3999 = vmatprep.mubr.f32.mxu0 0.0
        %4000 = vmatmul.mubr.f32.gmra.mrb[0].mxu0 %v3723
        %v4001 = vpop.f32.mrb[0].mxu0
        %v4002 = vadd.f32 0.0, %v4001
        %v4003 = vpop.f32.mrb[0].mxu0
        %4004 = vmatprep.mubr.f32.mxu0 0.0
        %4005 = vmatmul.mubr.f32.gmra.mrb[0].mxu0 %v3726
        %v4006 = vpop.f32.mrb[0].mxu0
        %v4007 = vadd.f32 0.0, %v4006
        %v4008 = vpop.f32.mrb[0].mxu0
        %4009 = vmatprep.mubr.f32.mxu0 0.0
        %4010 = vmatmul.mubr.f32.gmra.mrb[0].mxu0 %v3729
        %v4011 = vpop.f32.mrb[0].mxu0
        %v4012 = vadd.f32 0.0, %v4011
        %v4013 = vpop.f32.mrb[0].mxu0
        %4014 = vmatprep.mubr.f32.mxu0 0.0
        %4015 = vmatmul.mubr.f32.gmra.mrb[0].mxu0 %v3732
        %v4016 = vpop.f32.mrb[0].mxu0
        %v4017 = vadd.f32 0.0, %v4016
        %v4018 = vpop.f32.mrb[0].mxu0
        %4019 = vmatprep.mubr.f32.mxu0 0.0
        %4020 = vmatmul.mubr.f32.gmra.mrb[0].mxu0 %v3735
        %v4021 = vpop.f32.mrb[0].mxu0
        %v4022 = vadd.f32 0.0, %v4021
        %v4023 = vpop.f32.mrb[0].mxu0
        %4024 = vmatprep.mubr.f32.mxu0 0.0
        %4025 = vmatmul.mubr.f32.gmra.mrb[0].mxu0 %v3738
        %v4026 = vpop.f32.mrb[0].mxu0
        %v4027 = vadd.f32 0.0, %v4026
        %v4028 = vpop.f32.mrb[0].mxu0
        %4029 = vmatprep.mubr.f32.mxu0 0.0
        %4030 = vmatmul.mubr.f32.gmra.mrb[0].mxu0 %v3741
        %v4031 = vpop.f32.mrb[0].mxu0
        %v4032 = vadd.f32 0.0, %v4031
        %v4033 = vpop.f32.mrb[0].mxu0
        %4034 = vmatprep.mubr.f32.mxu0 0.0
        %4035 = vmatmul.mubr.f32.gmra.mrb[0].mxu0 %v3744
        %v4036 = vpop.f32.mrb[0].mxu0
        %v4037 = vadd.f32 0.0, %v4036
        %v4038 = vpop.f32.mrb[0].mxu0
        %4039 = vmatprep.mubr.f32.mxu0 0.0
        %4040 = vmatmul.mubr.f32.gmra.mrb[0].mxu0 %v3747
        %v4041 = vpop.f32.mrb[0].mxu0
        %v4042 = vadd.f32 0.0, %v4041
        %v4043 = vpop.f32.mrb[0].mxu0
        %4044 = vmatprep.mubr.f32.mxu0 0.0
        %4045 = vmatmul.mubr.f32.gmra.mrb[0].mxu0 %v3750
        %v4046 = vpop.f32.mrb[0].mxu0
        %v4047 = vadd.f32 0.0, %v4046
        %v4048 = vpop.f32.mrb[0].mxu0
        %4049 = vmatprep.mubr.f32.mxu0 0.0
        %4050 = vmatmul.mubr.f32.gmra.mrb[0].mxu0 %v3753
        %v4051 = vpop.f32.mrb[0].mxu0
        %v4052 = vadd.f32 0.0, %v4051
        %v4053 = vpop.f32.mrb[0].mxu0
        %4054 = vmatprep.mubr.f32.mxu0 0.0
        %4055 = vmatmul.mubr.f32.gmra.mrb[0].mxu0 %v3756
        %v4056 = vpop.f32.mrb[0].mxu0
        %v4057 = vadd.f32 0.0, %v4056
        %v4058 = vpop.f32.mrb[0].mxu0
        %4059 = vmatprep.mubr.f32.mxu0 0.0
        %4060 = vmatmul.mubr.f32.gmra.mrb[0].mxu0 %v3759
        %v4061 = vpop.f32.mrb[0].mxu0
        %v4062 = vadd.f32 0.0, %v4061
        %v4063 = vpop.f32.mrb[0].mxu0
        %4064 = vmatprep.mubr.f32.mxu0 0.0
        %4065 = vmatmul.mubr.f32.gmra.mrb[0].mxu0 %v3762
        %v4066 = vpop.f32.mrb[0].mxu0
        %v4067 = vadd.f32 0.0, %v4066
        %v4068 = vpop.f32.mrb[0].mxu0
        %4069 = vmatprep.mubr.f32.mxu0 0.0
        %4070 = vmatmul.mubr.f32.gmra.mrb[0].mxu0 %v3765
        %v4071 = vpop.f32.mrb[0].mxu0
        %v4072 = vadd.f32 0.0, %v4071
        %v4073 = vpop.f32.mrb[0].mxu0
        %4074 = vdwg.mxu0
        %v4075 = vadd.f32 %v3334, %v3837
        %v4076 = vadd.f32 %v3339, %v3842
        %v4077 = vadd.f32 %v3344, %v3847
        %v4078 = vadd.f32 %v3349, %v3852
        %v4079 = vadd.f32 %v3354, %v3857
        %v4080 = vadd.f32 %v3359, %v3862
        %v4081 = vadd.f32 %v3364, %v3867
        %v4082 = vadd.f32 %v3369, %v3872
        %v4083 = vadd.f32 %v3374, %v3877
        %v4084 = vadd.f32 %v3379, %v3882
        %v4085 = vadd.f32 %v3384, %v3887
        %v4086 = vadd.f32 %v3389, %v3892
        %v4087 = vadd.f32 %v3394, %v3897
        %v4088 = vadd.f32 %v3399, %v3902
        %v4089 = vadd.f32 %v3404, %v3907
        %v4090 = vadd.f32 %v3409, %v3912
        %v4091 = vadd.f32 %v3414, %v3917
        %v4092 = vadd.f32 %v3419, %v3922
        %v4093 = vadd.f32 %v3424, %v3927
        %v4094 = vadd.f32 %v3429, %v3932
        %v4095 = vadd.f32 %v3434, %v3937
        %v4096 = vadd.f32 %v3439, %v3942
        %v4097 = vadd.f32 %v3444, %v3947
        %v4098 = vadd.f32 %v3449, %v3952
        %v4099 = vadd.f32 %v3454, %v3957
        %v4100 = vadd.f32 %v3459, %v3962
        %v4101 = vadd.f32 %v3464, %v3967
        %v4102 = vadd.f32 %v3469, %v3972
        %v4103 = vadd.f32 %v3474, %v3977
        %v4104 = vadd.f32 %v3479, %v3982
        %v4105 = vadd.f32 %v3484, %v3987
        %v4106 = vadd.f32 %v3489, %v3992
        %v4107 = vadd.f32 %v3494, %v3997
        %v4108 = vadd.f32 %v3499, %v4002
        %v4109 = vadd.f32 %v3504, %v4007
        %v4110 = vadd.f32 %v3509, %v4012
        %v4111 = vadd.f32 %v3514, %v4017
        %v4112 = vadd.f32 %v3519, %v4022
        %v4113 = vadd.f32 %v3524, %v4027
        %v4114 = vadd.f32 %v3529, %v4032
        %v4115 = vadd.f32 %v3534, %v4037
        %v4116 = vadd.f32 %v3539, %v4042
        %v4117 = vadd.f32 %v3544, %v4047
        %v4118 = vadd.f32 %v3549, %v4052
        %v4119 = vadd.f32 %v3554, %v4057
        %v4120 = vadd.f32 %v3559, %v4062
        %v4121 = vadd.f32 %v3564, %v4067
        %v4122 = vadd.f32 %v3569, %v4072
        %v4123 = vld [vmem:[#allocation11] sm:$0x1]
        %v4125 = vlaneseq
        %v4126 = vshrl.u32 %v4125, 7
        %v4127 = vsub.s32 0, %v4126
        %v4128 = vrot.slane %v4123, %v4127
        %v4130 = vadd.f32 %v4075, %v4128
        %v4131 = vadd.f32 %v4076, %v4128
        %v4132 = vadd.f32 %v4077, %v4128
        %v4133 = vadd.f32 %v4078, %v4128
        %v4134 = vadd.f32 %v4079, %v4128
        %v4135 = vadd.f32 %v4080, %v4128
        %v4136 = vadd.f32 %v4081, %v4128
        %v4137 = vadd.f32 %v4082, %v4128
        %v4138 = vadd.f32 %v4083, %v4128
        %v4139 = vadd.f32 %v4084, %v4128
        %v4140 = vadd.f32 %v4085, %v4128
        %v4141 = vadd.f32 %v4086, %v4128
        %v4142 = vadd.f32 %v4087, %v4128
        %v4143 = vadd.f32 %v4088, %v4128
        %v4144 = vadd.f32 %v4089, %v4128
        %v4145 = vadd.f32 %v4090, %v4128
        %v4146 = vadd.f32 %v4091, %v4128
        %v4147 = vadd.f32 %v4092, %v4128
        %v4148 = vadd.f32 %v4093, %v4128
        %v4149 = vadd.f32 %v4094, %v4128
        %v4150 = vadd.f32 %v4095, %v4128
        %v4151 = vadd.f32 %v4096, %v4128
        %v4152 = vadd.f32 %v4097, %v4128
        %v4153 = vadd.f32 %v4098, %v4128
        %v4154 = vadd.f32 %v4099, %v4128
        %v4155 = vadd.f32 %v4100, %v4128
        %v4156 = vadd.f32 %v4101, %v4128
        %v4157 = vadd.f32 %v4102, %v4128
        %v4158 = vadd.f32 %v4103, %v4128
        %v4159 = vadd.f32 %v4104, %v4128
        %v4160 = vadd.f32 %v4105, %v4128
        %v4161 = vadd.f32 %v4106, %v4128
        %v4162 = vadd.f32 %v4107, %v4128
        %v4163 = vadd.f32 %v4108, %v4128
        %v4164 = vadd.f32 %v4109, %v4128
        %v4165 = vadd.f32 %v4110, %v4128
        %v4166 = vadd.f32 %v4111, %v4128
        %v4167 = vadd.f32 %v4112, %v4128
        %v4168 = vadd.f32 %v4113, %v4128
        %v4169 = vadd.f32 %v4114, %v4128
        %v4170 = vadd.f32 %v4115, %v4128
        %v4171 = vadd.f32 %v4116, %v4128
        %v4172 = vadd.f32 %v4117, %v4128
        %v4173 = vadd.f32 %v4118, %v4128
        %v4174 = vadd.f32 %v4119, %v4128
        %v4175 = vadd.f32 %v4120, %v4128
        %v4176 = vadd.f32 %v4121, %v4128
        %v4177 = vadd.f32 %v4122, %v4128
        %v4178 = vmax.f32 %v4130, 0.0
        %v4179 = vmax.f32 %v4131, 0.0
        %v4180 = vmax.f32 %v4132, 0.0
        %v4181 = vmax.f32 %v4133, 0.0
        %v4182 = vmax.f32 %v4134, 0.0
        %v4183 = vmax.f32 %v4135, 0.0
        %v4184 = vmax.f32 %v4136, 0.0
        %v4185 = vmax.f32 %v4137, 0.0
        %v4186 = vmax.f32 %v4138, 0.0
        %v4187 = vmax.f32 %v4139, 0.0
        %v4188 = vmax.f32 %v4140, 0.0
        %v4189 = vmax.f32 %v4141, 0.0
        %v4190 = vmax.f32 %v4142, 0.0
        %v4191 = vmax.f32 %v4143, 0.0
        %v4192 = vmax.f32 %v4144, 0.0
        %v4193 = vmax.f32 %v4145, 0.0
        %v4194 = vmax.f32 %v4146, 0.0
        %v4195 = vmax.f32 %v4147, 0.0
        %v4196 = vmax.f32 %v4148, 0.0
        %v4197 = vmax.f32 %v4149, 0.0
        %v4198 = vmax.f32 %v4150, 0.0
        %v4199 = vmax.f32 %v4151, 0.0
        %v4200 = vmax.f32 %v4152, 0.0
        %v4201 = vmax.f32 %v4153, 0.0
        %v4202 = vmax.f32 %v4154, 0.0
        %v4203 = vmax.f32 %v4155, 0.0
        %v4204 = vmax.f32 %v4156, 0.0
        %v4205 = vmax.f32 %v4157, 0.0
        %v4206 = vmax.f32 %v4158, 0.0
        %v4207 = vmax.f32 %v4159, 0.0
        %v4208 = vmax.f32 %v4160, 0.0
        %v4209 = vmax.f32 %v4161, 0.0
        %v4210 = vmax.f32 %v4162, 0.0
        %v4211 = vmax.f32 %v4163, 0.0
        %v4212 = vmax.f32 %v4164, 0.0
        %v4213 = vmax.f32 %v4165, 0.0
        %v4214 = vmax.f32 %v4166, 0.0
        %v4215 = vmax.f32 %v4167, 0.0
        %v4216 = vmax.f32 %v4168, 0.0
        %v4217 = vmax.f32 %v4169, 0.0
        %v4218 = vmax.f32 %v4170, 0.0
        %v4219 = vmax.f32 %v4171, 0.0
        %v4220 = vmax.f32 %v4172, 0.0
        %v4221 = vmax.f32 %v4173, 0.0
        %v4222 = vmax.f32 %v4174, 0.0
        %v4223 = vmax.f32 %v4175, 0.0
        %v4224 = vmax.f32 %v4176, 0.0
        %v4225 = vmax.f32 %v4177, 0.0
        %v4226 = vld [vmem:[#allocation12] sm:$0xf]
        %v4227 = vld [vmem:[%s321 + $0x19] sm:$0xff]
        %v4228 = vld [vmem:[%s321 + $0x21] sm:$0xff]
        %v4229 = vld [vmem:[%s321 + $0x29] sm:$0xff]
        %v4230 = vld [vmem:[%s321 + $0x31] sm:$0xff]
        %v4231 = vld [vmem:[%s321 + $0x39] sm:$0xff]
        %v4232 = vld [vmem:[%s321 + $0x41] sm:$0xff]
        %v4233 = vld [vmem:[%s321 + $0x49] sm:$0xff]
        %v4234 = vld [vmem:[%s321 + $0x51] sm:$0xff]
        %v4235 = vld [vmem:[%s321 + $0x59] sm:$0xff]
        %v4236 = vld [vmem:[%s321 + $0x61] sm:$0xff]
        %v4237 = vld [vmem:[%s321 + $0x69] sm:$0xff]
        %v4238 = vld [vmem:[%s321 + $0x71] sm:$0xff]
        %v4239 = vld [vmem:[%s321 + $0x79] sm:$0xff]
        %v4240 = vld [vmem:[%s321 + $0x81] sm:$0xff]
        %v4241 = vld [vmem:[%s321 + $0x89] sm:$0xff]
        %v4242 = vld [vmem:[%s321 + $0x91] sm:$0xff]
        %v4243 = vld [vmem:[%s321 + $0x99] sm:$0xff]
        %v4244 = vld [vmem:[%s321 + $0xa1] sm:$0xff]
        %v4245 = vld [vmem:[%s321 + $0xa9] sm:$0xff]
        %v4246 = vld [vmem:[%s321 + $0xb1] sm:$0xff]
        %v4247 = vld [vmem:[%s321 + $0xb9] sm:$0xff]
        %v4248 = vld [vmem:[%s321 + $0xc1] sm:$0xff]
        %v4249 = vld [vmem:[%s321 + $0xc9] sm:$0xff]
        %v4250 = vld [vmem:[%s321 + $0xd1] sm:$0xff]
        %v4251 = vld [vmem:[%s321 + $0xd9] sm:$0xff]
        %v4252 = vld [vmem:[%s321 + $0xe1] sm:$0xff]
        %v4253 = vld [vmem:[%s321 + $0xe9] sm:$0xff]
        %v4254 = vld [vmem:[%s321 + $0xf1] sm:$0xff]
        %v4255 = vld [vmem:[%s321 + $0xf9] sm:$0xff]
        %v4256 = vld [vmem:[%s321 + $0x101] sm:$0xff]
        %v4257 = vld [vmem:[%s321 + $0x109] sm:$0xff]
        %v4258 = vld [vmem:[%s321 + $0x111] sm:$0xff]
        %v4259 = vld [vmem:[%s321 + $0x119] sm:$0xff]
        %v4260 = vld [vmem:[%s321 + $0x121] sm:$0xff]
        %v4261 = vld [vmem:[%s321 + $0x129] sm:$0xff]
        %v4262 = vld [vmem:[%s321 + $0x131] sm:$0xff]
        %v4263 = vld [vmem:[%s321 + $0x139] sm:$0xff]
        %v4264 = vld [vmem:[%s321 + $0x141] sm:$0xff]
        %v4265 = vld [vmem:[%s321 + $0x149] sm:$0xff]
        %v4266 = vld [vmem:[%s321 + $0x151] sm:$0xff]
        %v4267 = vld [vmem:[%s321 + $0x159] sm:$0xff]
        %v4268 = vld [vmem:[%s321 + $0x161] sm:$0xff]
        %v4269 = vld [vmem:[%s321 + $0x169] sm:$0xff]
        %v4270 = vld [vmem:[%s321 + $0x171] sm:$0xff]
        %v4271 = vld [vmem:[%s321 + $0x179] sm:$0xff]
        %v4272 = vld [vmem:[%s321 + $0x181] sm:$0xff]
        %v4273 = vld [vmem:[%s321 + $0x189] sm:$0xff]
        %v4274 = vld [vmem:[%s321 + $0x191] sm:$0xff]
        %v4275 = vld [vmem:[#allocation14] sm:$0x1]
        %v4277 = vlaneseq
        %v4278 = vshrl.u32 %v4277, 7
        %v4279 = vsub.s32 0, %v4278
        %v4280 = vrot.slane %v4275, %v4279
        %v4283 = vsel %vm2589, %v4178, 0
        %v4286 = vsel %vm2589, %v4179, 0
        %v4289 = vsel %vm2589, %v4180, 0
        %v4292 = vsel %vm2589, %v4181, 0
        %v4295 = vsel %vm2589, %v4182, 0
        %v4298 = vsel %vm2589, %v4183, 0
        %v4301 = vsel %vm2589, %v4184, 0
        %v4304 = vsel %vm2589, %v4185, 0
        %v4307 = vsel %vm2589, %v4186, 0
        %v4310 = vsel %vm2589, %v4187, 0
        %v4313 = vsel %vm2589, %v4188, 0
        %v4316 = vsel %vm2589, %v4189, 0
        %v4319 = vsel %vm2589, %v4190, 0
        %v4322 = vsel %vm2589, %v4191, 0
        %v4325 = vsel %vm2589, %v4192, 0
        %v4328 = vsel %vm2589, %v4193, 0
        %v4331 = vsel %vm2589, %v4194, 0
        %v4334 = vsel %vm2589, %v4195, 0
        %v4337 = vsel %vm2589, %v4196, 0
        %v4340 = vsel %vm2589, %v4197, 0
        %v4343 = vsel %vm2589, %v4198, 0
        %v4346 = vsel %vm2589, %v4199, 0
        %v4349 = vsel %vm2589, %v4200, 0
        %v4352 = vsel %vm2589, %v4201, 0
        %v4355 = vsel %vm2589, %v4202, 0
        %v4358 = vsel %vm2589, %v4203, 0
        %v4361 = vsel %vm2589, %v4204, 0
        %v4364 = vsel %vm2589, %v4205, 0
        %v4367 = vsel %vm2589, %v4206, 0
        %v4370 = vsel %vm2589, %v4207, 0
        %v4373 = vsel %vm2589, %v4208, 0
        %v4376 = vsel %vm2589, %v4209, 0
        %v4379 = vsel %vm2589, %v4210, 0
        %v4382 = vsel %vm2589, %v4211, 0
        %v4385 = vsel %vm2589, %v4212, 0
        %v4388 = vsel %vm2589, %v4213, 0
        %v4391 = vsel %vm2589, %v4214, 0
        %v4394 = vsel %vm2589, %v4215, 0
        %v4397 = vsel %vm2589, %v4216, 0
        %v4400 = vsel %vm2589, %v4217, 0
        %v4403 = vsel %vm2589, %v4218, 0
        %v4406 = vsel %vm2589, %v4219, 0
        %v4409 = vsel %vm2589, %v4220, 0
        %v4412 = vsel %vm2589, %v4221, 0
        %v4415 = vsel %vm2589, %v4222, 0
        %v4418 = vsel %vm2589, %v4223, 0
        %v4421 = vsel %vm2589, %v4224, 0
        %v4424 = vsel %vm2589, %v4225, 0
        %v4427 = vsel %vm2946, %v4226, 0
        %4429 = vmatprep.subr.mxu0 0.0
        %4430 = vmatpush1.msra.mxu0 %v4427
        %4431 = vmatprep.subr.mxu0 0.0
        %4432 = vmatpush1.msra.mxu0 0.0
        %4433 = vmatprep.subr.mxu0 0.0
        %4434 = vmatpush1.msra.mxu0 0.0
        %4435 = vmatprep.subr.mxu0 0.0
        %4436 = vmatpush1.msra.mxu0 0.0
        %4437 = vmatprep.subr.mxu0 0.0
        %4438 = vmatpush1.msra.mxu0 0.0
        %4439 = vmatprep.subr.mxu0 0.0
        %4440 = vmatpush1.msra.mxu0 0.0
        %4441 = vmatprep.subr.mxu0 0.0
        %4442 = vmatpush1.msra.mxu0 0.0
        %4443 = vmatprep.subr.mxu0 0.0
        %4444 = vmatpush1.msra.mxu0 0.0
        %4445 = vmatprep.subr.mxu0 0.0
        %4446 = vmatpush1.msra.mxu0 0.0
        %4447 = vmatprep.subr.mxu0 0.0
        %4448 = vmatpush1.msra.mxu0 0.0
        %4449 = vmatprep.subr.mxu0 0.0
        %4450 = vmatpush1.msra.mxu0 0.0
        %4451 = vmatprep.subr.mxu0 0.0
        %4452 = vmatpush1.msra.mxu0 0.0
        %4453 = vmatprep.subr.mxu0 0.0
        %4454 = vmatpush1.msra.mxu0 0.0
        %4455 = vmatprep.subr.mxu0 0.0
        %4456 = vmatpush1.msra.mxu0 0.0
        %4457 = vmatprep.subr.mxu0 0.0
        %4458 = vmatpush1.msra.mxu0 0.0
        %4459 = vmatprep.subr.mxu0 0.0
        %4460 = vmatpush1.msra.mxu0 0.0
        %4461 = vmatprep.subr.mxu0 0.0
        %4462 = vmatpush1.msra.mxu0 0.0
        %4463 = vmatprep.subr.mxu0 0.0
        %4464 = vmatpush1.msra.mxu0 0.0
        %4465 = vmatprep.subr.mxu0 0.0
        %4466 = vmatpush1.msra.mxu0 0.0
        %4467 = vmatprep.subr.mxu0 0.0
        %4468 = vmatpush1.msra.mxu0 0.0
        %4469 = vmatprep.subr.mxu0 0.0
        %4470 = vmatpush1.msra.mxu0 0.0
        %4471 = vmatprep.subr.mxu0 0.0
        %4472 = vmatpush1.msra.mxu0 0.0
        %4473 = vmatprep.subr.mxu0 0.0
        %4474 = vmatpush1.msra.mxu0 0.0
        %4475 = vmatprep.subr.mxu0 0.0
        %4476 = vmatpush1.msra.mxu0 0.0
        %4477 = vmatprep.subr.mxu0 0.0
        %4478 = vmatpush1.msra.mxu0 0.0
        %4479 = vmatprep.subr.mxu0 0.0
        %4480 = vmatpush1.msra.mxu0 0.0
        %4481 = vmatprep.subr.mxu0 0.0
        %4482 = vmatpush1.msra.mxu0 0.0
        %4483 = vmatprep.subr.mxu0 0.0
        %4484 = vmatpush1.msra.mxu0 0.0
        %4485 = vmatprep.subr.mxu0 0.0
        %4486 = vmatpush1.msra.mxu0 0.0
        %4487 = vmatprep.subr.mxu0 0.0
        %4488 = vmatpush1.msra.mxu0 0.0
        %4489 = vmatprep.subr.mxu0 0.0
        %4490 = vmatpush1.msra.mxu0 0.0
        %4491 = vmatprep.subr.mxu0 0.0
        %4492 = vmatpush1.msra.mxu0 0.0
        %4493 = vmatprep.mubr.f32.mxu0 0.0
        %4494 = vmatmul.mubr.f32.gmra.mrb[0].mxu0 %v4283
        %v4495 = vpop.f32.mrb[0].mxu0
        %v4496 = vadd.f32 %v4280, %v4495
        %v4497 = vpop.f32.mrb[0].mxu0
        %4498 = vmatprep.mubr.f32.mxu0 0.0
        %4499 = vmatmul.mubr.f32.gmra.mrb[0].mxu0 %v4286
        %v4500 = vpop.f32.mrb[0].mxu0
        %v4501 = vadd.f32 %v4280, %v4500
        %v4502 = vpop.f32.mrb[0].mxu0
        %4503 = vmatprep.mubr.f32.mxu0 0.0
        %4504 = vmatmul.mubr.f32.gmra.mrb[0].mxu0 %v4289
        %v4505 = vpop.f32.mrb[0].mxu0
        %v4506 = vadd.f32 %v4280, %v4505
        %v4507 = vpop.f32.mrb[0].mxu0
        %4508 = vmatprep.mubr.f32.mxu0 0.0
        %4509 = vmatmul.mubr.f32.gmra.mrb[0].mxu0 %v4292
        %v4510 = vpop.f32.mrb[0].mxu0
        %v4511 = vadd.f32 %v4280, %v4510
        %v4512 = vpop.f32.mrb[0].mxu0
        %4513 = vmatprep.mubr.f32.mxu0 0.0
        %4514 = vmatmul.mubr.f32.gmra.mrb[0].mxu0 %v4295
        %v4515 = vpop.f32.mrb[0].mxu0
        %v4516 = vadd.f32 %v4280, %v4515
        %v4517 = vpop.f32.mrb[0].mxu0
        %4518 = vmatprep.mubr.f32.mxu0 0.0
        %4519 = vmatmul.mubr.f32.gmra.mrb[0].mxu0 %v4298
        %v4520 = vpop.f32.mrb[0].mxu0
        %v4521 = vadd.f32 %v4280, %v4520
        %v4522 = vpop.f32.mrb[0].mxu0
        %4523 = vmatprep.mubr.f32.mxu0 0.0
        %4524 = vmatmul.mubr.f32.gmra.mrb[0].mxu0 %v4301
        %v4525 = vpop.f32.mrb[0].mxu0
        %v4526 = vadd.f32 %v4280, %v4525
        %v4527 = vpop.f32.mrb[0].mxu0
        %4528 = vmatprep.mubr.f32.mxu0 0.0
        %4529 = vmatmul.mubr.f32.gmra.mrb[0].mxu0 %v4304
        %v4530 = vpop.f32.mrb[0].mxu0
        %v4531 = vadd.f32 %v4280, %v4530
        %v4532 = vpop.f32.mrb[0].mxu0
        %4533 = vmatprep.mubr.f32.mxu0 0.0
        %4534 = vmatmul.mubr.f32.gmra.mrb[0].mxu0 %v4307
        %v4535 = vpop.f32.mrb[0].mxu0
        %v4536 = vadd.f32 %v4280, %v4535
        %v4537 = vpop.f32.mrb[0].mxu0
        %4538 = vmatprep.mubr.f32.mxu0 0.0
        %4539 = vmatmul.mubr.f32.gmra.mrb[0].mxu0 %v4310
        %v4540 = vpop.f32.mrb[0].mxu0
        %v4541 = vadd.f32 %v4280, %v4540
        %v4542 = vpop.f32.mrb[0].mxu0
        %4543 = vmatprep.mubr.f32.mxu0 0.0
        %4544 = vmatmul.mubr.f32.gmra.mrb[0].mxu0 %v4313
        %v4545 = vpop.f32.mrb[0].mxu0
        %v4546 = vadd.f32 %v4280, %v4545
        %v4547 = vpop.f32.mrb[0].mxu0
        %4548 = vmatprep.mubr.f32.mxu0 0.0
        %4549 = vmatmul.mubr.f32.gmra.mrb[0].mxu0 %v4316
        %v4550 = vpop.f32.mrb[0].mxu0
        %v4551 = vadd.f32 %v4280, %v4550
        %v4552 = vpop.f32.mrb[0].mxu0
        %4553 = vmatprep.mubr.f32.mxu0 0.0
        %4554 = vmatmul.mubr.f32.gmra.mrb[0].mxu0 %v4319
        %v4555 = vpop.f32.mrb[0].mxu0
        %v4556 = vadd.f32 %v4280, %v4555
        %v4557 = vpop.f32.mrb[0].mxu0
        %4558 = vmatprep.mubr.f32.mxu0 0.0
        %4559 = vmatmul.mubr.f32.gmra.mrb[0].mxu0 %v4322
        %v4560 = vpop.f32.mrb[0].mxu0
        %v4561 = vadd.f32 %v4280, %v4560
        %v4562 = vpop.f32.mrb[0].mxu0
        %4563 = vmatprep.mubr.f32.mxu0 0.0
        %4564 = vmatmul.mubr.f32.gmra.mrb[0].mxu0 %v4325
        %v4565 = vpop.f32.mrb[0].mxu0
        %v4566 = vadd.f32 %v4280, %v4565
        %v4567 = vpop.f32.mrb[0].mxu0
        %4568 = vmatprep.mubr.f32.mxu0 0.0
        %4569 = vmatmul.mubr.f32.gmra.mrb[0].mxu0 %v4328
        %v4570 = vpop.f32.mrb[0].mxu0
        %v4571 = vadd.f32 %v4280, %v4570
        %v4572 = vpop.f32.mrb[0].mxu0
        %4573 = vmatprep.mubr.f32.mxu0 0.0
        %4574 = vmatmul.mubr.f32.gmra.mrb[0].mxu0 %v4331
        %v4575 = vpop.f32.mrb[0].mxu0
        %v4576 = vadd.f32 %v4280, %v4575
        %v4577 = vpop.f32.mrb[0].mxu0
        %4578 = vmatprep.mubr.f32.mxu0 0.0
        %4579 = vmatmul.mubr.f32.gmra.mrb[0].mxu0 %v4334
        %v4580 = vpop.f32.mrb[0].mxu0
        %v4581 = vadd.f32 %v4280, %v4580
        %v4582 = vpop.f32.mrb[0].mxu0
        %4583 = vmatprep.mubr.f32.mxu0 0.0
        %4584 = vmatmul.mubr.f32.gmra.mrb[0].mxu0 %v4337
        %v4585 = vpop.f32.mrb[0].mxu0
        %v4586 = vadd.f32 %v4280, %v4585
        %v4587 = vpop.f32.mrb[0].mxu0
        %4588 = vmatprep.mubr.f32.mxu0 0.0
        %4589 = vmatmul.mubr.f32.gmra.mrb[0].mxu0 %v4340
        %v4590 = vpop.f32.mrb[0].mxu0
        %v4591 = vadd.f32 %v4280, %v4590
        %v4592 = vpop.f32.mrb[0].mxu0
        %4593 = vmatprep.mubr.f32.mxu0 0.0
        %4594 = vmatmul.mubr.f32.gmra.mrb[0].mxu0 %v4343
        %v4595 = vpop.f32.mrb[0].mxu0
        %v4596 = vadd.f32 %v4280, %v4595
        %v4597 = vpop.f32.mrb[0].mxu0
        %4598 = vmatprep.mubr.f32.mxu0 0.0
        %4599 = vmatmul.mubr.f32.gmra.mrb[0].mxu0 %v4346
        %v4600 = vpop.f32.mrb[0].mxu0
        %v4601 = vadd.f32 %v4280, %v4600
        %v4602 = vpop.f32.mrb[0].mxu0
        %4603 = vmatprep.mubr.f32.mxu0 0.0
        %4604 = vmatmul.mubr.f32.gmra.mrb[0].mxu0 %v4349
        %v4605 = vpop.f32.mrb[0].mxu0
        %v4606 = vadd.f32 %v4280, %v4605
        %v4607 = vpop.f32.mrb[0].mxu0
        %4608 = vmatprep.mubr.f32.mxu0 0.0
        %4609 = vmatmul.mubr.f32.gmra.mrb[0].mxu0 %v4352
        %v4610 = vpop.f32.mrb[0].mxu0
        %v4611 = vadd.f32 %v4280, %v4610
        %v4612 = vpop.f32.mrb[0].mxu0
        %4613 = vmatprep.mubr.f32.mxu0 0.0
        %4614 = vmatmul.mubr.f32.gmra.mrb[0].mxu0 %v4355
        %v4615 = vpop.f32.mrb[0].mxu0
        %v4616 = vadd.f32 %v4280, %v4615
        %v4617 = vpop.f32.mrb[0].mxu0
        %4618 = vmatprep.mubr.f32.mxu0 0.0
        %4619 = vmatmul.mubr.f32.gmra.mrb[0].mxu0 %v4358
        %v4620 = vpop.f32.mrb[0].mxu0
        %v4621 = vadd.f32 %v4280, %v4620
        %v4622 = vpop.f32.mrb[0].mxu0
        %4623 = vmatprep.mubr.f32.mxu0 0.0
        %4624 = vmatmul.mubr.f32.gmra.mrb[0].mxu0 %v4361
        %v4625 = vpop.f32.mrb[0].mxu0
        %v4626 = vadd.f32 %v4280, %v4625
        %v4627 = vpop.f32.mrb[0].mxu0
        %4628 = vmatprep.mubr.f32.mxu0 0.0
        %4629 = vmatmul.mubr.f32.gmra.mrb[0].mxu0 %v4364
        %v4630 = vpop.f32.mrb[0].mxu0
        %v4631 = vadd.f32 %v4280, %v4630
        %v4632 = vpop.f32.mrb[0].mxu0
        %4633 = vmatprep.mubr.f32.mxu0 0.0
        %4634 = vmatmul.mubr.f32.gmra.mrb[0].mxu0 %v4367
        %v4635 = vpop.f32.mrb[0].mxu0
        %v4636 = vadd.f32 %v4280, %v4635
        %v4637 = vpop.f32.mrb[0].mxu0
        %4638 = vmatprep.mubr.f32.mxu0 0.0
        %4639 = vmatmul.mubr.f32.gmra.mrb[0].mxu0 %v4370
        %v4640 = vpop.f32.mrb[0].mxu0
        %v4641 = vadd.f32 %v4280, %v4640
        %v4642 = vpop.f32.mrb[0].mxu0
        %4643 = vmatprep.mubr.f32.mxu0 0.0
        %4644 = vmatmul.mubr.f32.gmra.mrb[0].mxu0 %v4373
        %v4645 = vpop.f32.mrb[0].mxu0
        %v4646 = vadd.f32 %v4280, %v4645
        %v4647 = vpop.f32.mrb[0].mxu0
        %4648 = vmatprep.mubr.f32.mxu0 0.0
        %4649 = vmatmul.mubr.f32.gmra.mrb[0].mxu0 %v4376
        %v4650 = vpop.f32.mrb[0].mxu0
        %v4651 = vadd.f32 %v4280, %v4650
        %v4652 = vpop.f32.mrb[0].mxu0
        %4653 = vmatprep.mubr.f32.mxu0 0.0
        %4654 = vmatmul.mubr.f32.gmra.mrb[0].mxu0 %v4379
        %v4655 = vpop.f32.mrb[0].mxu0
        %v4656 = vadd.f32 %v4280, %v4655
        %v4657 = vpop.f32.mrb[0].mxu0
        %4658 = vmatprep.mubr.f32.mxu0 0.0
        %4659 = vmatmul.mubr.f32.gmra.mrb[0].mxu0 %v4382
        %v4660 = vpop.f32.mrb[0].mxu0
        %v4661 = vadd.f32 %v4280, %v4660
        %v4662 = vpop.f32.mrb[0].mxu0
        %4663 = vmatprep.mubr.f32.mxu0 0.0
        %4664 = vmatmul.mubr.f32.gmra.mrb[0].mxu0 %v4385
        %v4665 = vpop.f32.mrb[0].mxu0
        %v4666 = vadd.f32 %v4280, %v4665
        %v4667 = vpop.f32.mrb[0].mxu0
        %4668 = vmatprep.mubr.f32.mxu0 0.0
        %4669 = vmatmul.mubr.f32.gmra.mrb[0].mxu0 %v4388
        %v4670 = vpop.f32.mrb[0].mxu0
        %v4671 = vadd.f32 %v4280, %v4670
        %v4672 = vpop.f32.mrb[0].mxu0
        %4673 = vmatprep.mubr.f32.mxu0 0.0
        %4674 = vmatmul.mubr.f32.gmra.mrb[0].mxu0 %v4391
        %v4675 = vpop.f32.mrb[0].mxu0
        %v4676 = vadd.f32 %v4280, %v4675
        %v4677 = vpop.f32.mrb[0].mxu0
        %4678 = vmatprep.mubr.f32.mxu0 0.0
        %4679 = vmatmul.mubr.f32.gmra.mrb[0].mxu0 %v4394
        %v4680 = vpop.f32.mrb[0].mxu0
        %v4681 = vadd.f32 %v4280, %v4680
        %v4682 = vpop.f32.mrb[0].mxu0
        %4683 = vmatprep.mubr.f32.mxu0 0.0
        %4684 = vmatmul.mubr.f32.gmra.mrb[0].mxu0 %v4397
        %v4685 = vpop.f32.mrb[0].mxu0
        %v4686 = vadd.f32 %v4280, %v4685
        %v4687 = vpop.f32.mrb[0].mxu0
        %4688 = vmatprep.mubr.f32.mxu0 0.0
        %4689 = vmatmul.mubr.f32.gmra.mrb[0].mxu0 %v4400
        %v4690 = vpop.f32.mrb[0].mxu0
        %v4691 = vadd.f32 %v4280, %v4690
        %v4692 = vpop.f32.mrb[0].mxu0
        %4693 = vmatprep.mubr.f32.mxu0 0.0
        %4694 = vmatmul.mubr.f32.gmra.mrb[0].mxu0 %v4403
        %v4695 = vpop.f32.mrb[0].mxu0
        %v4696 = vadd.f32 %v4280, %v4695
        %v4697 = vpop.f32.mrb[0].mxu0
        %4698 = vmatprep.mubr.f32.mxu0 0.0
        %4699 = vmatmul.mubr.f32.gmra.mrb[0].mxu0 %v4406
        %v4700 = vpop.f32.mrb[0].mxu0
        %v4701 = vadd.f32 %v4280, %v4700
        %v4702 = vpop.f32.mrb[0].mxu0
        %4703 = vmatprep.mubr.f32.mxu0 0.0
        %4704 = vmatmul.mubr.f32.gmra.mrb[0].mxu0 %v4409
        %v4705 = vpop.f32.mrb[0].mxu0
        %v4706 = vadd.f32 %v4280, %v4705
        %v4707 = vpop.f32.mrb[0].mxu0
        %4708 = vmatprep.mubr.f32.mxu0 0.0
        %4709 = vmatmul.mubr.f32.gmra.mrb[0].mxu0 %v4412
        %v4710 = vpop.f32.mrb[0].mxu0
        %v4711 = vadd.f32 %v4280, %v4710
        %v4712 = vpop.f32.mrb[0].mxu0
        %4713 = vmatprep.mubr.f32.mxu0 0.0
        %4714 = vmatmul.mubr.f32.gmra.mrb[0].mxu0 %v4415
        %v4715 = vpop.f32.mrb[0].mxu0
        %v4716 = vadd.f32 %v4280, %v4715
        %v4717 = vpop.f32.mrb[0].mxu0
        %4718 = vmatprep.mubr.f32.mxu0 0.0
        %4719 = vmatmul.mubr.f32.gmra.mrb[0].mxu0 %v4418
        %v4720 = vpop.f32.mrb[0].mxu0
        %v4721 = vadd.f32 %v4280, %v4720
        %v4722 = vpop.f32.mrb[0].mxu0
        %4723 = vmatprep.mubr.f32.mxu0 0.0
        %4724 = vmatmul.mubr.f32.gmra.mrb[0].mxu0 %v4421
        %v4725 = vpop.f32.mrb[0].mxu0
        %v4726 = vadd.f32 %v4280, %v4725
        %v4727 = vpop.f32.mrb[0].mxu0
        %4728 = vmatprep.mubr.f32.mxu0 0.0
        %4729 = vmatmul.mubr.f32.gmra.mrb[0].mxu0 %v4424
        %v4730 = vpop.f32.mrb[0].mxu0
        %v4731 = vadd.f32 %v4280, %v4730
        %v4732 = vpop.f32.mrb[0].mxu0
        %4733 = vdwg.mxu0
        %v4734 = vadd.f32 %v4496, %v4227
        %v4735 = vadd.f32 %v4501, %v4228
        %v4736 = vadd.f32 %v4506, %v4229
        %v4737 = vadd.f32 %v4511, %v4230
        %v4738 = vadd.f32 %v4516, %v4231
        %v4739 = vadd.f32 %v4521, %v4232
        %v4740 = vadd.f32 %v4526, %v4233
        %v4741 = vadd.f32 %v4531, %v4234
        %v4742 = vadd.f32 %v4536, %v4235
        %v4743 = vadd.f32 %v4541, %v4236
        %v4744 = vadd.f32 %v4546, %v4237
        %v4745 = vadd.f32 %v4551, %v4238
        %v4746 = vadd.f32 %v4556, %v4239
        %v4747 = vadd.f32 %v4561, %v4240
        %v4748 = vadd.f32 %v4566, %v4241
        %v4749 = vadd.f32 %v4571, %v4242
        %v4750 = vadd.f32 %v4576, %v4243
        %v4751 = vadd.f32 %v4581, %v4244
        %v4752 = vadd.f32 %v4586, %v4245
        %v4753 = vadd.f32 %v4591, %v4246
        %v4754 = vadd.f32 %v4596, %v4247
        %v4755 = vadd.f32 %v4601, %v4248
        %v4756 = vadd.f32 %v4606, %v4249
        %v4757 = vadd.f32 %v4611, %v4250
        %v4758 = vadd.f32 %v4616, %v4251
        %v4759 = vadd.f32 %v4621, %v4252
        %v4760 = vadd.f32 %v4626, %v4253
        %v4761 = vadd.f32 %v4631, %v4254
        %v4762 = vadd.f32 %v4636, %v4255
        %v4763 = vadd.f32 %v4641, %v4256
        %v4764 = vadd.f32 %v4646, %v4257
        %v4765 = vadd.f32 %v4651, %v4258
        %v4766 = vadd.f32 %v4656, %v4259
        %v4767 = vadd.f32 %v4661, %v4260
        %v4768 = vadd.f32 %v4666, %v4261
        %v4769 = vadd.f32 %v4671, %v4262
        %v4770 = vadd.f32 %v4676, %v4263
        %v4771 = vadd.f32 %v4681, %v4264
        %v4772 = vadd.f32 %v4686, %v4265
        %v4773 = vadd.f32 %v4691, %v4266
        %v4774 = vadd.f32 %v4696, %v4267
        %v4775 = vadd.f32 %v4701, %v4268
        %v4776 = vadd.f32 %v4706, %v4269
        %v4777 = vadd.f32 %v4711, %v4270
        %v4778 = vadd.f32 %v4716, %v4271
        %v4779 = vadd.f32 %v4721, %v4272
        %v4780 = vadd.f32 %v4726, %v4273
        %v4781 = vadd.f32 %v4731, %v4274
        %v4782 = vmax.f32 %v4734, 0.0
        %v4783 = vmax.f32 %v4735, 0.0
        %v4784 = vmax.f32 %v4736, 0.0
        %v4785 = vmax.f32 %v4737, 0.0
        %v4786 = vmax.f32 %v4738, 0.0
        %v4787 = vmax.f32 %v4739, 0.0
        %v4788 = vmax.f32 %v4740, 0.0
        %v4789 = vmax.f32 %v4741, 0.0
        %v4790 = vmax.f32 %v4742, 0.0
        %v4791 = vmax.f32 %v4743, 0.0
        %v4792 = vmax.f32 %v4744, 0.0
        %v4793 = vmax.f32 %v4745, 0.0
        %v4794 = vmax.f32 %v4746, 0.0
        %v4795 = vmax.f32 %v4747, 0.0
        %v4796 = vmax.f32 %v4748, 0.0
        %v4797 = vmax.f32 %v4749, 0.0
        %v4798 = vmax.f32 %v4750, 0.0
        %v4799 = vmax.f32 %v4751, 0.0
        %v4800 = vmax.f32 %v4752, 0.0
        %v4801 = vmax.f32 %v4753, 0.0
        %v4802 = vmax.f32 %v4754, 0.0
        %v4803 = vmax.f32 %v4755, 0.0
        %v4804 = vmax.f32 %v4756, 0.0
        %v4805 = vmax.f32 %v4757, 0.0
        %v4806 = vmax.f32 %v4758, 0.0
        %v4807 = vmax.f32 %v4759, 0.0
        %v4808 = vmax.f32 %v4760, 0.0
        %v4809 = vmax.f32 %v4761, 0.0
        %v4810 = vmax.f32 %v4762, 0.0
        %v4811 = vmax.f32 %v4763, 0.0
        %v4812 = vmax.f32 %v4764, 0.0
        %v4813 = vmax.f32 %v4765, 0.0
        %v4814 = vmax.f32 %v4766, 0.0
        %v4815 = vmax.f32 %v4767, 0.0
        %v4816 = vmax.f32 %v4768, 0.0
        %v4817 = vmax.f32 %v4769, 0.0
        %v4818 = vmax.f32 %v4770, 0.0
        %v4819 = vmax.f32 %v4771, 0.0
        %v4820 = vmax.f32 %v4772, 0.0
        %v4821 = vmax.f32 %v4773, 0.0
        %v4822 = vmax.f32 %v4774, 0.0
        %v4823 = vmax.f32 %v4775, 0.0
        %v4824 = vmax.f32 %v4776, 0.0
        %v4825 = vmax.f32 %v4777, 0.0
        %v4826 = vmax.f32 %v4778, 0.0
        %v4827 = vmax.f32 %v4779, 0.0
        %v4828 = vmax.f32 %v4780, 0.0
        %v4829 = vmax.f32 %v4781, 0.0
        %4830 = vst.msk [vmem:[%s375] sm:$0xff] %vm1394, %v4782
        %4831 = vst.msk [vmem:[%s375 + $0x8] sm:$0xff] %vm1394, %v4783
        %4832 = vst.msk [vmem:[%s375 + $0x10] sm:$0xff] %vm1394, %v4784
        %4833 = vst.msk [vmem:[%s375 + $0x18] sm:$0xff] %vm1394, %v4785
        %4834 = vst.msk [vmem:[%s375 + $0x20] sm:$0xff] %vm1394, %v4786
        %4835 = vst.msk [vmem:[%s375 + $0x28] sm:$0xff] %vm1394, %v4787
        %4836 = vst.msk [vmem:[%s375 + $0x30] sm:$0xff] %vm1394, %v4788
        %4837 = vst.msk [vmem:[%s375 + $0x38] sm:$0xff] %vm1394, %v4789
        %4838 = vst.msk [vmem:[%s375 + $0x40] sm:$0xff] %vm1394, %v4790
        %4839 = vst.msk [vmem:[%s375 + $0x48] sm:$0xff] %vm1394, %v4791
        %4840 = vst.msk [vmem:[%s375 + $0x50] sm:$0xff] %vm1394, %v4792
        %4841 = vst.msk [vmem:[%s375 + $0x58] sm:$0xff] %vm1394, %v4793
        %4842 = vst.msk [vmem:[%s375 + $0x60] sm:$0xff] %vm1394, %v4794
        %4843 = vst.msk [vmem:[%s375 + $0x68] sm:$0xff] %vm1394, %v4795
        %4844 = vst.msk [vmem:[%s375 + $0x70] sm:$0xff] %vm1394, %v4796
        %4845 = vst.msk [vmem:[%s375 + $0x78] sm:$0xff] %vm1394, %v4797
        %4846 = vst.msk [vmem:[%s375 + $0x80] sm:$0xff] %vm1394, %v4798
        %4847 = vst.msk [vmem:[%s375 + $0x88] sm:$0xff] %vm1394, %v4799
        %4848 = vst.msk [vmem:[%s375 + $0x90] sm:$0xff] %vm1394, %v4800
        %4849 = vst.msk [vmem:[%s375 + $0x98] sm:$0xff] %vm1394, %v4801
        %4850 = vst.msk [vmem:[%s375 + $0xa0] sm:$0xff] %vm1394, %v4802
        %4851 = vst.msk [vmem:[%s375 + $0xa8] sm:$0xff] %vm1394, %v4803
        %4852 = vst.msk [vmem:[%s375 + $0xb0] sm:$0xff] %vm1394, %v4804
        %4853 = vst.msk [vmem:[%s375 + $0xb8] sm:$0xff] %vm1394, %v4805
        %4854 = vst.msk [vmem:[%s375 + $0xc0] sm:$0xff] %vm1394, %v4806
        %4855 = vst.msk [vmem:[%s375 + $0xc8] sm:$0xff] %vm1394, %v4807
        %4856 = vst.msk [vmem:[%s375 + $0xd0] sm:$0xff] %vm1394, %v4808
        %4857 = vst.msk [vmem:[%s375 + $0xd8] sm:$0xff] %vm1394, %v4809
        %4858 = vst.msk [vmem:[%s375 + $0xe0] sm:$0xff] %vm1394, %v4810
        %4859 = vst.msk [vmem:[%s375 + $0xe8] sm:$0xff] %vm1394, %v4811
        %4860 = vst.msk [vmem:[%s375 + $0xf0] sm:$0xff] %vm1394, %v4812
        %4861 = vst.msk [vmem:[%s375 + $0xf8] sm:$0xff] %vm1394, %v4813
        %4862 = vst.msk [vmem:[%s375 + $0x100] sm:$0xff] %vm1394, %v4814
        %4863 = vst.msk [vmem:[%s375 + $0x108] sm:$0xff] %vm1394, %v4815
        %4864 = vst.msk [vmem:[%s375 + $0x110] sm:$0xff] %vm1394, %v4816
        %4865 = vst.msk [vmem:[%s375 + $0x118] sm:$0xff] %vm1394, %v4817
        %4866 = vst.msk [vmem:[%s375 + $0x120] sm:$0xff] %vm1394, %v4818
        %4867 = vst.msk [vmem:[%s375 + $0x128] sm:$0xff] %vm1394, %v4819
        %4868 = vst.msk [vmem:[%s375 + $0x130] sm:$0xff] %vm1394, %v4820
        %4869 = vst.msk [vmem:[%s375 + $0x138] sm:$0xff] %vm1394, %v4821
        %4870 = vst.msk [vmem:[%s375 + $0x140] sm:$0xff] %vm1394, %v4822
        %4871 = vst.msk [vmem:[%s375 + $0x148] sm:$0xff] %vm1394, %v4823
        %4872 = vst.msk [vmem:[%s375 + $0x150] sm:$0xff] %vm1394, %v4824
        %4873 = vst.msk [vmem:[%s375 + $0x158] sm:$0xff] %vm1394, %v4825
        %4874 = vst.msk [vmem:[%s375 + $0x160] sm:$0xff] %vm1394, %v4826
        %4875 = vst.msk [vmem:[%s375 + $0x168] sm:$0xff] %vm1394, %v4827
        %4876 = vst.msk [vmem:[%s375 + $0x170] sm:$0xff] %vm1394, %v4828
        %4877 = vst.msk [vmem:[%s375 + $0x178] sm:$0xff] %vm1394, %v4829
        %s4878 = sand.u32 %s187, 1
        %s4879 = scalar_lea.sflag [#allocation5], %s4878
        %s4880 = sand.u32 %s187, 1
        %s4881 = smul.addr %s4880, 384
        %s4882 = scalar_lea.vmem [#allocation15], %s4881
        // Predicated region
        $region77: #{bottleneck_forward.1} parent=47 // pred_check
          %p4883 = pneg %p197
        $region78: #{bottleneck_forward.1} parent=47 // pred_check_branch
          %4885 = sbr.rel (%p4883) target = $region80
        $region79: #{bottleneck_forward.1} parent=47 // pred_region
          %s4887 = ssub.s32 6144, 6144
          %4888 = vsyncadd %s4879, %s4887
          %s4889 = smul.addr %s27, 48
          %s4890 = smul.addr %s4889, 128
          %s4891 = scalar_lea.hbm %s7, %s4890
          %s4892 = sshll.u32 %s4882, 4
          %s4893 = int_to_ptr.vmem [resolvable:$true] %s4892
          %4898 = dma.vmem_to_hbm [thread:$0]  %s4893, 6144, %s4891, %s4879, 128, 128, 8
        $region80: #{bottleneck_forward.1} parent=47 // pred_fallthru
          _
      $region48: #{bottleneck_forward.1} parent=5 // pred_fallthru
        _
      %p4899 = scmp.le.s32.totalorder 2, %s22
      // Predicated region
      $region81: #{bottleneck_forward.1} parent=5 // pred_check
        %p4900 = pneg %p4899
      $region82: #{bottleneck_forward.1} parent=5 // pred_check_branch
        %4902 = sbr.rel (%p4900) target = $region84
      $region83: #{bottleneck_forward.1} parent=5 // pred_region
        %s4903 = ssub.s32 %s22, 2
        // Predicated region
        $region85: #{bottleneck_forward.1} parent=83 // pred_check
          %p4904 = pneg %p203
        $region86: #{bottleneck_forward.1} parent=83 // pred_check_branch
          %4906 = sbr.rel (%p4904) target = $region88
        $region87: #{bottleneck_forward.1} parent=83 // pred_region
          %s4907 = sand.u32 %s188, 1
          %s4908 = scalar_lea.sflag [#allocation5], %s4907
          %s4909 = sand.u32 %s188, 1
          %s4910 = smul.addr %s4909, 384
          %s4911 = scalar_lea.vmem [#allocation15], %s4910
          %4912 = dma.done %s4908, 6144
        $region88: #{bottleneck_forward.1} parent=83 // pred_fallthru
          _
      $region84: #{bottleneck_forward.1} parent=5 // pred_fallthru
        _
    $region6: #{bottleneck_forward.1} parent=1 // loop_footer
      %s26 = sadd.s32 1, %s22
    $region7: #{bottleneck_forward.1} parent=1 // loop_footer_branch
      %21 = sbr.rel target = $region3
    $region8: #{bottleneck_forward.1} parent=1 // loop_exit
      _
    %4913 = vsyncpa [#allocation4], 1
    %s4914 = scalar_lea.sflag [#allocation4], 1
    %4915 = vsyncpa %s4914, 1
    %4916 = vsyncpa [#allocation7], 1
    %4917 = vsyncpa [#allocation10], 1
    %4918 = vsyncpa [#allocation13], 1
    %4919 = vsyncpa [#allocation5], 1
    %s4920 = scalar_lea.sflag [#allocation5], 1
    %4921 = vsyncpa %s4920, 1

</llo_original>
